<compile_context>
chip_gen: v5e
topology: v5e:2x2
jax: 0.10.0
libtpu: 0.0.40
codegen_flags: <defaults>
</compile_context>

<pallas_src>
import functools
import math

import jax
import jax.numpy as jnp
from jax.experimental import pallas as pl
from jax.experimental.pallas import tpu as pltpu


_LANE = 128
_VMEM_LIMIT = 48 * 1024 * 1024  # safe on v7x (64 MiB physical); ample for our tiles


# ---------------------------------------------------------------------------
# In-kernel standard-normal draw from the stateful TPU PRNG.
# ---------------------------------------------------------------------------
def _uniform_pair(shape):
    """Two independent uniforms; u1 strictly in (0,1), u2 in [0,1)."""
    b1 = pltpu.prng_random_bits(shape)
    b2 = pltpu.prng_random_bits(shape)
    if b1.dtype != jnp.uint32:
        b1 = pltpu.bitcast(b1, jnp.uint32)
        b2 = pltpu.bitcast(b2, jnp.uint32)
    # Keep 24 high bits -> values < 2**24 fit int32, int->f32 convert is cheap.
    h1 = pltpu.bitcast(b1 >> 8, jnp.int32)
    h2 = pltpu.bitcast(b2 >> 8, jnp.int32)
    scale = jnp.float32(1.0 / (1 << 24))
    u1 = (h1.astype(jnp.float32) + 0.5) * scale   # (0, 1): never log(0)
    u2 = h2.astype(jnp.float32) * scale           # [0, 1)
    return u1, u2


def _draw_normal(shape):
    """N(0,1) draw inside the kernel (call pltpu.prng_seed first)."""
    if hasattr(pltpu, "stateful_normal"):
        try:
            return pltpu.stateful_normal(shape, jnp.float32)
        except Exception:
            pass  # signature drift / unsupported -> paired Box-Muller fallback
    rows, cols = shape
    two_pi = jnp.float32(2.0 * math.pi)
    if rows % 2 == 0:
        # Paired Box-Muller: both outputs (cos and sin branch) are used, so the
        # expensive log/sqrt and the PRNG draws are amortized over 2 normals.
        half = (rows // 2, cols)
        u1, u2 = _uniform_pair(half)
        r = jnp.sqrt(-2.0 * jnp.log(u1))
        t = two_pi * u2
        return jnp.concatenate([r * jnp.cos(t), r * jnp.sin(t)], axis=0)
    u1, u2 = _uniform_pair(shape)
    r = jnp.sqrt(-2.0 * jnp.log(u1))
    return r * jnp.cos(two_pi * u2)


# ---------------------------------------------------------------------------
# Kernels (grid = (output-column tiles, Monte-Carlo samples))
# ---------------------------------------------------------------------------
def _wn_kernel_prng(seed_ref, x_ref, w_ref, o_ref, inv_ref, *, alpha,
                    deterministic, apply_relu):
    s = pl.program_id(1)

    @pl.when(s == 0)
    def _():
        x = x_ref[...].astype(jnp.float32)
        w = w_ref[...].astype(jnp.float32)
        den = jnp.dot(x * x, w * w, preferred_element_type=jnp.float32)  # (B, tn)
        if deterministic:
            # S == 1 -> numerator is exactly 0; reproduce the reference's
            # 0/0 -> NaN where the denominator vanishes, exact 0 elsewhere.
            inv_ref[...] = jnp.where(den == 0.0, jnp.float32(jnp.nan),
                                     jnp.float32(0.0))
        else:
            # Column norm of W cancels exactly; fold sqrt(alpha) into the
            # one-time (B, tn) scale instead of scaling the (K, tn) noise.
            inv_ref[...] = jax.lax.rsqrt(den) * jnp.float32(math.sqrt(alpha))

    if deterministic:
        out = inv_ref[...]
    else:
        # Independent stream per (layer seed, column tile, MC sample).
        pltpu.prng_seed(seed_ref[0]
                        + pl.program_id(0) * jnp.int32(1000003)
                        + s * jnp.int32(7919))
        x = x_ref[...].astype(jnp.float32)
        w = w_ref[...].astype(jnp.float32)
        delta = _draw_normal(w.shape)                       # N(0,1), on-chip
        num = jnp.dot(x, w * delta, preferred_element_type=jnp.float32)
        out = num * inv_ref[...]
    if apply_relu:
        out = jnp.maximum(out, 0.0)
    o_ref[0] = out.astype(o_ref.dtype)


def _wn_kernel_hostdelta(x_ref, w_ref, d_ref, o_ref, inv_ref, *, apply_relu):
    """Fallback: noise delta = sqrt(alpha)*N(0,1) streamed from HBM."""
    s = pl.program_id(1)

    @pl.when(s == 0)
    def _():
        x = x_ref[...].astype(jnp.float32)
        w = w_ref[...].astype(jnp.float32)
        den = jnp.dot(x * x, w * w, preferred_element_type=jnp.float32)
        inv_ref[...] = jax.lax.rsqrt(den)

    x = x_ref[...].astype(jnp.float32)
    w = w_ref[...].astype(jnp.float32)
    num = jnp.dot(x, w * d_ref[0], preferred_element_type=jnp.float32)
    out = num * inv_ref[...]
    if apply_relu:
        out = jnp.maximum(out, 0.0)
    o_ref[0] = out.astype(o_ref.dtype)


# ---------------------------------------------------------------------------
# Wrappers
# ---------------------------------------------------------------------------
def _padded_n(n):
    return max(_LANE, ((n + _LANE - 1) // _LANE) * _LANE)


def _pick_tn(n_pad, tn_req):
    tn = min(tn_req, n_pad)
    tn = max(_LANE, (tn // _LANE) * _LANE)
    while n_pad % tn:
        tn -= _LANE
    return tn


def _wn_linear_prng(x, w, *, seed, alpha, num_samples, deterministic,
                    apply_relu, tn):
    x = x.astype(jnp.float32)
    B, K = x.shape
    Kw, N = w.shape
    assert K == Kw
    n_pad = _padded_n(N)
    if n_pad != N:
        w = jnp.pad(w, ((0, 0), (0, n_pad - N)))   # lane-dense output blocks
    tn = _pick_tn(n_pad, tn)
    kernel = functools.partial(_wn_kernel_prng, alpha=alpha,
                               deterministic=deterministic,
                               apply_relu=apply_relu)
    seed_arr = jnp.asarray([seed], dtype=jnp.int32)
    out = pl.pallas_call(
        kernel,
        out_shape=jax.ShapeDtypeStruct((num_samples, B, n_pad), jnp.float32),
        grid_spec=pltpu.PrefetchScalarGridSpec(
            num_scalar_prefetch=1,
            grid=(n_pad // tn, num_samples),
            in_specs=[
                # x resident for the whole grid
                pl.BlockSpec((B, K), lambda j, s, seed_ref: (0, 0)),
                # W tile: constant in the sample index -> stays resident in VMEM
                pl.BlockSpec((K, tn), lambda j, s, seed_ref: (0, j)),
            ],
            out_specs=pl.BlockSpec((1, B, tn),
                                   lambda j, s, seed_ref: (s, 0, j)),
            scratch_shapes=[pltpu.VMEM((B, tn), jnp.float32)],
        ),
        compiler_params=pltpu.CompilerParams(
            # sample axis is "arbitrary": it carries the inv scratch across steps
            dimension_semantics=("parallel", "arbitrary"),
            vmem_limit_bytes=_VMEM_LIMIT,
        ),
    )(seed_arr, x, w)
    return out[:, :, :N] if n_pad != N else out


def _wn_linear_hostdelta(x, w, delta, *, apply_relu, tn):
    x = x.astype(jnp.float32)
    B, K = x.shape
    _, N = w.shape
    num_samples = delta.shape[0]
    n_pad = _padded_n(N)
    if n_pad != N:
        w = jnp.pad(w, ((0, 0), (0, n_pad - N)))
        delta = jnp.pad(delta, ((0, 0), (0, 0), (0, n_pad - N)))
    tn = _pick_tn(n_pad, tn)
    kernel = functools.partial(_wn_kernel_hostdelta, apply_relu=apply_relu)
    out = pl.pallas_call(
        kernel,
        out_shape=jax.ShapeDtypeStruct((num_samples, B, n_pad), jnp.float32),
        grid_spec=pltpu.PrefetchScalarGridSpec(
            num_scalar_prefetch=0,
            grid=(n_pad // tn, num_samples),
            in_specs=[
                pl.BlockSpec((B, K), lambda j, s: (0, 0)),
                pl.BlockSpec((K, tn), lambda j, s: (0, j)),
                pl.BlockSpec((1, K, tn), lambda j, s: (s, 0, j)),
            ],
            out_specs=pl.BlockSpec((1, B, tn), lambda j, s: (s, 0, j)),
            scratch_shapes=[pltpu.VMEM((B, tn), jnp.float32)],
        ),
        compiler_params=pltpu.CompilerParams(
            dimension_semantics=("parallel", "arbitrary"),
            vmem_limit_bytes=_VMEM_LIMIT,
        ),
    )(x, w, delta)
    return out[:, :, :N] if n_pad != N else out


_IN_KERNEL_PRNG_OK = None


def in_kernel_prng_supported():
    """Probe once whether this jax build lowers/executes the in-kernel PRNG path."""
    global _IN_KERNEL_PRNG_OK
    if _IN_KERNEL_PRNG_OK is None:
        try:
            xp = jnp.ones((8, 128), jnp.float32)
            wp = jnp.full((128, 128), 0.01, jnp.float32)
            out = _wn_linear_prng(xp, wp, seed=7, alpha=0.01, num_samples=2,
                                  deterministic=False, apply_relu=False, tn=128)
            out = jax.block_until_ready(out)
            ok = bool(jnp.all(jnp.isfinite(out))) and bool(jnp.std(out) > 0.0)
            ok = ok and bool(jnp.any(out[0] != out[1]))  # per-sample reseed works
            _IN_KERNEL_PRNG_OK = ok
        except Exception:
            # NOTE: broad catch -> any compile failure (even non-PRNG-related)
            # routes to the slower host-delta path rather than crashing.
            _IN_KERNEL_PRNG_OK = False
    return _IN_KERNEL_PRNG_OK


def weightnorm_linear(x, w, *, seed, alpha, num_samples=1, deterministic=False,
                      apply_relu=False, tn=512, use_in_kernel_prng=None):
    """Weight-normalized noisy linear layer. Returns (num_samples, B, N)."""
    if deterministic:
        # Deterministic branch never touches PRNG primitives -> safe everywhere.
        return _wn_linear_prng(x, w, seed=seed, alpha=alpha,
                               num_samples=num_samples, deterministic=True,
                               apply_relu=apply_relu, tn=tn)
    if use_in_kernel_prng is None:
        use_in_kernel_prng = in_kernel_prng_supported()
    if use_in_kernel_prng:
        return _wn_linear_prng(x, w, seed=seed, alpha=alpha,
                               num_samples=num_samples, deterministic=False,
                               apply_relu=apply_relu, tn=tn)
    # Fallback: host-generated delta, one pallas_call with samples on the grid.
    # (Materializes (num_samples, K, N) on host; only intended for modest
    # num_samples on builds without in-kernel PRNG support.)
    key = jax.random.PRNGKey(seed)
    delta = (math.sqrt(alpha)
             * jax.random.normal(key, (num_samples,) + w.shape, jnp.float32))
    return _wn_linear_hostdelta(x, w, delta, apply_relu=apply_relu, tn=tn)


# ---------------------------------------------------------------------------
# Net: 4 WeightNorm layers with ReLU between (PyTorch Net.forward structure)
# ---------------------------------------------------------------------------
class Net:
    def __init__(self, input_size, num_classes, alpha=0.01, *, key,
                 hidden=(1024, 1024, 2048), param_dtype=jnp.float32):
        sizes = [input_size, *hidden, num_classes]
        keys = jax.random.split(key, len(sizes) - 1)
        self.alpha = alpha
        # internal_weight.data.normal_(0, 0.01); magnitude/bias unused in forward.
        # param_dtype=jnp.bfloat16 halves W HBM traffic (compute stays f32).
        self.weights = [
            (0.01 * jax.random.normal(k, (sizes[i], sizes[i + 1]), jnp.float32)
             ).astype(param_dtype)
            for i, k in enumerate(keys)
        ]

    def forward(self, x, *, seed=0, deterministic=False):
        h = x
        n = len(self.weights)
        for i, w in enumerate(self.weights):
            out = weightnorm_linear(h, w, seed=seed * 1000 + i, alpha=self.alpha,
                                    num_samples=1, deterministic=deterministic,
                                    apply_relu=(i < n - 1))
            h = out[0]
        return h

    def mc_layer(self, x, layer, *, seed=0, num_samples=8):
        """Monte-Carlo normed activations of one layer (the original 500-sample
        loop, scaled down); noise regenerated on-chip while W stays in VMEM."""
        return weightnorm_linear(x, self.weights[layer], seed=seed,
                                 alpha=self.alpha, num_samples=num_samples)


if __name__ == "__main__":
    input_size = 784
    num_classes = 10
    batch = 8
    hidden = (256, 256, 512)   # scaled-down stand-in for (1024, 1024, 2048)

    root = jax.random.PRNGKey(0)
    k_params, k_x = jax.random.split(root)

    net = Net(input_size, num_classes, alpha=0.01, key=k_params, hidden=hidden)
    x = jax.random.normal(k_x, (batch, input_size), jnp.float32)

    # Stochastic forward: one Monte-Carlo sample per layer, chained with ReLU.
    out = jax.block_until_ready(net.forward(x, seed=42, deterministic=False))
    assert out.shape == (batch, num_classes)
    assert bool(jnp.all(jnp.isfinite(out)))

    # Deterministic path, first layer only: S == 1 -> numerator is exactly 0 and
    # the denominator is strictly positive, so the output is exactly zero.
    det = jax.block_until_ready(
        weightnorm_linear(x, net.weights[0], seed=0, alpha=0.01,
                          deterministic=True, num_samples=2))
    assert det.shape == (2, batch, hidden[0])
    assert bool(jnp.all(det == 0.0))

    # Monte-Carlo samples of the first layer (the 500-iteration loop, scaled down).
    mc = jax.block_until_ready(net.mc_layer(x, 0, seed=7, num_samples=4))
    assert mc.shape == (4, batch, hidden[0])
    assert bool(jnp.all(jnp.isfinite(mc)))
    assert bool(jnp.any(mc[0] != mc[1]))   # samples are independently seeded

    # bf16 weight streaming path (HBM-bandwidth lever; compute stays f32).
    mc_bf16 = jax.block_until_ready(
        weightnorm_linear(x, net.weights[0].astype(jnp.bfloat16), seed=7,
                          alpha=0.01, num_samples=2))
    assert mc_bf16.shape == (2, batch, hidden[0])
    assert bool(jnp.all(jnp.isfinite(mc_bf16)))

    print("KERNEL_OK")
</pallas_src>

<mosaic_0001>
module attributes {stable_mosaic.version = 11 : i64} {
  func.func @_wn_kernel_prng(%arg0: i32, %arg1: i32, %arg2: memref<1xi32, #tpu.memory_space<smem>>, %arg3: memref<8x128xf32, #tpu.memory_space<vmem>>, %arg4: memref<128x128xf32, #tpu.memory_space<vmem>>, %arg5: memref<1x8x128xf32, #tpu.memory_space<vmem>>, %arg6: memref<8x128xf32, #tpu.memory_space<vmem>>) attributes {dimension_semantics = [#tpu.dimension_semantics<parallel>, #tpu.dimension_semantics<arbitrary>], iteration_bounds = array<i64: 1, 2>, scalar_prefetch = 1 : i64, scratch_operands = 1 : i64, tpu.core_type = #tpu.core_type<tc>, window_params = [{pipeline_mode = #tpu.pipeline_mode<synchronous>, transform_indices = @transform_0, window_bounds = array<i64: 8, 128>}, {transform_indices = @transform_1, window_bounds = array<i64: 128, 128>}, {transform_indices = @transform_2, window_bounds = array<i64: 1, 8, 128>}]} {
    %c0_i32 = arith.constant 0 : i32
    %0 = arith.cmpi eq, %arg1, %c0_i32 : i32
    %1 = arith.extui %0 : i1 to i32
    %c0_i32_0 = arith.constant 0 : i32
    %2 = arith.cmpi ne, %1, %c0_i32_0 : i32
    scf.if %2 {
      %c0_41 = arith.constant 0 : index
      %c0_42 = arith.constant 0 : index
      %100 = vector.load %arg3[%c0_41, %c0_42] : memref<8x128xf32, #tpu.memory_space<vmem>>, vector<8x128xf32>
      %c0_43 = arith.constant 0 : index
      %c0_44 = arith.constant 0 : index
      %101 = vector.load %arg4[%c0_43, %c0_44] : memref<128x128xf32, #tpu.memory_space<vmem>>, vector<128x128xf32>
      %102 = arith.mulf %100, %100 : vector<8x128xf32>
      %103 = arith.mulf %101, %101 : vector<128x128xf32>
      %cst_45 = arith.constant dense<0.000000e+00> : vector<8x128xf32>
      %104 = tpu.matmul %102, %103, %cst_45 {dimension_numbers = #tpu.dot_dimension_numbers<[1], [0], [0], [1], [0, 0, 1, 1], [], []>} : vector<8x128xf32>, vector<128x128xf32>, vector<8x128xf32> -> vector<8x128xf32>
      %105 = math.rsqrt %104 : vector<8x128xf32>
      %cst_46 = arith.constant 1.000000e-01 : f32
      %106 = vector.broadcast %cst_46 : f32 to vector<8x128xf32>
      %107 = arith.mulf %105, %106 : vector<8x128xf32>
      %c0_47 = arith.constant 0 : index
      %c0_48 = arith.constant 0 : index
      %108 = vector.load %arg6[%c0_47, %c0_48] : memref<8x128xf32, #tpu.memory_space<vmem>>, vector<8x128xf32>
      tpu.vector_store %arg6[%c0_47, %c0_48], %107 {strides = array<i32>} : memref<8x128xf32, #tpu.memory_space<vmem>>, vector<8x128xf32>,
    } else {
    }
    %c0 = arith.constant 0 : index
    %3 = memref.load %arg2[%c0] : memref<1xi32, #tpu.memory_space<smem>>
    %c1000003_i32 = arith.constant 1000003 : i32
    %4 = arith.muli %arg0, %c1000003_i32 : i32
    %5 = arith.addi %3, %4 : i32
    %c7919_i32 = arith.constant 7919 : i32
    %6 = arith.muli %arg1, %c7919_i32 : i32
    %7 = arith.addi %5, %6 : i32
    "tpu.prng_set_seed_32"(%7) : (i32) -> ()
    %c0_1 = arith.constant 0 : index
    %c0_2 = arith.constant 0 : index
    %8 = vector.load %arg3[%c0_1, %c0_2] : memref<8x128xf32, #tpu.memory_space<vmem>>, vector<8x128xf32>
    %c0_3 = arith.constant 0 : index
    %c0_4 = arith.constant 0 : index
    %9 = vector.load %arg4[%c0_3, %c0_4] : memref<128x128xf32, #tpu.memory_space<vmem>>, vector<128x128xf32>
    %c0_i32_5 = arith.constant 0 : i32
    %c0_i32_6 = arith.constant 0 : i32
    %cst = arith.constant -0.99999994 : f32
    %cst_7 = arith.constant 1.000000e+00 : f32
    %10 = vector.broadcast %cst : f32 to vector<1x1xf32>
    %11 = vector.broadcast %cst_7 : f32 to vector<1x1xf32>
    %12 = "tpu.prng_random_bits"() : () -> vector<128x128xi32>
    %c9_i32 = arith.constant 9 : i32
    %13 = vector.broadcast %c9_i32 : i32 to vector<128x128xi32>
    %14 = arith.shrui %12, %13 : vector<128x128xi32>
    %c1065353216_i32 = arith.constant 1065353216 : i32
    %15 = vector.broadcast %c1065353216_i32 : i32 to vector<128x128xi32>
    %16 = arith.ori %14, %15 : vector<128x128xi32>
    %17 = tpu.bitcast %16 : vector<128x128xi32> -> vector<128x128xf32>
    %cst_8 = arith.constant 1.000000e+00 : f32
    %18 = vector.broadcast %cst_8 : f32 to vector<128x128xf32>
    %19 = arith.subf %17, %18 : vector<128x128xf32>
    %20 = arith.subf %11, %10 : vector<1x1xf32>
    %21 = vector.broadcast %20 : vector<1x1xf32> to vector<128x128xf32>
    %22 = arith.mulf %19, %21 : vector<128x128xf32>
    %23 = vector.broadcast %10 : vector<1x1xf32> to vector<128x128xf32>
    %24 = arith.addf %22, %23 : vector<128x128xf32>
    %25 = vector.broadcast %10 : vector<1x1xf32> to vector<128x128xf32>
    %26 = arith.maximumf %25, %24 : vector<128x128xf32>
    %cst_9 = arith.constant 0.000000e+00 : f32
    %27 = vector.broadcast %cst_9 : f32 to vector<128x128xf32>
    %28 = arith.subf %27, %26 : vector<128x128xf32>
    %29 = arith.mulf %26, %28 : vector<128x128xf32>
    %30 = math.log1p %29 : vector<128x128xf32>
    %cst_10 = arith.constant 0.000000e+00 : f32
    %31 = vector.broadcast %cst_10 : f32 to vector<128x128xf32>
    %32 = arith.subf %31, %30 : vector<128x128xf32>
    %cst_11 = arith.constant 5.000000e+00 : f32
    %33 = vector.broadcast %cst_11 : f32 to vector<128x128xf32>
    %34 = arith.cmpf olt, %32, %33 : vector<128x128xf32>
    %cst_12 = arith.constant 2.500000e+00 : f32
    %35 = vector.broadcast %cst_12 : f32 to vector<128x128xf32>
    %36 = arith.subf %32, %35 : vector<128x128xf32>
    %37 = math.sqrt %32 : vector<128x128xf32>
    %cst_13 = arith.constant 3.000000e+00 : f32
    %38 = vector.broadcast %cst_13 : f32 to vector<128x128xf32>
    %39 = arith.subf %37, %38 : vector<128x128xf32>
    %40 = arith.select %34, %36, %39 : vector<128x128xi1>, vector<128x128xf32>
    %cst_14 = arith.constant 2.81022636E-8 : f32
    %cst_15 = arith.constant -2.00214257E-4 : f32
    %41 = vector.broadcast %cst_14 : f32 to vector<128x128xf32>
    %42 = vector.broadcast %cst_15 : f32 to vector<128x128xf32>
    %43 = arith.select %34, %41, %42 : vector<128x128xi1>, vector<128x128xf32>
    %cst_16 = arith.constant 3.43273939E-7 : f32
    %cst_17 = arith.constant 1.00950558E-4 : f32
    %44 = vector.broadcast %cst_16 : f32 to vector<128x128xf32>
    %45 = vector.broadcast %cst_17 : f32 to vector<128x128xf32>
    %46 = arith.select %34, %44, %45 : vector<128x128xi1>, vector<128x128xf32>
    %47 = arith.mulf %43, %40 : vector<128x128xf32>
    %48 = arith.addf %46, %47 : vector<128x128xf32>
    %cst_18 = arith.constant -3.5233877E-6 : f32
    %cst_19 = arith.constant 0.00134934322 : f32
    %49 = vector.broadcast %cst_18 : f32 to vector<128x128xf32>
    %50 = vector.broadcast %cst_19 : f32 to vector<128x128xf32>
    %51 = arith.select %34, %49, %50 : vector<128x128xi1>, vector<128x128xf32>
    %52 = arith.mulf %48, %40 : vector<128x128xf32>
    %53 = arith.addf %51, %52 : vector<128x128xf32>
    %cst_20 = arith.constant -4.39150654E-6 : f32
    %cst_21 = arith.constant -0.00367342844 : f32
    %54 = vector.broadcast %cst_20 : f32 to vector<128x128xf32>
    %55 = vector.broadcast %cst_21 : f32 to vector<128x128xf32>
    %56 = arith.select %34, %54, %55 : vector<128x128xi1>, vector<128x128xf32>
    %57 = arith.mulf %53, %40 : vector<128x128xf32>
    %58 = arith.addf %56, %57 : vector<128x128xf32>
    %cst_22 = arith.constant 2.1858087E-4 : f32
    %cst_23 = arith.constant 0.00573950773 : f32
    %59 = vector.broadcast %cst_22 : f32 to vector<128x128xf32>
    %60 = vector.broadcast %cst_23 : f32 to vector<128x128xf32>
    %61 = arith.select %34, %59, %60 : vector<128x128xi1>, vector<128x128xf32>
    %62 = arith.mulf %58, %40 : vector<128x128xf32>
    %63 = arith.addf %61, %62 : vector<128x128xf32>
    %cst_24 = arith.constant -0.00125372503 : f32
    %cst_25 = arith.constant -0.0076224613 : f32
    %64 = vector.broadcast %cst_24 : f32 to vector<128x128xf32>
    %65 = vector.broadcast %cst_25 : f32 to vector<128x128xf32>
    %66 = arith.select %34, %64, %65 : vector<128x128xi1>, vector<128x128xf32>
    %67 = arith.mulf %63, %40 : vector<128x128xf32>
    %68 = arith.addf %66, %67 : vector<128x128xf32>
    %cst_26 = arith.constant -0.00417768164 : f32
    %cst_27 = arith.constant 0.00943887047 : f32
    %69 = vector.broadcast %cst_26 : f32 to vector<128x128xf32>
    %70 = vector.broadcast %cst_27 : f32 to vector<128x128xf32>
    %71 = arith.select %34, %69, %70 : vector<128x128xi1>, vector<128x128xf32>
    %72 = arith.mulf %68, %40 : vector<128x128xf32>
    %73 = arith.addf %71, %72 : vector<128x128xf32>
    %cst_28 = arith.constant 0.246640727 : f32
    %cst_29 = arith.constant 1.00167406 : f32
    %74 = vector.broadcast %cst_28 : f32 to vector<128x128xf32>
    %75 = vector.broadcast %cst_29 : f32 to vector<128x128xf32>
    %76 = arith.select %34, %74, %75 : vector<128x128xi1>, vector<128x128xf32>
    %77 = arith.mulf %73, %40 : vector<128x128xf32>
    %78 = arith.addf %76, %77 : vector<128x128xf32>
    %cst_30 = arith.constant 1.50140941 : f32
    %cst_31 = arith.constant 2.83297682 : f32
    %79 = vector.broadcast %cst_30 : f32 to vector<128x128xf32>
    %80 = vector.broadcast %cst_31 : f32 to vector<128x128xf32>
    %81 = arith.select %34, %79, %80 : vector<128x128xi1>, vector<128x128xf32>
    %82 = arith.mulf %78, %40 : vector<128x128xf32>
    %83 = arith.addf %81, %82 : vector<128x128xf32>
    %84 = math.absf %26 : vector<128x128xf32>
    %cst_32 = arith.constant 1.000000e+00 : f32
    %85 = vector.broadcast %cst_32 : f32 to vector<128x128xf32>
    %86 = arith.cmpf oeq, %84, %85 : vector<128x128xf32>
    %cst_33 = arith.constant 0x7F800000 : f32
    %87 = vector.broadcast %cst_33 : f32 to vector<128x128xf32>
    %88 = arith.mulf %87, %26 : vector<128x128xf32>
    %89 = arith.mulf %83, %26 : vector<128x128xf32>
    %90 = arith.select %86, %88, %89 : vector<128x128xi1>, vector<128x128xf32>
    %cst_34 = arith.constant 1.41421354 : f32
    %91 = vector.broadcast %cst_34 : f32 to vector<128x128xf32>
    %92 = arith.mulf %91, %90 : vector<128x128xf32>
    %93 = arith.mulf %9, %92 : vector<128x128xf32>
    %cst_35 = arith.constant dense<0.000000e+00> : vector<8x128xf32>
    %94 = tpu.matmul %8, %93, %cst_35 {dimension_numbers = #tpu.dot_dimension_numbers<[1], [0], [0], [1], [0, 0, 1, 1], [], []>} : vector<8x128xf32>, vector<128x128xf32>, vector<8x128xf32> -> vector<8x128xf32>
    %c0_36 = arith.constant 0 : index
    %c0_37 = arith.constant 0 : index
    %95 = vector.load %arg6[%c0_36, %c0_37] : memref<8x128xf32, #tpu.memory_space<vmem>>, vector<8x128xf32>
    %96 = arith.mulf %94, %95 : vector<8x128xf32>
    %c0_38 = arith.constant 0 : index
    %c0_39 = arith.constant 0 : index
    %c0_40 = arith.constant 0 : index
    %97 = vector.load %arg5[%c0_38, %c0_39, %c0_40] : memref<1x8x128xf32, #tpu.memory_space<vmem>>, vector<1x8x128xf32>
    %98 = vector.shape_cast %97 : vector<1x8x128xf32> to vector<8x128xf32>
    %99 = vector.shape_cast %96 : vector<8x128xf32> to vector<1x8x128xf32>
    tpu.vector_store %arg5[%c0_38, %c0_39, %c0_40], %99 {strides = array<i32>} : memref<1x8x128xf32, #tpu.memory_space<vmem>>, vector<1x8x128xf32>,
    return
  }
  func.func @transform_0(%arg0: i32, %arg1: i32, %arg2: memref<1xi32, #tpu.memory_space<smem>>) -> (i32, i32) {
    %c0_i32 = arith.constant 0 : i32
    %c0_i32_0 = arith.constant 0 : i32
    %c0_i32_1 = arith.constant 0 : i32
    return %c0_i32, %c0_i32_0 : i32, i32
  }
  func.func @transform_1(%arg0: i32, %arg1: i32, %arg2: memref<1xi32, #tpu.memory_space<smem>>) -> (i32, i32) {
    %c0_i32 = arith.constant 0 : i32
    %c0_i32_0 = arith.constant 0 : i32
    return %c0_i32, %arg0 : i32, i32
  }
  func.func @transform_2(%arg0: i32, %arg1: i32, %arg2: memref<1xi32, #tpu.memory_space<smem>>) -> (i32, i32, i32) {
    %c0_i32 = arith.constant 0 : i32
    %c0_i32_0 = arith.constant 0 : i32
    return %arg1, %c0_i32, %arg0 : i32, i32, i32
  }
}

module attributes {stable_mosaic.version = 11 : i64} {
  func.func @_wn_kernel_hostdelta(%arg0: i32, %arg1: i32, %arg2: memref<8x784xf32, #tpu.memory_space<vmem>>, %arg3: memref<784x256xf32, #tpu.memory_space<vmem>>, %arg4: memref<1x784x256xf32, #tpu.memory_space<vmem>>, %arg5: memref<1x8x256xf32, #tpu.memory_space<vmem>>, %arg6: memref<8x256xf32, #tpu.memory_space<vmem>>) attributes {dimension_semantics = [#tpu.dimension_semantics<parallel>, #tpu.dimension_semantics<arbitrary>], iteration_bounds = array<i64: 1, 1>, scalar_prefetch = 0 : i64, scratch_operands = 1 : i64, tpu.core_type = #tpu.core_type<tc>, window_params = [{pipeline_mode = #tpu.pipeline_mode<synchronous>, transform_indices = @transform_0, window_bounds = array<i64: 8, 784>}, {transform_indices = @transform_1, window_bounds = array<i64: 784, 256>}, {transform_indices = @transform_2, window_bounds = array<i64: 1, 784, 256>}, {transform_indices = @transform_3, window_bounds = array<i64: 1, 8, 256>}]} {
    %c0_i32 = arith.constant 0 : i32
    %0 = arith.cmpi eq, %arg1, %c0_i32 : i32
    %1 = arith.extui %0 : i1 to i32
    %c0_i32_0 = arith.constant 0 : i32
    %2 = arith.cmpi ne, %1, %c0_i32_0 : i32
    scf.if %2 {
      %c0_13 = arith.constant 0 : index
      %c0_14 = arith.constant 0 : index
      %16 = vector.load %arg2[%c0_13, %c0_14] : memref<8x784xf32, #tpu.memory_space<vmem>>, vector<8x784xf32>
      %c0_15 = arith.constant 0 : index
      %c0_16 = arith.constant 0 : index
      %17 = vector.load %arg3[%c0_15, %c0_16] : memref<784x256xf32, #tpu.memory_space<vmem>>, vector<784x256xf32>
      %18 = arith.mulf %16, %16 : vector<8x784xf32>
      %19 = arith.mulf %17, %17 : vector<784x256xf32>
      %cst_17 = arith.constant dense<0.000000e+00> : vector<8x256xf32>
      %20 = tpu.matmul %18, %19, %cst_17 {dimension_numbers = #tpu.dot_dimension_numbers<[1], [0], [0], [1], [0, 0, 1, 1], [], []>} : vector<8x784xf32>, vector<784x256xf32>, vector<8x256xf32> -> vector<8x256xf32>
      %21 = math.rsqrt %20 : vector<8x256xf32>
      %c0_18 = arith.constant 0 : index
      %c0_19 = arith.constant 0 : index
      %22 = vector.load %arg6[%c0_18, %c0_19] : memref<8x256xf32, #tpu.memory_space<vmem>>, vector<8x256xf32>
      tpu.vector_store %arg6[%c0_18, %c0_19], %21 {strides = array<i32>} : memref<8x256xf32, #tpu.memory_space<vmem>>, vector<8x256xf32>,
    } else {
    }
    %c0 = arith.constant 0 : index
    %c0_1 = arith.constant 0 : index
    %3 = vector.load %arg2[%c0, %c0_1] : memref<8x784xf32, #tpu.memory_space<vmem>>, vector<8x784xf32>
    %c0_2 = arith.constant 0 : index
    %c0_3 = arith.constant 0 : index
    %4 = vector.load %arg3[%c0_2, %c0_3] : memref<784x256xf32, #tpu.memory_space<vmem>>, vector<784x256xf32>
    %c0_4 = arith.constant 0 : index
    %c0_5 = arith.constant 0 : index
    %c0_6 = arith.constant 0 : index
    %5 = vector.load %arg4[%c0_4, %c0_5, %c0_6] : memref<1x784x256xf32, #tpu.memory_space<vmem>>, vector<1x784x256xf32>
    %6 = vector.shape_cast %5 : vector<1x784x256xf32> to vector<784x256xf32>
    %7 = arith.mulf %4, %6 : vector<784x256xf32>
    %cst = arith.constant dense<0.000000e+00> : vector<8x256xf32>
    %8 = tpu.matmul %3, %7, %cst {dimension_numbers = #tpu.dot_dimension_numbers<[1], [0], [0], [1], [0, 0, 1, 1], [], []>} : vector<8x784xf32>, vector<784x256xf32>, vector<8x256xf32> -> vector<8x256xf32>
    %c0_7 = arith.constant 0 : index
    %c0_8 = arith.constant 0 : index
    %9 = vector.load %arg6[%c0_7, %c0_8] : memref<8x256xf32, #tpu.memory_space<vmem>>, vector<8x256xf32>
    %10 = arith.mulf %8, %9 : vector<8x256xf32>
    %cst_9 = arith.constant 0.000000e+00 : f32
    %11 = vector.broadcast %cst_9 : f32 to vector<8x256xf32>
    %12 = arith.maximumf %10, %11 : vector<8x256xf32>
    %c0_10 = arith.constant 0 : index
    %c0_11 = arith.constant 0 : index
    %c0_12 = arith.constant 0 : index
    %13 = vector.load %arg5[%c0_10, %c0_11, %c0_12] : memref<1x8x256xf32, #tpu.memory_space<vmem>>, vector<1x8x256xf32>
    %14 = vector.shape_cast %13 : vector<1x8x256xf32> to vector<8x256xf32>
    %15 = vector.shape_cast %12 : vector<8x256xf32> to vector<1x8x256xf32>
    tpu.vector_store %arg5[%c0_10, %c0_11, %c0_12], %15 {strides = array<i32>} : memref<1x8x256xf32, #tpu.memory_space<vmem>>, vector<1x8x256xf32>,
    return
  }
  func.func @transform_0(%arg0: i32, %arg1: i32) -> (i32, i32) {
    %c0_i32 = arith.constant 0 : i32
    %c0_i32_0 = arith.constant 0 : i32
    %c0_i32_1 = arith.constant 0 : i32
    return %c0_i32, %c0_i32_0 : i32, i32
  }
  func.func @transform_1(%arg0: i32, %arg1: i32) -> (i32, i32) {
    %c0_i32 = arith.constant 0 : i32
    %c0_i32_0 = arith.constant 0 : i32
    return %c0_i32, %arg0 : i32, i32
  }
  func.func @transform_2(%arg0: i32, %arg1: i32) -> (i32, i32, i32) {
    %c0_i32 = arith.constant 0 : i32
    %c0_i32_0 = arith.constant 0 : i32
    return %arg1, %c0_i32, %arg0 : i32, i32, i32
  }
  func.func @transform_3(%arg0: i32, %arg1: i32) -> (i32, i32, i32) {
    %c0_i32 = arith.constant 0 : i32
    %c0_i32_0 = arith.constant 0 : i32
    return %arg1, %c0_i32, %arg0 : i32, i32, i32
  }
}

</mosaic_0001>

<llo_original>
// kernel: tpu_custom_call.1
$region0: #{tpu_custom_call.1}
  #allocation0 [shape = 'u32[]', space=smem, size = 0x4, offset = 0x4, fixed_abs, tag = 'smem constant byte address 0x4 - core index']
  #allocation1 [shape = 'u32[72,128]{1,0:T(1,128)}', space=vmem, size = 0x9000, scoped, tag = 'internal scratch']
  #allocation2 [shape = 'f32[8,128]{1,0:T(8,128)}', space=vmem, size = 0x1000, scoped, tag = 'scratch operand']
  #allocation3 [shape = 's32[1]{0}', space=sflag, size = 0x4, scoped, tag = 'scoped memory for tpu_custom_call.1']
  #allocation4 [shape = 's32[1]{0:T(128)S(6)}', space=smem, size = 0x200, scoped, tag = 'prefetched SMEM operand 0']
  %s0 = inlined_call_operand.<no memory space> [shape: s32[1], index: 0, kind: input, shape index: {}]
  %s1 = inlined_call_operand.hbm [shape: f32[8,128], index: 1, kind: input, shape index: {}]
  %s2 = inlined_call_operand.hbm [shape: f32[128,128], index: 2, kind: input, shape index: {}]
  %s3 = inlined_call_operand.hbm [shape: f32[2,8,128], index: 3, kind: output, shape index: {}]
  %s4 = sld [smem:[#allocation0]]
  $region53: #{tpu_custom_call.1} parent=0
    _
  %s6 = ssub.s32 1, %s4
  %s7 = scalar_select 0, %s6, %s4
  %8 = sst [smem:[#allocation4]] %s0
  $region1: #{tpu_custom_call.1} parent=0
    #allocation5 [shape = 'u8[4096]{0}', space=vmem, size = 0x1000, scoped, tag = 'input window, operand 1, single buffered']
    #allocation6 [shape = 's32[2]{0}', space=sflag, size = 0x8, scoped, tag = 'scoped memory for tpu_custom_call.1']
    #allocation7 [shape = 's32[2]{0}', space=sflag, size = 0x8, scoped, tag = 'scoped memory for tpu_custom_call.1']
    #allocation8 [shape = 'u8[65536]{0}', space=vmem, size = 0x10000, scoped, tag = 'input window, operand 2, single buffered']
    #allocation9 [shape = 's32[1]{0}', space=sflag, size = 0x4, scoped, tag = 'scoped memory for tpu_custom_call.1']
    #allocation10 [shape = 'u8[8192]{0}', space=vmem, size = 0x2000, scoped, tag = 'output window, operand 0']
    %9 = vsyncpa [#allocation6], 0
    %10 = vsyncpa [#allocation9], 0
    %11 = vsyncpa [#allocation7], 0
    %s12 = scalar_lea.sflag [#allocation7], 1
    %13 = vsyncpa %s12, 0
    loop: start=0, step=1, limit=4
    $region2: #{tpu_custom_call.1} parent=1 // loop_pre_header
      _
    $region3: #{tpu_custom_call.1} parent=1 // loop_header
      %s15 = sphi 0, %s19
      %p16 = scmp.ge.s32.totalorder %s15, 4
      %s22 = sphi 0, %s34
      %s23 = sphi 0, %s30
      %s24 = sphi 0, %s22
      %s25 = sphi 0, %s23
      %s26 = sphi 0, %s24
      %s27 = sphi 0, %s25
      %s35 = sphi 0, %s35
      %s37 = sphi 0, %s35
      %s38 = sphi 0, %s37
      %s52 = sphi 0, %s38
      %s58 = sphi 0, %s60
      %s61 = sphi 0, %s58
      %s62 = sphi 0, %s61
      %s78 = sphi 0, %s62
      %s86 = sphi 0, %s88
      %s89 = sphi 0, %s86
      %s90 = sphi 0, %s89
      %s106 = sphi 0, %s90
    $region4: #{tpu_custom_call.1} parent=1 // loop_header_branch
      %18 = sbr.rel (%p16) target = $region8
    $region5: #{tpu_custom_call.1} parent=1 // loop_body
      %s20 = ssub.s32 %s15, 1
      %s21 = ssub.s32 %s15, 2
      %s28 = sadd.s32 1, %s23
      %p29 = scmp.ge.s32.totalorder %s28, 2
      %s30 = scalar_select %p29, 0, %s28
      %s31 = sadd.s32 1, %s22
      %s32 = scalar_select %p29, %s31, %s22
      %p33 = scmp.ge.s32.totalorder %s32, 1
      %s34 = scalar_select %p33, 0, %s32
      %s36 = sadd.s32 %s35, 1
      %p39 = scmp.eq.s32.totalorder %s15, 1
      %p40 = scmp.ne.s32.totalorder %s35, %s37
      %p41 = scmp.eq.s32.totalorder %s15, 0
      %p42 = por %p40, %p41
      %p43 = scmp.ne.s32.totalorder %s35, %s37
      %p44 = scmp.eq.s32.totalorder %s20, 1
      %p45 = por %p43, %p44
      %p46 = scmp.ne.s32.totalorder %s37, %s38
      %p47 = scmp.eq.s32.totalorder %s20, 0
      %p48 = por %p46, %p47
      %p49 = scmp.ne.s32.totalorder %s37, %s38
      %p50 = scmp.eq.s32.totalorder %s21, 1
      %p51 = por %p49, %p50
      %p53 = scmp.ne.s32.totalorder %s38, %s52
      %p54 = scmp.eq.s32.totalorder %s21, 0
      %p55 = por %p53, %p54
      %s56 = ssub.s32 %s22, %s34
      %p57 = scmp.eq.s32.totalorder %s56, 0
      %s59 = sadd.s32 %s58, 1
      %s60 = scalar_select %p57, %s58, %s59
      %p63 = pneg %p57
      %p64 = scmp.eq.s32.totalorder %s15, 1
      %p65 = por %p63, %p64
      %p66 = scmp.ne.s32.totalorder %s58, %s61
      %p67 = scmp.eq.s32.totalorder %s15, 0
      %p68 = por %p66, %p67
      %p69 = scmp.ne.s32.totalorder %s58, %s61
      %p70 = scmp.eq.s32.totalorder %s20, 1
      %p71 = por %p69, %p70
      %p72 = scmp.ne.s32.totalorder %s61, %s62
      %p73 = scmp.eq.s32.totalorder %s20, 0
      %p74 = por %p72, %p73
      %p75 = scmp.ne.s32.totalorder %s61, %s62
      %p76 = scmp.eq.s32.totalorder %s21, 1
      %p77 = por %p75, %p76
      %p79 = scmp.ne.s32.totalorder %s62, %s78
      %p80 = scmp.eq.s32.totalorder %s21, 0
      %p81 = por %p79, %p80
      %s82 = ssub.s32 %s23, %s30
      %s83 = ssub.s32 %s22, %s34
      %s84 = sor.u32 %s82, %s83
      %p85 = scmp.eq.s32.totalorder %s84, 0
      %s87 = sadd.s32 %s86, 1
      %s88 = scalar_select %p85, %s86, %s87
      %p91 = pneg %p85
      %p92 = scmp.eq.s32.totalorder %s15, 1
      %p93 = por %p91, %p92
      %p94 = scmp.ne.s32.totalorder %s86, %s89
      %p95 = scmp.eq.s32.totalorder %s15, 0
      %p96 = por %p94, %p95
      %p97 = scmp.ne.s32.totalorder %s86, %s89
      %p98 = scmp.eq.s32.totalorder %s20, 1
      %p99 = por %p97, %p98
      %p100 = scmp.ne.s32.totalorder %s89, %s90
      %p101 = scmp.eq.s32.totalorder %s20, 0
      %p102 = por %p100, %p101
      %p103 = scmp.ne.s32.totalorder %s89, %s90
      %p104 = scmp.eq.s32.totalorder %s21, 1
      %p105 = por %p103, %p104
      %p107 = scmp.ne.s32.totalorder %s90, %s106
      %p108 = scmp.eq.s32.totalorder %s21, 0
      %p109 = por %p107, %p108
      %p110 = scmp.le.s32.totalorder 1, %s15
      %p111 = scmp.lt.s32.totalorder %s15, 3
      %p112 = pnand %p110, %p111
      %p113 = pneg %p112
      // Predicated region
      $region9: #{tpu_custom_call.1} parent=5 // pred_check
        _
      $region10: #{tpu_custom_call.1} parent=5 // pred_check_branch
        %115 = sbr.rel (%p112) target = $region12
      $region11: #{tpu_custom_call.1} parent=5 // pred_region
        %s116 = ssub.s32 %s15, 1
        // Predicated region
        $region13: #{tpu_custom_call.1} parent=11 // pred_check
          %p117 = pneg %p48
        $region14: #{tpu_custom_call.1} parent=11 // pred_check_branch
          %119 = sbr.rel (%p117) target = $region16
        $region15: #{tpu_custom_call.1} parent=11 // pred_region
          %121 = vsyncadd [#allocation6], 0
          %s123 = sshll.u32 %s1, 4
          %s124 = int_to_ptr.hbm [resolvable:$true] %s123
          %s125 = sshll.u32 [#allocation5], 4
          %s126 = int_to_ptr.vmem [resolvable:$true] %s125
          %128 = dma.hbm_to_vmem [thread:$0]  %s124, 128, %s126, [#allocation6]
        $region16: #{tpu_custom_call.1} parent=11 // pred_fallthru
          _
        // Predicated region
        $region17: #{tpu_custom_call.1} parent=11 // pred_check
          %p129 = pneg %p74
        $region18: #{tpu_custom_call.1} parent=11 // pred_check_branch
          %131 = sbr.rel (%p129) target = $region20
        $region19: #{tpu_custom_call.1} parent=11 // pred_region
          %133 = vsyncadd [#allocation9], 0
          %s134 = smul.addr %s24, 8
          %s135 = scalar_lea.hbm %s2, %s134
          %s136 = sshll.u32 %s135, 4
          %s137 = int_to_ptr.hbm [resolvable:$true] %s136
          %s138 = sshll.u32 [#allocation8], 4
          %s139 = int_to_ptr.vmem [resolvable:$true] %s138
          %144 = dma.hbm_to_vmem [thread:$0]  %s137, 2048, %s139, [#allocation9], 128, 128, 8
        $region20: #{tpu_custom_call.1} parent=11 // pred_fallthru
          _
      $region12: #{tpu_custom_call.1} parent=5 // pred_fallthru
        _
      %p145 = scmp.lt.s32.totalorder %s15, 2
      // Predicated region
      $region21: #{tpu_custom_call.1} parent=5 // pred_check
        %p146 = pneg %p145
      $region22: #{tpu_custom_call.1} parent=5 // pred_check_branch
        %148 = sbr.rel (%p146) target = $region24
      $region23: #{tpu_custom_call.1} parent=5 // pred_region
        _
      $region24: #{tpu_custom_call.1} parent=5 // pred_fallthru
        _
      %p149 = scmp.le.s32.totalorder 1, %s15
      %p150 = scmp.lt.s32.totalorder %s15, 3
      %p151 = pnand %p149, %p150
      %p152 = pneg %p151
      // Predicated region
      $region25: #{tpu_custom_call.1} parent=5 // pred_check
        _
      $region26: #{tpu_custom_call.1} parent=5 // pred_check_branch
        %154 = sbr.rel (%p151) target = $region28
      $region27: #{tpu_custom_call.1} parent=5 // pred_region
        %s155 = ssub.s32 %s15, 1
        // Predicated region
        $region29: #{tpu_custom_call.1} parent=27 // pred_check
          %p156 = pneg %p48
        $region30: #{tpu_custom_call.1} parent=27 // pred_check_branch
          %158 = sbr.rel (%p156) target = $region32
        $region31: #{tpu_custom_call.1} parent=27 // pred_region
          %160 = dma.done [#allocation6], 128
        $region32: #{tpu_custom_call.1} parent=27 // pred_fallthru
          _
        // Predicated region
        $region33: #{tpu_custom_call.1} parent=27 // pred_check
          %p161 = pneg %p74
        $region34: #{tpu_custom_call.1} parent=27 // pred_check_branch
          %163 = sbr.rel (%p161) target = $region36
        $region35: #{tpu_custom_call.1} parent=27 // pred_region
          %165 = dma.done [#allocation9], 2048
        $region36: #{tpu_custom_call.1} parent=27 // pred_fallthru
          _
        %p166 = pneg %p48
        %p167 = pneg %p45
        %p168 = pneg %p74
        %p169 = pneg %p71
        %p170 = pneg %p102
        %p171 = pneg %p99
        %s172 = sand.u32 %s89, 1
        %s173 = scalar_lea.sflag [#allocation7], %s172
        %s174 = sand.u32 %s89, 1
        %s175 = smul.addr %s174, 8
        %s176 = scalar_lea.vmem [#allocation10], %s175
        %p177 = scmp.eq.s32.totalorder %s25, 0
        // Predicated region
        $region37: #{tpu_custom_call.1} parent=27 // pred_check
          %p178 = pneg %p177
        $region38: #{tpu_custom_call.1} parent=27 // pred_check_branch
          %180 = sbr.rel (%p178) target = $region40
        $region39: #{tpu_custom_call.1} parent=27 // pred_region
          %v181 = vld [vmem:[#allocation5] sm:$0xff]
          %v182 = vld [vmem:[#allocation8] sm:$0xff]
          %v183 = vld [vmem:[#allocation8 + $0x8] sm:$0xff]
          %v184 = vld [vmem:[#allocation8 + $0x10] sm:$0xff]
          %v185 = vld [vmem:[#allocation8 + $0x18] sm:$0xff]
          %v186 = vld [vmem:[#allocation8 + $0x20] sm:$0xff]
          %v187 = vld [vmem:[#allocation8 + $0x28] sm:$0xff]
          %v188 = vld [vmem:[#allocation8 + $0x30] sm:$0xff]
          %v189 = vld [vmem:[#allocation8 + $0x38] sm:$0xff]
          %v190 = vld [vmem:[#allocation8 + $0x40] sm:$0xff]
          %v191 = vld [vmem:[#allocation8 + $0x48] sm:$0xff]
          %v192 = vld [vmem:[#allocation8 + $0x50] sm:$0xff]
          %v193 = vld [vmem:[#allocation8 + $0x58] sm:$0xff]
          %v194 = vld [vmem:[#allocation8 + $0x60] sm:$0xff]
          %v195 = vld [vmem:[#allocation8 + $0x68] sm:$0xff]
          %v196 = vld [vmem:[#allocation8 + $0x70] sm:$0xff]
          %v197 = vld [vmem:[#allocation8 + $0x78] sm:$0xff]
          %v198 = vmul.f32 %v181, %v181
          %v199 = vmul.f32 %v182, %v182
          %v200 = vmul.f32 %v183, %v183
          %v201 = vmul.f32 %v184, %v184
          %v202 = vmul.f32 %v185, %v185
          %v203 = vmul.f32 %v186, %v186
          %v204 = vmul.f32 %v187, %v187
          %v205 = vmul.f32 %v188, %v188
          %v206 = vmul.f32 %v189, %v189
          %v207 = vmul.f32 %v190, %v190
          %v208 = vmul.f32 %v191, %v191
          %v209 = vmul.f32 %v192, %v192
          %v210 = vmul.f32 %v193, %v193
          %v211 = vmul.f32 %v194, %v194
          %v212 = vmul.f32 %v195, %v195
          %v213 = vmul.f32 %v196, %v196
          %v214 = vmul.f32 %v197, %v197
          %215 = vmatpush.msra.mxu0 %v214
          %216 = vmatpush.msra.mxu0 %v213
          %217 = vmatpush.msra.mxu0 %v212
          %218 = vmatpush.msra.mxu0 %v211
          %219 = vmatpush.msra.mxu0 %v210
          %220 = vmatpush.msra.mxu0 %v209
          %221 = vmatpush.msra.mxu0 %v208
          %222 = vmatpush.msra.mxu0 %v207
          %223 = vmatpush.msra.mxu0 %v206
          %224 = vmatpush.msra.mxu0 %v205
          %225 = vmatpush.msra.mxu0 %v204
          %226 = vmatpush.msra.mxu0 %v203
          %227 = vmatpush.msra.mxu0 %v202
          %228 = vmatpush.msra.mxu0 %v201
          %229 = vmatpush.msra.mxu0 %v200
          %230 = vmatpush.msra.mxu0 %v199
          %231 = vmatmul.f32.gmra.mxu0 %v198
          %v232 = vpop.f32.mrf.mxu0
          %v233 = vadd.f32 0.0, %v232
          %234 = vdwg.mxu0
          %v235 = vrsqrt.pop %v233
          %v236 = vmul.f32 %v235, %v233
          %v237 = vmul.f32 %v236, %v235
          %v238 = vmul.f32 0.5, %v237
          %v239 = vsub.f32 1.5, %v238
          %v240 = vmul.f32 %v235, %v239
          %vm241 = vweird.f32 %v233
          %vm242 = vweird.f32 %v235
          %vm243 = vmor %vm241, %vm242
          %v244 = vsel %vm243, %v235, %v240
          %v245 = vmul.f32 %v244, 0.1
          %246 = vst [vmem:[#allocation2] sm:$0xff] %v245
        $region40: #{tpu_custom_call.1} parent=27 // pred_fallthru
          _
        %s247 = sld [smem:[#allocation4]]
        %s248 = smul.u32 %s24, 1000003
        %s249 = sadd.s32 %s247, %s248
        %s250 = smul.u32 %s25, 7919
        %s251 = sadd.s32 %s249, %s250
        %v252 = vlaneseq
        %v253 = vstv %s251
        %v254 = vxor.u32 %v253, %v253
        %v255 = vxor.u32 %v254, 466688986
        %v256 = vadd.s32 %v252, %v253
        %v257 = vadd.s32 %v256, %v256
        %v258 = vshll.u32 %v256, 13
        %v259 = vshrl.u32 %v256, 19
        %v260 = vor.u32 %v258, %v259
        %v261 = vxor.u32 %v257, %v260
        %v262 = vadd.s32 %v257, %v261
        %v263 = vshll.u32 %v261, 15
        %v264 = vshrl.u32 %v261, 17
        %v265 = vor.u32 %v263, %v264
        %v266 = vxor.u32 %v262, %v265
        %v267 = vadd.s32 %v262, %v266
        %v268 = vshll.u32 %v266, 26
        %v269 = vshrl.u32 %v266, 6
        %v270 = vor.u32 %v268, %v269
        %v271 = vxor.u32 %v267, %v270
        %v272 = vadd.s32 %v267, %v271
        %v273 = vshll.u32 %v271, 6
        %v274 = vshrl.u32 %v271, 26
        %v275 = vor.u32 %v273, %v274
        %v276 = vxor.u32 %v272, %v275
        %v277 = vadd.s32 %v272, %v253
        %v278 = vadd.s32 %v276, %v255
        %v279 = vadd.s32 %v278, 1
        %v280 = vadd.s32 %v277, %v279
        %v281 = vshll.u32 %v279, 17
        %v282 = vshrl.u32 %v279, 15
        %v283 = vor.u32 %v281, %v282
        %v284 = vxor.u32 %v280, %v283
        %v285 = vadd.s32 %v280, %v284
        %v286 = vshll.u32 %v284, 29
        %v287 = vshrl.u32 %v284, 3
        %v288 = vor.u32 %v286, %v287
        %v289 = vxor.u32 %v285, %v288
        %v290 = vadd.s32 %v285, %v289
        %v291 = vshll.u32 %v289, 16
        %v292 = vshrl.u32 %v289, 16
        %v293 = vor.u32 %v291, %v292
        %v294 = vxor.u32 %v290, %v293
        %v295 = vadd.s32 %v290, %v294
        %v296 = vshll.u32 %v294, 24
        %v297 = vshrl.u32 %v294, 8
        %v298 = vor.u32 %v296, %v297
        %v299 = vxor.u32 %v295, %v298
        %v300 = vadd.s32 %v295, %v255
        %v301 = vadd.s32 %v299, %v253
        %v302 = vadd.s32 %v301, 2
        %v303 = vadd.s32 %v300, %v302
        %v304 = vshll.u32 %v302, 13
        %v305 = vshrl.u32 %v302, 19
        %v306 = vor.u32 %v304, %v305
        %v307 = vxor.u32 %v303, %v306
        %v308 = vadd.s32 %v303, %v307
        %v309 = vshll.u32 %v307, 15
        %v310 = vshrl.u32 %v307, 17
        %v311 = vor.u32 %v309, %v310
        %v312 = vxor.u32 %v308, %v311
        %v313 = vadd.s32 %v308, %v312
        %v314 = vshll.u32 %v312, 26
        %v315 = vshrl.u32 %v312, 6
        %v316 = vor.u32 %v314, %v315
        %v317 = vxor.u32 %v313, %v316
        %v318 = vadd.s32 %v313, %v317
        %v319 = vshll.u32 %v317, 6
        %v320 = vshrl.u32 %v317, 26
        %v321 = vor.u32 %v319, %v320
        %v322 = vxor.u32 %v318, %v321
        %v323 = vadd.s32 %v318, %v253
        %v324 = vadd.s32 %v322, %v253
        %v325 = vadd.s32 %v324, 3
        %v326 = vadd.s32 %v323, %v325
        %v327 = vshll.u32 %v325, 17
        %v328 = vshrl.u32 %v325, 15
        %v329 = vor.u32 %v327, %v328
        %v330 = vxor.u32 %v326, %v329
        %v331 = vadd.s32 %v326, %v330
        %v332 = vshll.u32 %v330, 29
        %v333 = vshrl.u32 %v330, 3
        %v334 = vor.u32 %v332, %v333
        %v335 = vxor.u32 %v331, %v334
        %v336 = vadd.s32 %v331, %v335
        %v337 = vshll.u32 %v335, 16
        %v338 = vshrl.u32 %v335, 16
        %v339 = vor.u32 %v337, %v338
        %v340 = vxor.u32 %v336, %v339
        %v341 = vadd.s32 %v336, %v340
        %v342 = vshll.u32 %v340, 24
        %v343 = vshrl.u32 %v340, 8
        %v344 = vor.u32 %v342, %v343
        %v345 = vxor.u32 %v341, %v344
        %v346 = vadd.s32 %v341, %v253
        %v347 = vadd.s32 %v345, %v255
        %v348 = vadd.s32 %v347, 4
        %v349 = vadd.s32 %v346, %v348
        %v350 = vshll.u32 %v348, 13
        %v351 = vshrl.u32 %v348, 19
        %v352 = vor.u32 %v350, %v351
        %v353 = vxor.u32 %v349, %v352
        %v354 = vadd.s32 %v349, %v353
        %v355 = vshll.u32 %v353, 15
        %v356 = vshrl.u32 %v353, 17
        %v357 = vor.u32 %v355, %v356
        %v358 = vxor.u32 %v354, %v357
        %v359 = vadd.s32 %v354, %v358
        %v360 = vshll.u32 %v358, 26
        %v361 = vshrl.u32 %v358, 6
        %v362 = vor.u32 %v360, %v361
        %v363 = vxor.u32 %v359, %v362
        %v364 = vadd.s32 %v359, %v363
        %v365 = vshll.u32 %v363, 6
        %v366 = vshrl.u32 %v363, 26
        %v367 = vor.u32 %v365, %v366
        %v368 = vxor.u32 %v364, %v367
        %v369 = vadd.s32 %v364, %v255
        %v370 = vadd.s32 %v368, %v253
        %v371 = vadd.s32 %v370, 5
        %v372 = vxor.u32 %v369, %v371
        %373 = set.rngseed %v372
        %v374 = vld [vmem:[#allocation5] sm:$0xff]
        %v375 = vld [vmem:[#allocation8] sm:$0xff]
        %v376 = vld [vmem:[#allocation8 + $0x8] sm:$0xff]
        %v377 = vld [vmem:[#allocation8 + $0x10] sm:$0xff]
        %v378 = vld [vmem:[#allocation8 + $0x18] sm:$0xff]
        %v379 = vld [vmem:[#allocation8 + $0x20] sm:$0xff]
        %v380 = vld [vmem:[#allocation8 + $0x28] sm:$0xff]
        %v381 = vld [vmem:[#allocation8 + $0x30] sm:$0xff]
        %v382 = vld [vmem:[#allocation8 + $0x38] sm:$0xff]
        %v383 = vld [vmem:[#allocation8 + $0x40] sm:$0xff]
        %v384 = vld [vmem:[#allocation8 + $0x48] sm:$0xff]
        %v385 = vld [vmem:[#allocation8 + $0x50] sm:$0xff]
        %v386 = vld [vmem:[#allocation8 + $0x58] sm:$0xff]
        %v387 = vld [vmem:[#allocation8 + $0x60] sm:$0xff]
        %v388 = vld [vmem:[#allocation8 + $0x68] sm:$0xff]
        %v389 = vld [vmem:[#allocation8 + $0x70] sm:$0xff]
        %v390 = vld [vmem:[#allocation8 + $0x78] sm:$0xff]
        %v391 = vrng
        %v392 = vrng
        %v393 = vrng
        %v394 = vrng
        %v395 = vrng
        %v396 = vrng
        %v397 = vrng
        %v398 = vrng
        %v399 = vrng
        %v400 = vrng
        %v401 = vrng
        %v402 = vrng
        %v403 = vrng
        %v404 = vrng
        %v405 = vrng
        %v406 = vrng
        %v407 = vshrl.u32 %v391, 9
        %v408 = vshrl.u32 %v392, 9
        %v409 = vshrl.u32 %v393, 9
        %v410 = vshrl.u32 %v394, 9
        %v411 = vshrl.u32 %v395, 9
        %v412 = vshrl.u32 %v396, 9
        %v413 = vshrl.u32 %v397, 9
        %v414 = vshrl.u32 %v398, 9
        %v415 = vshrl.u32 %v399, 9
        %v416 = vshrl.u32 %v400, 9
        %v417 = vshrl.u32 %v401, 9
        %v418 = vshrl.u32 %v402, 9
        %v419 = vshrl.u32 %v403, 9
        %v420 = vshrl.u32 %v404, 9
        %v421 = vshrl.u32 %v405, 9
        %v422 = vshrl.u32 %v406, 9
        %v423 = vor.u32 %v407, 1065353216
        %v424 = vor.u32 %v408, 1065353216
        %v425 = vor.u32 %v409, 1065353216
        %v426 = vor.u32 %v410, 1065353216
        %v427 = vor.u32 %v411, 1065353216
        %v428 = vor.u32 %v412, 1065353216
        %v429 = vor.u32 %v413, 1065353216
        %v430 = vor.u32 %v414, 1065353216
        %v431 = vor.u32 %v415, 1065353216
        %v432 = vor.u32 %v416, 1065353216
        %v433 = vor.u32 %v417, 1065353216
        %v434 = vor.u32 %v418, 1065353216
        %v435 = vor.u32 %v419, 1065353216
        %v436 = vor.u32 %v420, 1065353216
        %v437 = vor.u32 %v421, 1065353216
        %v438 = vor.u32 %v422, 1065353216
        %v455 = vsub.f32 %v423, 1.0
        %v456 = vsub.f32 %v424, 1.0
        %v457 = vsub.f32 %v425, 1.0
        %v458 = vsub.f32 %v426, 1.0
        %v459 = vsub.f32 %v427, 1.0
        %v460 = vsub.f32 %v428, 1.0
        %v461 = vsub.f32 %v429, 1.0
        %v462 = vsub.f32 %v430, 1.0
        %v463 = vsub.f32 %v431, 1.0
        %v464 = vsub.f32 %v432, 1.0
        %v465 = vsub.f32 %v433, 1.0
        %v466 = vsub.f32 %v434, 1.0
        %v467 = vsub.f32 %v435, 1.0
        %v468 = vsub.f32 %v436, 1.0
        %v469 = vsub.f32 %v437, 1.0
        %v470 = vsub.f32 %v438, 1.0
        %v471 = vmul.f32 %v455, 2.0
        %v472 = vmul.f32 %v456, 2.0
        %v473 = vmul.f32 %v457, 2.0
        %v474 = vmul.f32 %v458, 2.0
        %v475 = vmul.f32 %v459, 2.0
        %v476 = vmul.f32 %v460, 2.0
        %v477 = vmul.f32 %v461, 2.0
        %v478 = vmul.f32 %v462, 2.0
        %v479 = vmul.f32 %v463, 2.0
        %v480 = vmul.f32 %v464, 2.0
        %v481 = vmul.f32 %v465, 2.0
        %v482 = vmul.f32 %v466, 2.0
        %v483 = vmul.f32 %v467, 2.0
        %v484 = vmul.f32 %v468, 2.0
        %v485 = vmul.f32 %v469, 2.0
        %v486 = vmul.f32 %v470, 2.0
        %v487 = vadd.f32 %v471, -0.99999994
        %v488 = vadd.f32 %v472, -0.99999994
        %v489 = vadd.f32 %v473, -0.99999994
        %v490 = vadd.f32 %v474, -0.99999994
        %v491 = vadd.f32 %v475, -0.99999994
        %v492 = vadd.f32 %v476, -0.99999994
        %v493 = vadd.f32 %v477, -0.99999994
        %v494 = vadd.f32 %v478, -0.99999994
        %v495 = vadd.f32 %v479, -0.99999994
        %v496 = vadd.f32 %v480, -0.99999994
        %v497 = vadd.f32 %v481, -0.99999994
        %v498 = vadd.f32 %v482, -0.99999994
        %v499 = vadd.f32 %v483, -0.99999994
        %v500 = vadd.f32 %v484, -0.99999994
        %v501 = vadd.f32 %v485, -0.99999994
        %v502 = vadd.f32 %v486, -0.99999994
        %v503 = vmax.f32 %v487, -0.99999994
        %v504 = vmax.f32 %v488, -0.99999994
        %v505 = vmax.f32 %v489, -0.99999994
        %v506 = vmax.f32 %v490, -0.99999994
        %v507 = vmax.f32 %v491, -0.99999994
        %v508 = vmax.f32 %v492, -0.99999994
        %v509 = vmax.f32 %v493, -0.99999994
        %v510 = vmax.f32 %v494, -0.99999994
        %v511 = vmax.f32 %v495, -0.99999994
        %v512 = vmax.f32 %v496, -0.99999994
        %v513 = vmax.f32 %v497, -0.99999994
        %v514 = vmax.f32 %v498, -0.99999994
        %v515 = vmax.f32 %v499, -0.99999994
        %v516 = vmax.f32 %v500, -0.99999994
        %v517 = vmax.f32 %v501, -0.99999994
        %v518 = vmax.f32 %v502, -0.99999994
        %v519 = vsub.f32 0.0, %v503
        %v520 = vsub.f32 0.0, %v504
        %v521 = vsub.f32 0.0, %v505
        %v522 = vsub.f32 0.0, %v506
        %v523 = vsub.f32 0.0, %v507
        %v524 = vsub.f32 0.0, %v508
        %v525 = vsub.f32 0.0, %v509
        %v526 = vsub.f32 0.0, %v510
        %v527 = vsub.f32 0.0, %v511
        %v528 = vsub.f32 0.0, %v512
        %v529 = vsub.f32 0.0, %v513
        %v530 = vsub.f32 0.0, %v514
        %v531 = vsub.f32 0.0, %v515
        %v532 = vsub.f32 0.0, %v516
        %v533 = vsub.f32 0.0, %v517
        %v534 = vsub.f32 0.0, %v518
        %v535 = vmul.f32 %v503, %v519
        %v536 = vmul.f32 %v504, %v520
        %v537 = vmul.f32 %v505, %v521
        %v538 = vmul.f32 %v506, %v522
        %v539 = vmul.f32 %v507, %v523
        %v540 = vmul.f32 %v508, %v524
        %v541 = vmul.f32 %v509, %v525
        %v542 = vmul.f32 %v510, %v526
        %v543 = vmul.f32 %v511, %v527
        %v544 = vmul.f32 %v512, %v528
        %v545 = vmul.f32 %v513, %v529
        %v546 = vmul.f32 %v514, %v530
        %v547 = vmul.f32 %v515, %v531
        %v548 = vmul.f32 %v516, %v532
        %v549 = vmul.f32 %v517, %v533
        %v550 = vmul.f32 %v518, %v534
        %v551 = vadd.f32 %v535, 1.0
        %v552 = vlog2.pop %v551
        %v553 = vmul.f32 %v552, 0.6931472
        %v554 = vmul.f32 -0.5, %v535
        %v555 = vadd.f32 %v554, 1.0
        %v556 = vmul.f32 %v555, %v535
        %v557 = vand.u32 2147483647, %v535
        %vm558 = vcmp.lt.f32.partialorder %v557, 0.0004427343
        %v559 = vsel %vm558, %v556, %v553
        %v560 = vadd.f32 %v536, 1.0
        %v561 = vlog2.pop %v560
        %v562 = vmul.f32 %v561, 0.6931472
        %v563 = vmul.f32 -0.5, %v536
        %v564 = vadd.f32 %v563, 1.0
        %v565 = vmul.f32 %v564, %v536
        %v566 = vand.u32 2147483647, %v536
        %vm567 = vcmp.lt.f32.partialorder %v566, 0.0004427343
        %v568 = vsel %vm567, %v565, %v562
        %v569 = vadd.f32 %v537, 1.0
        %v570 = vlog2.pop %v569
        %v571 = vmul.f32 %v570, 0.6931472
        %v572 = vmul.f32 -0.5, %v537
        %v573 = vadd.f32 %v572, 1.0
        %v574 = vmul.f32 %v573, %v537
        %v575 = vand.u32 2147483647, %v537
        %vm576 = vcmp.lt.f32.partialorder %v575, 0.0004427343
        %v577 = vsel %vm576, %v574, %v571
        %v578 = vadd.f32 %v538, 1.0
        %v579 = vlog2.pop %v578
        %v580 = vmul.f32 %v579, 0.6931472
        %v581 = vmul.f32 -0.5, %v538
        %v582 = vadd.f32 %v581, 1.0
        %v583 = vmul.f32 %v582, %v538
        %v584 = vand.u32 2147483647, %v538
        %vm585 = vcmp.lt.f32.partialorder %v584, 0.0004427343
        %v586 = vsel %vm585, %v583, %v580
        %v587 = vadd.f32 %v539, 1.0
        %v588 = vlog2.pop %v587
        %v589 = vmul.f32 %v588, 0.6931472
        %v590 = vmul.f32 -0.5, %v539
        %v591 = vadd.f32 %v590, 1.0
        %v592 = vmul.f32 %v591, %v539
        %v593 = vand.u32 2147483647, %v539
        %vm594 = vcmp.lt.f32.partialorder %v593, 0.0004427343
        %v595 = vsel %vm594, %v592, %v589
        %v596 = vadd.f32 %v540, 1.0
        %v597 = vlog2.pop %v596
        %v598 = vmul.f32 %v597, 0.6931472
        %v599 = vmul.f32 -0.5, %v540
        %v600 = vadd.f32 %v599, 1.0
        %v601 = vmul.f32 %v600, %v540
        %v602 = vand.u32 2147483647, %v540
        %vm603 = vcmp.lt.f32.partialorder %v602, 0.0004427343
        %v604 = vsel %vm603, %v601, %v598
        %v605 = vadd.f32 %v541, 1.0
        %v606 = vlog2.pop %v605
        %v607 = vmul.f32 %v606, 0.6931472
        %v608 = vmul.f32 -0.5, %v541
        %v609 = vadd.f32 %v608, 1.0
        %v610 = vmul.f32 %v609, %v541
        %v611 = vand.u32 2147483647, %v541
        %vm612 = vcmp.lt.f32.partialorder %v611, 0.0004427343
        %v613 = vsel %vm612, %v610, %v607
        %v614 = vadd.f32 %v542, 1.0
        %v615 = vlog2.pop %v614
        %v616 = vmul.f32 %v615, 0.6931472
        %v617 = vmul.f32 -0.5, %v542
        %v618 = vadd.f32 %v617, 1.0
        %v619 = vmul.f32 %v618, %v542
        %v620 = vand.u32 2147483647, %v542
        %vm621 = vcmp.lt.f32.partialorder %v620, 0.0004427343
        %v622 = vsel %vm621, %v619, %v616
        %v623 = vadd.f32 %v543, 1.0
        %v624 = vlog2.pop %v623
        %v625 = vmul.f32 %v624, 0.6931472
        %v626 = vmul.f32 -0.5, %v543
        %v627 = vadd.f32 %v626, 1.0
        %v628 = vmul.f32 %v627, %v543
        %v629 = vand.u32 2147483647, %v543
        %vm630 = vcmp.lt.f32.partialorder %v629, 0.0004427343
        %v631 = vsel %vm630, %v628, %v625
        %v632 = vadd.f32 %v544, 1.0
        %v633 = vlog2.pop %v632
        %v634 = vmul.f32 %v633, 0.6931472
        %v635 = vmul.f32 -0.5, %v544
        %v636 = vadd.f32 %v635, 1.0
        %v637 = vmul.f32 %v636, %v544
        %v638 = vand.u32 2147483647, %v544
        %vm639 = vcmp.lt.f32.partialorder %v638, 0.0004427343
        %v640 = vsel %vm639, %v637, %v634
        %v641 = vadd.f32 %v545, 1.0
        %v642 = vlog2.pop %v641
        %v643 = vmul.f32 %v642, 0.6931472
        %v644 = vmul.f32 -0.5, %v545
        %v645 = vadd.f32 %v644, 1.0
        %v646 = vmul.f32 %v645, %v545
        %v647 = vand.u32 2147483647, %v545
        %vm648 = vcmp.lt.f32.partialorder %v647, 0.0004427343
        %v649 = vsel %vm648, %v646, %v643
        %v650 = vadd.f32 %v546, 1.0
        %v651 = vlog2.pop %v650
        %v652 = vmul.f32 %v651, 0.6931472
        %v653 = vmul.f32 -0.5, %v546
        %v654 = vadd.f32 %v653, 1.0
        %v655 = vmul.f32 %v654, %v546
        %v656 = vand.u32 2147483647, %v546
        %vm657 = vcmp.lt.f32.partialorder %v656, 0.0004427343
        %v658 = vsel %vm657, %v655, %v652
        %v659 = vadd.f32 %v547, 1.0
        %v660 = vlog2.pop %v659
        %v661 = vmul.f32 %v660, 0.6931472
        %v662 = vmul.f32 -0.5, %v547
        %v663 = vadd.f32 %v662, 1.0
        %v664 = vmul.f32 %v663, %v547
        %v665 = vand.u32 2147483647, %v547
        %vm666 = vcmp.lt.f32.partialorder %v665, 0.0004427343
        %v667 = vsel %vm666, %v664, %v661
        %v668 = vadd.f32 %v548, 1.0
        %v669 = vlog2.pop %v668
        %v670 = vmul.f32 %v669, 0.6931472
        %v671 = vmul.f32 -0.5, %v548
        %v672 = vadd.f32 %v671, 1.0
        %v673 = vmul.f32 %v672, %v548
        %v674 = vand.u32 2147483647, %v548
        %vm675 = vcmp.lt.f32.partialorder %v674, 0.0004427343
        %v676 = vsel %vm675, %v673, %v670
        %v677 = vadd.f32 %v549, 1.0
        %v678 = vlog2.pop %v677
        %v679 = vmul.f32 %v678, 0.6931472
        %v680 = vmul.f32 -0.5, %v549
        %v681 = vadd.f32 %v680, 1.0
        %v682 = vmul.f32 %v681, %v549
        %v683 = vand.u32 2147483647, %v549
        %vm684 = vcmp.lt.f32.partialorder %v683, 0.0004427343
        %v685 = vsel %vm684, %v682, %v679
        %v686 = vadd.f32 %v550, 1.0
        %v687 = vlog2.pop %v686
        %v688 = vmul.f32 %v687, 0.6931472
        %v689 = vmul.f32 -0.5, %v550
        %v690 = vadd.f32 %v689, 1.0
        %v691 = vmul.f32 %v690, %v550
        %v692 = vand.u32 2147483647, %v550
        %vm693 = vcmp.lt.f32.partialorder %v692, 0.0004427343
        %v694 = vsel %vm693, %v691, %v688
        %v695 = vsub.f32 0.0, %v559
        %v696 = vsub.f32 0.0, %v568
        %v697 = vsub.f32 0.0, %v577
        %v698 = vsub.f32 0.0, %v586
        %v699 = vsub.f32 0.0, %v595
        %v700 = vsub.f32 0.0, %v604
        %v701 = vsub.f32 0.0, %v613
        %v702 = vsub.f32 0.0, %v622
        %v703 = vsub.f32 0.0, %v631
        %v704 = vsub.f32 0.0, %v640
        %v705 = vsub.f32 0.0, %v649
        %v706 = vsub.f32 0.0, %v658
        %v707 = vsub.f32 0.0, %v667
        %v708 = vsub.f32 0.0, %v676
        %v709 = vsub.f32 0.0, %v685
        %v710 = vsub.f32 0.0, %v694
        %vm711 = vcmp.lt.f32.partialorder %v695, 5.0
        %vm712 = vcmp.lt.f32.partialorder %v696, 5.0
        %vm713 = vcmp.lt.f32.partialorder %v697, 5.0
        %vm714 = vcmp.lt.f32.partialorder %v698, 5.0
        %vm715 = vcmp.lt.f32.partialorder %v699, 5.0
        %vm716 = vcmp.lt.f32.partialorder %v700, 5.0
        %vm717 = vcmp.lt.f32.partialorder %v701, 5.0
        %vm718 = vcmp.lt.f32.partialorder %v702, 5.0
        %vm719 = vcmp.lt.f32.partialorder %v703, 5.0
        %vm720 = vcmp.lt.f32.partialorder %v704, 5.0
        %vm721 = vcmp.lt.f32.partialorder %v705, 5.0
        %vm722 = vcmp.lt.f32.partialorder %v706, 5.0
        %vm723 = vcmp.lt.f32.partialorder %v707, 5.0
        %vm724 = vcmp.lt.f32.partialorder %v708, 5.0
        %vm725 = vcmp.lt.f32.partialorder %v709, 5.0
        %vm726 = vcmp.lt.f32.partialorder %v710, 5.0
        %v727 = vsub.f32 %v695, 2.5
        %v728 = vsub.f32 %v696, 2.5
        %v729 = vsub.f32 %v697, 2.5
        %v730 = vsub.f32 %v698, 2.5
        %v731 = vsub.f32 %v699, 2.5
        %v732 = vsub.f32 %v700, 2.5
        %v733 = vsub.f32 %v701, 2.5
        %v734 = vsub.f32 %v702, 2.5
        %v735 = vsub.f32 %v703, 2.5
        %v736 = vsub.f32 %v704, 2.5
        %v737 = vsub.f32 %v705, 2.5
        %v738 = vsub.f32 %v706, 2.5
        %v739 = vsub.f32 %v707, 2.5
        %v740 = vsub.f32 %v708, 2.5
        %v741 = vsub.f32 %v709, 2.5
        %v742 = vsub.f32 %v710, 2.5
        %v743 = vrsqrt.pop %v695
        %v744 = vmul.f32 %v743, %v695
        %v745 = vmul.f32 %v744, %v743
        %v746 = vmul.f32 0.5, %v745
        %v747 = vsub.f32 1.5, %v746
        %v748 = vmul.f32 %v743, %v747
        %v749 = vmul.f32 %v695, %v748
        %vm750 = vcmp.eq.f32.partialorder %v695, inf
        %v751 = vsel %vm750, %v695, %v749
        %vm752 = vcmp.eq.f32.partialorder %v695, 0.0
        %v753 = vand.u32 %v695, 2147483648
        %v754 = vsel %vm752, %v753, %v751
        %v755 = vrsqrt.pop %v696
        %v756 = vmul.f32 %v755, %v696
        %v757 = vmul.f32 %v756, %v755
        %v758 = vmul.f32 0.5, %v757
        %v759 = vsub.f32 1.5, %v758
        %v760 = vmul.f32 %v755, %v759
        %v761 = vmul.f32 %v696, %v760
        %vm762 = vcmp.eq.f32.partialorder %v696, inf
        %v763 = vsel %vm762, %v696, %v761
        %vm764 = vcmp.eq.f32.partialorder %v696, 0.0
        %v765 = vand.u32 %v696, 2147483648
        %v766 = vsel %vm764, %v765, %v763
        %v767 = vrsqrt.pop %v697
        %v768 = vmul.f32 %v767, %v697
        %v769 = vmul.f32 %v768, %v767
        %v770 = vmul.f32 0.5, %v769
        %v771 = vsub.f32 1.5, %v770
        %v772 = vmul.f32 %v767, %v771
        %v773 = vmul.f32 %v697, %v772
        %vm774 = vcmp.eq.f32.partialorder %v697, inf
        %v775 = vsel %vm774, %v697, %v773
        %vm776 = vcmp.eq.f32.partialorder %v697, 0.0
        %v777 = vand.u32 %v697, 2147483648
        %v778 = vsel %vm776, %v777, %v775
        %v779 = vrsqrt.pop %v698
        %v780 = vmul.f32 %v779, %v698
        %v781 = vmul.f32 %v780, %v779
        %v782 = vmul.f32 0.5, %v781
        %v783 = vsub.f32 1.5, %v782
        %v784 = vmul.f32 %v779, %v783
        %v785 = vmul.f32 %v698, %v784
        %vm786 = vcmp.eq.f32.partialorder %v698, inf
        %v787 = vsel %vm786, %v698, %v785
        %vm788 = vcmp.eq.f32.partialorder %v698, 0.0
        %v789 = vand.u32 %v698, 2147483648
        %v790 = vsel %vm788, %v789, %v787
        %v791 = vrsqrt.pop %v699
        %v792 = vmul.f32 %v791, %v699
        %v793 = vmul.f32 %v792, %v791
        %v794 = vmul.f32 0.5, %v793
        %v795 = vsub.f32 1.5, %v794
        %v796 = vmul.f32 %v791, %v795
        %v797 = vmul.f32 %v699, %v796
        %vm798 = vcmp.eq.f32.partialorder %v699, inf
        %v799 = vsel %vm798, %v699, %v797
        %vm800 = vcmp.eq.f32.partialorder %v699, 0.0
        %v801 = vand.u32 %v699, 2147483648
        %v802 = vsel %vm800, %v801, %v799
        %v803 = vrsqrt.pop %v700
        %v804 = vmul.f32 %v803, %v700
        %v805 = vmul.f32 %v804, %v803
        %v806 = vmul.f32 0.5, %v805
        %v807 = vsub.f32 1.5, %v806
        %v808 = vmul.f32 %v803, %v807
        %v809 = vmul.f32 %v700, %v808
        %vm810 = vcmp.eq.f32.partialorder %v700, inf
        %v811 = vsel %vm810, %v700, %v809
        %vm812 = vcmp.eq.f32.partialorder %v700, 0.0
        %v813 = vand.u32 %v700, 2147483648
        %v814 = vsel %vm812, %v813, %v811
        %v815 = vrsqrt.pop %v701
        %v816 = vmul.f32 %v815, %v701
        %v817 = vmul.f32 %v816, %v815
        %v818 = vmul.f32 0.5, %v817
        %v819 = vsub.f32 1.5, %v818
        %v820 = vmul.f32 %v815, %v819
        %v821 = vmul.f32 %v701, %v820
        %vm822 = vcmp.eq.f32.partialorder %v701, inf
        %v823 = vsel %vm822, %v701, %v821
        %vm824 = vcmp.eq.f32.partialorder %v701, 0.0
        %v825 = vand.u32 %v701, 2147483648
        %v826 = vsel %vm824, %v825, %v823
        %v827 = vrsqrt.pop %v702
        %v828 = vmul.f32 %v827, %v702
        %v829 = vmul.f32 %v828, %v827
        %v830 = vmul.f32 0.5, %v829
        %v831 = vsub.f32 1.5, %v830
        %v832 = vmul.f32 %v827, %v831
        %v833 = vmul.f32 %v702, %v832
        %vm834 = vcmp.eq.f32.partialorder %v702, inf
        %v835 = vsel %vm834, %v702, %v833
        %vm836 = vcmp.eq.f32.partialorder %v702, 0.0
        %v837 = vand.u32 %v702, 2147483648
        %v838 = vsel %vm836, %v837, %v835
        %v839 = vrsqrt.pop %v703
        %v840 = vmul.f32 %v839, %v703
        %v841 = vmul.f32 %v840, %v839
        %v842 = vmul.f32 0.5, %v841
        %v843 = vsub.f32 1.5, %v842
        %v844 = vmul.f32 %v839, %v843
        %v845 = vmul.f32 %v703, %v844
        %vm846 = vcmp.eq.f32.partialorder %v703, inf
        %v847 = vsel %vm846, %v703, %v845
        %vm848 = vcmp.eq.f32.partialorder %v703, 0.0
        %v849 = vand.u32 %v703, 2147483648
        %v850 = vsel %vm848, %v849, %v847
        %v851 = vrsqrt.pop %v704
        %v852 = vmul.f32 %v851, %v704
        %v853 = vmul.f32 %v852, %v851
        %v854 = vmul.f32 0.5, %v853
        %v855 = vsub.f32 1.5, %v854
        %v856 = vmul.f32 %v851, %v855
        %v857 = vmul.f32 %v704, %v856
        %vm858 = vcmp.eq.f32.partialorder %v704, inf
        %v859 = vsel %vm858, %v704, %v857
        %vm860 = vcmp.eq.f32.partialorder %v704, 0.0
        %v861 = vand.u32 %v704, 2147483648
        %v862 = vsel %vm860, %v861, %v859
        %v863 = vrsqrt.pop %v705
        %v864 = vmul.f32 %v863, %v705
        %v865 = vmul.f32 %v864, %v863
        %v866 = vmul.f32 0.5, %v865
        %v867 = vsub.f32 1.5, %v866
        %v868 = vmul.f32 %v863, %v867
        %v869 = vmul.f32 %v705, %v868
        %vm870 = vcmp.eq.f32.partialorder %v705, inf
        %v871 = vsel %vm870, %v705, %v869
        %vm872 = vcmp.eq.f32.partialorder %v705, 0.0
        %v873 = vand.u32 %v705, 2147483648
        %v874 = vsel %vm872, %v873, %v871
        %v875 = vrsqrt.pop %v706
        %v876 = vmul.f32 %v875, %v706
        %v877 = vmul.f32 %v876, %v875
        %v878 = vmul.f32 0.5, %v877
        %v879 = vsub.f32 1.5, %v878
        %v880 = vmul.f32 %v875, %v879
        %v881 = vmul.f32 %v706, %v880
        %vm882 = vcmp.eq.f32.partialorder %v706, inf
        %v883 = vsel %vm882, %v706, %v881
        %vm884 = vcmp.eq.f32.partialorder %v706, 0.0
        %v885 = vand.u32 %v706, 2147483648
        %v886 = vsel %vm884, %v885, %v883
        %v887 = vrsqrt.pop %v707
        %v888 = vmul.f32 %v887, %v707
        %v889 = vmul.f32 %v888, %v887
        %v890 = vmul.f32 0.5, %v889
        %v891 = vsub.f32 1.5, %v890
        %v892 = vmul.f32 %v887, %v891
        %v893 = vmul.f32 %v707, %v892
        %vm894 = vcmp.eq.f32.partialorder %v707, inf
        %v895 = vsel %vm894, %v707, %v893
        %vm896 = vcmp.eq.f32.partialorder %v707, 0.0
        %v897 = vand.u32 %v707, 2147483648
        %v898 = vsel %vm896, %v897, %v895
        %v899 = vrsqrt.pop %v708
        %v900 = vmul.f32 %v899, %v708
        %v901 = vmul.f32 %v900, %v899
        %v902 = vmul.f32 0.5, %v901
        %v903 = vsub.f32 1.5, %v902
        %v904 = vmul.f32 %v899, %v903
        %v905 = vmul.f32 %v708, %v904
        %vm906 = vcmp.eq.f32.partialorder %v708, inf
        %v907 = vsel %vm906, %v708, %v905
        %vm908 = vcmp.eq.f32.partialorder %v708, 0.0
        %v909 = vand.u32 %v708, 2147483648
        %v910 = vsel %vm908, %v909, %v907
        %v911 = vrsqrt.pop %v709
        %v912 = vmul.f32 %v911, %v709
        %v913 = vmul.f32 %v912, %v911
        %v914 = vmul.f32 0.5, %v913
        %v915 = vsub.f32 1.5, %v914
        %v916 = vmul.f32 %v911, %v915
        %v917 = vmul.f32 %v709, %v916
        %vm918 = vcmp.eq.f32.partialorder %v709, inf
        %v919 = vsel %vm918, %v709, %v917
        %vm920 = vcmp.eq.f32.partialorder %v709, 0.0
        %v921 = vand.u32 %v709, 2147483648
        %v922 = vsel %vm920, %v921, %v919
        %v923 = vrsqrt.pop %v710
        %v924 = vmul.f32 %v923, %v710
        %v925 = vmul.f32 %v924, %v923
        %v926 = vmul.f32 0.5, %v925
        %v927 = vsub.f32 1.5, %v926
        %v928 = vmul.f32 %v923, %v927
        %v929 = vmul.f32 %v710, %v928
        %vm930 = vcmp.eq.f32.partialorder %v710, inf
        %v931 = vsel %vm930, %v710, %v929
        %vm932 = vcmp.eq.f32.partialorder %v710, 0.0
        %v933 = vand.u32 %v710, 2147483648
        %v934 = vsel %vm932, %v933, %v931
        %v935 = vsub.f32 %v754, 3.0
        %v936 = vsub.f32 %v766, 3.0
        %v937 = vsub.f32 %v778, 3.0
        %v938 = vsub.f32 %v790, 3.0
        %v939 = vsub.f32 %v802, 3.0
        %v940 = vsub.f32 %v814, 3.0
        %v941 = vsub.f32 %v826, 3.0
        %v942 = vsub.f32 %v838, 3.0
        %v943 = vsub.f32 %v850, 3.0
        %v944 = vsub.f32 %v862, 3.0
        %v945 = vsub.f32 %v874, 3.0
        %v946 = vsub.f32 %v886, 3.0
        %v947 = vsub.f32 %v898, 3.0
        %v948 = vsub.f32 %v910, 3.0
        %v949 = vsub.f32 %v922, 3.0
        %v950 = vsub.f32 %v934, 3.0
        %v951 = vsel %vm711, %v727, %v935
        %v952 = vsel %vm712, %v728, %v936
        %v953 = vsel %vm713, %v729, %v937
        %v954 = vsel %vm714, %v730, %v938
        %v955 = vsel %vm715, %v731, %v939
        %v956 = vsel %vm716, %v732, %v940
        %v957 = vsel %vm717, %v733, %v941
        %v958 = vsel %vm718, %v734, %v942
        %v959 = vsel %vm719, %v735, %v943
        %v960 = vsel %vm720, %v736, %v944
        %v961 = vsel %vm721, %v737, %v945
        %v962 = vsel %vm722, %v738, %v946
        %v963 = vsel %vm723, %v739, %v947
        %v964 = vsel %vm724, %v740, %v948
        %v965 = vsel %vm725, %v741, %v949
        %v966 = vsel %vm726, %v742, %v950
        %v967 = vsel %vm711, 2.8102264e-08, -0.00020021426
        %v968 = vsel %vm712, 2.8102264e-08, -0.00020021426
        %v969 = vsel %vm713, 2.8102264e-08, -0.00020021426
        %v970 = vsel %vm714, 2.8102264e-08, -0.00020021426
        %v971 = vsel %vm715, 2.8102264e-08, -0.00020021426
        %v972 = vsel %vm716, 2.8102264e-08, -0.00020021426
        %v973 = vsel %vm717, 2.8102264e-08, -0.00020021426
        %v974 = vsel %vm718, 2.8102264e-08, -0.00020021426
        %v975 = vsel %vm719, 2.8102264e-08, -0.00020021426
        %v976 = vsel %vm720, 2.8102264e-08, -0.00020021426
        %v977 = vsel %vm721, 2.8102264e-08, -0.00020021426
        %v978 = vsel %vm722, 2.8102264e-08, -0.00020021426
        %v979 = vsel %vm723, 2.8102264e-08, -0.00020021426
        %v980 = vsel %vm724, 2.8102264e-08, -0.00020021426
        %v981 = vsel %vm725, 2.8102264e-08, -0.00020021426
        %v982 = vsel %vm726, 2.8102264e-08, -0.00020021426
        %v983 = vsel %vm711, 3.4327394e-07, 0.00010095056
        %v984 = vsel %vm712, 3.4327394e-07, 0.00010095056
        %v985 = vsel %vm713, 3.4327394e-07, 0.00010095056
        %v986 = vsel %vm714, 3.4327394e-07, 0.00010095056
        %v987 = vsel %vm715, 3.4327394e-07, 0.00010095056
        %v988 = vsel %vm716, 3.4327394e-07, 0.00010095056
        %v989 = vsel %vm717, 3.4327394e-07, 0.00010095056
        %v990 = vsel %vm718, 3.4327394e-07, 0.00010095056
        %v991 = vsel %vm719, 3.4327394e-07, 0.00010095056
        %v992 = vsel %vm720, 3.4327394e-07, 0.00010095056
        %v993 = vsel %vm721, 3.4327394e-07, 0.00010095056
        %v994 = vsel %vm722, 3.4327394e-07, 0.00010095056
        %v995 = vsel %vm723, 3.4327394e-07, 0.00010095056
        %v996 = vsel %vm724, 3.4327394e-07, 0.00010095056
        %v997 = vsel %vm725, 3.4327394e-07, 0.00010095056
        %v998 = vsel %vm726, 3.4327394e-07, 0.00010095056
        %v999 = vmul.f32 %v967, %v951
        %v1000 = vmul.f32 %v968, %v952
        %v1001 = vmul.f32 %v969, %v953
        %v1002 = vmul.f32 %v970, %v954
        %v1003 = vmul.f32 %v971, %v955
        %v1004 = vmul.f32 %v972, %v956
        %v1005 = vmul.f32 %v973, %v957
        %v1006 = vmul.f32 %v974, %v958
        %v1007 = vmul.f32 %v975, %v959
        %v1008 = vmul.f32 %v976, %v960
        %v1009 = vmul.f32 %v977, %v961
        %v1010 = vmul.f32 %v978, %v962
        %v1011 = vmul.f32 %v979, %v963
        %v1012 = vmul.f32 %v980, %v964
        %v1013 = vmul.f32 %v981, %v965
        %v1014 = vmul.f32 %v982, %v966
        %v1015 = vadd.f32 %v983, %v999
        %v1016 = vadd.f32 %v984, %v1000
        %v1017 = vadd.f32 %v985, %v1001
        %v1018 = vadd.f32 %v986, %v1002
        %v1019 = vadd.f32 %v987, %v1003
        %v1020 = vadd.f32 %v988, %v1004
        %v1021 = vadd.f32 %v989, %v1005
        %v1022 = vadd.f32 %v990, %v1006
        %v1023 = vadd.f32 %v991, %v1007
        %v1024 = vadd.f32 %v992, %v1008
        %v1025 = vadd.f32 %v993, %v1009
        %v1026 = vadd.f32 %v994, %v1010
        %v1027 = vadd.f32 %v995, %v1011
        %v1028 = vadd.f32 %v996, %v1012
        %v1029 = vadd.f32 %v997, %v1013
        %v1030 = vadd.f32 %v998, %v1014
        %v1031 = vsel %vm711, -3.5233877e-06, 0.0013493432
        %v1032 = vsel %vm712, -3.5233877e-06, 0.0013493432
        %v1033 = vsel %vm713, -3.5233877e-06, 0.0013493432
        %v1034 = vsel %vm714, -3.5233877e-06, 0.0013493432
        %v1035 = vsel %vm715, -3.5233877e-06, 0.0013493432
        %v1036 = vsel %vm716, -3.5233877e-06, 0.0013493432
        %v1037 = vsel %vm717, -3.5233877e-06, 0.0013493432
        %v1038 = vsel %vm718, -3.5233877e-06, 0.0013493432
        %v1039 = vsel %vm719, -3.5233877e-06, 0.0013493432
        %v1040 = vsel %vm720, -3.5233877e-06, 0.0013493432
        %v1041 = vsel %vm721, -3.5233877e-06, 0.0013493432
        %v1042 = vsel %vm722, -3.5233877e-06, 0.0013493432
        %v1043 = vsel %vm723, -3.5233877e-06, 0.0013493432
        %v1044 = vsel %vm724, -3.5233877e-06, 0.0013493432
        %v1045 = vsel %vm725, -3.5233877e-06, 0.0013493432
        %v1046 = vsel %vm726, -3.5233877e-06, 0.0013493432
        %v1047 = vmul.f32 %v1015, %v951
        %v1048 = vmul.f32 %v1016, %v952
        %v1049 = vmul.f32 %v1017, %v953
        %v1050 = vmul.f32 %v1018, %v954
        %v1051 = vmul.f32 %v1019, %v955
        %v1052 = vmul.f32 %v1020, %v956
        %v1053 = vmul.f32 %v1021, %v957
        %v1054 = vmul.f32 %v1022, %v958
        %v1055 = vmul.f32 %v1023, %v959
        %v1056 = vmul.f32 %v1024, %v960
        %v1057 = vmul.f32 %v1025, %v961
        %v1058 = vmul.f32 %v1026, %v962
        %v1059 = vmul.f32 %v1027, %v963
        %v1060 = vmul.f32 %v1028, %v964
        %v1061 = vmul.f32 %v1029, %v965
        %v1062 = vmul.f32 %v1030, %v966
        %v1063 = vadd.f32 %v1031, %v1047
        %v1064 = vadd.f32 %v1032, %v1048
        %v1065 = vadd.f32 %v1033, %v1049
        %v1066 = vadd.f32 %v1034, %v1050
        %v1067 = vadd.f32 %v1035, %v1051
        %v1068 = vadd.f32 %v1036, %v1052
        %v1069 = vadd.f32 %v1037, %v1053
        %v1070 = vadd.f32 %v1038, %v1054
        %v1071 = vadd.f32 %v1039, %v1055
        %v1072 = vadd.f32 %v1040, %v1056
        %v1073 = vadd.f32 %v1041, %v1057
        %v1074 = vadd.f32 %v1042, %v1058
        %v1075 = vadd.f32 %v1043, %v1059
        %v1076 = vadd.f32 %v1044, %v1060
        %v1077 = vadd.f32 %v1045, %v1061
        %v1078 = vadd.f32 %v1046, %v1062
        %v1079 = vsel %vm711, -4.3915065e-06, -0.0036734284
        %v1080 = vsel %vm712, -4.3915065e-06, -0.0036734284
        %v1081 = vsel %vm713, -4.3915065e-06, -0.0036734284
        %v1082 = vsel %vm714, -4.3915065e-06, -0.0036734284
        %v1083 = vsel %vm715, -4.3915065e-06, -0.0036734284
        %v1084 = vsel %vm716, -4.3915065e-06, -0.0036734284
        %v1085 = vsel %vm717, -4.3915065e-06, -0.0036734284
        %v1086 = vsel %vm718, -4.3915065e-06, -0.0036734284
        %v1087 = vsel %vm719, -4.3915065e-06, -0.0036734284
        %v1088 = vsel %vm720, -4.3915065e-06, -0.0036734284
        %v1089 = vsel %vm721, -4.3915065e-06, -0.0036734284
        %v1090 = vsel %vm722, -4.3915065e-06, -0.0036734284
        %v1091 = vsel %vm723, -4.3915065e-06, -0.0036734284
        %v1092 = vsel %vm724, -4.3915065e-06, -0.0036734284
        %v1093 = vsel %vm725, -4.3915065e-06, -0.0036734284
        %v1094 = vsel %vm726, -4.3915065e-06, -0.0036734284
        %v1095 = vmul.f32 %v1063, %v951
        %v1096 = vmul.f32 %v1064, %v952
        %v1097 = vmul.f32 %v1065, %v953
        %v1098 = vmul.f32 %v1066, %v954
        %v1099 = vmul.f32 %v1067, %v955
        %v1100 = vmul.f32 %v1068, %v956
        %v1101 = vmul.f32 %v1069, %v957
        %v1102 = vmul.f32 %v1070, %v958
        %v1103 = vmul.f32 %v1071, %v959
        %v1104 = vmul.f32 %v1072, %v960
        %v1105 = vmul.f32 %v1073, %v961
        %v1106 = vmul.f32 %v1074, %v962
        %v1107 = vmul.f32 %v1075, %v963
        %v1108 = vmul.f32 %v1076, %v964
        %v1109 = vmul.f32 %v1077, %v965
        %v1110 = vmul.f32 %v1078, %v966
        %v1111 = vadd.f32 %v1079, %v1095
        %v1112 = vadd.f32 %v1080, %v1096
        %v1113 = vadd.f32 %v1081, %v1097
        %v1114 = vadd.f32 %v1082, %v1098
        %v1115 = vadd.f32 %v1083, %v1099
        %v1116 = vadd.f32 %v1084, %v1100
        %v1117 = vadd.f32 %v1085, %v1101
        %v1118 = vadd.f32 %v1086, %v1102
        %v1119 = vadd.f32 %v1087, %v1103
        %v1120 = vadd.f32 %v1088, %v1104
        %v1121 = vadd.f32 %v1089, %v1105
        %v1122 = vadd.f32 %v1090, %v1106
        %v1123 = vadd.f32 %v1091, %v1107
        %v1124 = vadd.f32 %v1092, %v1108
        %v1125 = vadd.f32 %v1093, %v1109
        %v1126 = vadd.f32 %v1094, %v1110
        %v1127 = vsel %vm711, 0.00021858087, 0.0057395077
        %v1128 = vsel %vm712, 0.00021858087, 0.0057395077
        %v1129 = vsel %vm713, 0.00021858087, 0.0057395077
        %v1130 = vsel %vm714, 0.00021858087, 0.0057395077
        %v1131 = vsel %vm715, 0.00021858087, 0.0057395077
        %v1132 = vsel %vm716, 0.00021858087, 0.0057395077
        %v1133 = vsel %vm717, 0.00021858087, 0.0057395077
        %v1134 = vsel %vm718, 0.00021858087, 0.0057395077
        %v1135 = vsel %vm719, 0.00021858087, 0.0057395077
        %v1136 = vsel %vm720, 0.00021858087, 0.0057395077
        %v1137 = vsel %vm721, 0.00021858087, 0.0057395077
        %v1138 = vsel %vm722, 0.00021858087, 0.0057395077
        %v1139 = vsel %vm723, 0.00021858087, 0.0057395077
        %v1140 = vsel %vm724, 0.00021858087, 0.0057395077
        %v1141 = vsel %vm725, 0.00021858087, 0.0057395077
        %v1142 = vsel %vm726, 0.00021858087, 0.0057395077
        %v1143 = vmul.f32 %v1111, %v951
        %v1144 = vmul.f32 %v1112, %v952
        %v1145 = vmul.f32 %v1113, %v953
        %v1146 = vmul.f32 %v1114, %v954
        %v1147 = vmul.f32 %v1115, %v955
        %v1148 = vmul.f32 %v1116, %v956
        %v1149 = vmul.f32 %v1117, %v957
        %v1150 = vmul.f32 %v1118, %v958
        %v1151 = vmul.f32 %v1119, %v959
        %v1152 = vmul.f32 %v1120, %v960
        %v1153 = vmul.f32 %v1121, %v961
        %v1154 = vmul.f32 %v1122, %v962
        %v1155 = vmul.f32 %v1123, %v963
        %v1156 = vmul.f32 %v1124, %v964
        %v1157 = vmul.f32 %v1125, %v965
        %v1158 = vmul.f32 %v1126, %v966
        %v1159 = vadd.f32 %v1127, %v1143
        %v1160 = vadd.f32 %v1128, %v1144
        %v1161 = vadd.f32 %v1129, %v1145
        %v1162 = vadd.f32 %v1130, %v1146
        %v1163 = vadd.f32 %v1131, %v1147
        %v1164 = vadd.f32 %v1132, %v1148
        %v1165 = vadd.f32 %v1133, %v1149
        %v1166 = vadd.f32 %v1134, %v1150
        %v1167 = vadd.f32 %v1135, %v1151
        %v1168 = vadd.f32 %v1136, %v1152
        %v1169 = vadd.f32 %v1137, %v1153
        %v1170 = vadd.f32 %v1138, %v1154
        %v1171 = vadd.f32 %v1139, %v1155
        %v1172 = vadd.f32 %v1140, %v1156
        %v1173 = vadd.f32 %v1141, %v1157
        %v1174 = vadd.f32 %v1142, %v1158
        %v1175 = vsel %vm711, -0.001253725, -0.0076224613
        %v1176 = vsel %vm712, -0.001253725, -0.0076224613
        %v1177 = vsel %vm713, -0.001253725, -0.0076224613
        %v1178 = vsel %vm714, -0.001253725, -0.0076224613
        %v1179 = vsel %vm715, -0.001253725, -0.0076224613
        %v1180 = vsel %vm716, -0.001253725, -0.0076224613
        %v1181 = vsel %vm717, -0.001253725, -0.0076224613
        %v1182 = vsel %vm718, -0.001253725, -0.0076224613
        %v1183 = vsel %vm719, -0.001253725, -0.0076224613
        %v1184 = vsel %vm720, -0.001253725, -0.0076224613
        %v1185 = vsel %vm721, -0.001253725, -0.0076224613
        %v1186 = vsel %vm722, -0.001253725, -0.0076224613
        %v1187 = vsel %vm723, -0.001253725, -0.0076224613
        %v1188 = vsel %vm724, -0.001253725, -0.0076224613
        %v1189 = vsel %vm725, -0.001253725, -0.0076224613
        %v1190 = vsel %vm726, -0.001253725, -0.0076224613
        %v1191 = vmul.f32 %v1159, %v951
        %v1192 = vmul.f32 %v1160, %v952
        %v1193 = vmul.f32 %v1161, %v953
        %v1194 = vmul.f32 %v1162, %v954
        %v1195 = vmul.f32 %v1163, %v955
        %v1196 = vmul.f32 %v1164, %v956
        %v1197 = vmul.f32 %v1165, %v957
        %v1198 = vmul.f32 %v1166, %v958
        %v1199 = vmul.f32 %v1167, %v959
        %v1200 = vmul.f32 %v1168, %v960
        %v1201 = vmul.f32 %v1169, %v961
        %v1202 = vmul.f32 %v1170, %v962
        %v1203 = vmul.f32 %v1171, %v963
        %v1204 = vmul.f32 %v1172, %v964
        %v1205 = vmul.f32 %v1173, %v965
        %v1206 = vmul.f32 %v1174, %v966
        %v1207 = vadd.f32 %v1175, %v1191
        %v1208 = vadd.f32 %v1176, %v1192
        %v1209 = vadd.f32 %v1177, %v1193
        %v1210 = vadd.f32 %v1178, %v1194
        %v1211 = vadd.f32 %v1179, %v1195
        %v1212 = vadd.f32 %v1180, %v1196
        %v1213 = vadd.f32 %v1181, %v1197
        %v1214 = vadd.f32 %v1182, %v1198
        %v1215 = vadd.f32 %v1183, %v1199
        %v1216 = vadd.f32 %v1184, %v1200
        %v1217 = vadd.f32 %v1185, %v1201
        %v1218 = vadd.f32 %v1186, %v1202
        %v1219 = vadd.f32 %v1187, %v1203
        %v1220 = vadd.f32 %v1188, %v1204
        %v1221 = vadd.f32 %v1189, %v1205
        %v1222 = vadd.f32 %v1190, %v1206
        %v1223 = vsel %vm711, -0.0041776816, 0.0094388705
        %v1224 = vsel %vm712, -0.0041776816, 0.0094388705
        %v1225 = vsel %vm713, -0.0041776816, 0.0094388705
        %v1226 = vsel %vm714, -0.0041776816, 0.0094388705
        %v1227 = vsel %vm715, -0.0041776816, 0.0094388705
        %v1228 = vsel %vm716, -0.0041776816, 0.0094388705
        %v1229 = vsel %vm717, -0.0041776816, 0.0094388705
        %v1230 = vsel %vm718, -0.0041776816, 0.0094388705
        %v1231 = vsel %vm719, -0.0041776816, 0.0094388705
        %v1232 = vsel %vm720, -0.0041776816, 0.0094388705
        %v1233 = vsel %vm721, -0.0041776816, 0.0094388705
        %v1234 = vsel %vm722, -0.0041776816, 0.0094388705
        %v1235 = vsel %vm723, -0.0041776816, 0.0094388705
        %v1236 = vsel %vm724, -0.0041776816, 0.0094388705
        %v1237 = vsel %vm725, -0.0041776816, 0.0094388705
        %v1238 = vsel %vm726, -0.0041776816, 0.0094388705
        %v1239 = vmul.f32 %v1207, %v951
        %v1240 = vmul.f32 %v1208, %v952
        %v1241 = vmul.f32 %v1209, %v953
        %v1242 = vmul.f32 %v1210, %v954
        %v1243 = vmul.f32 %v1211, %v955
        %v1244 = vmul.f32 %v1212, %v956
        %v1245 = vmul.f32 %v1213, %v957
        %v1246 = vmul.f32 %v1214, %v958
        %v1247 = vmul.f32 %v1215, %v959
        %v1248 = vmul.f32 %v1216, %v960
        %v1249 = vmul.f32 %v1217, %v961
        %v1250 = vmul.f32 %v1218, %v962
        %v1251 = vmul.f32 %v1219, %v963
        %v1252 = vmul.f32 %v1220, %v964
        %v1253 = vmul.f32 %v1221, %v965
        %v1254 = vmul.f32 %v1222, %v966
        %v1255 = vadd.f32 %v1223, %v1239
        %v1256 = vadd.f32 %v1224, %v1240
        %v1257 = vadd.f32 %v1225, %v1241
        %v1258 = vadd.f32 %v1226, %v1242
        %v1259 = vadd.f32 %v1227, %v1243
        %v1260 = vadd.f32 %v1228, %v1244
        %v1261 = vadd.f32 %v1229, %v1245
        %v1262 = vadd.f32 %v1230, %v1246
        %v1263 = vadd.f32 %v1231, %v1247
        %v1264 = vadd.f32 %v1232, %v1248
        %v1265 = vadd.f32 %v1233, %v1249
        %v1266 = vadd.f32 %v1234, %v1250
        %v1267 = vadd.f32 %v1235, %v1251
        %v1268 = vadd.f32 %v1236, %v1252
        %v1269 = vadd.f32 %v1237, %v1253
        %v1270 = vadd.f32 %v1238, %v1254
        %v1271 = vsel %vm711, 0.24664073, 1.001674
        %v1272 = vsel %vm712, 0.24664073, 1.001674
        %v1273 = vsel %vm713, 0.24664073, 1.001674
        %v1274 = vsel %vm714, 0.24664073, 1.001674
        %v1275 = vsel %vm715, 0.24664073, 1.001674
        %v1276 = vsel %vm716, 0.24664073, 1.001674
        %v1277 = vsel %vm717, 0.24664073, 1.001674
        %v1278 = vsel %vm718, 0.24664073, 1.001674
        %v1279 = vsel %vm719, 0.24664073, 1.001674
        %v1280 = vsel %vm720, 0.24664073, 1.001674
        %v1281 = vsel %vm721, 0.24664073, 1.001674
        %v1282 = vsel %vm722, 0.24664073, 1.001674
        %v1283 = vsel %vm723, 0.24664073, 1.001674
        %v1284 = vsel %vm724, 0.24664073, 1.001674
        %v1285 = vsel %vm725, 0.24664073, 1.001674
        %v1286 = vsel %vm726, 0.24664073, 1.001674
        %v1287 = vmul.f32 %v1255, %v951
        %v1288 = vmul.f32 %v1256, %v952
        %v1289 = vmul.f32 %v1257, %v953
        %v1290 = vmul.f32 %v1258, %v954
        %v1291 = vmul.f32 %v1259, %v955
        %v1292 = vmul.f32 %v1260, %v956
        %v1293 = vmul.f32 %v1261, %v957
        %v1294 = vmul.f32 %v1262, %v958
        %v1295 = vmul.f32 %v1263, %v959
        %v1296 = vmul.f32 %v1264, %v960
        %v1297 = vmul.f32 %v1265, %v961
        %v1298 = vmul.f32 %v1266, %v962
        %v1299 = vmul.f32 %v1267, %v963
        %v1300 = vmul.f32 %v1268, %v964
        %v1301 = vmul.f32 %v1269, %v965
        %v1302 = vmul.f32 %v1270, %v966
        %v1303 = vadd.f32 %v1271, %v1287
        %v1304 = vadd.f32 %v1272, %v1288
        %v1305 = vadd.f32 %v1273, %v1289
        %v1306 = vadd.f32 %v1274, %v1290
        %v1307 = vadd.f32 %v1275, %v1291
        %v1308 = vadd.f32 %v1276, %v1292
        %v1309 = vadd.f32 %v1277, %v1293
        %v1310 = vadd.f32 %v1278, %v1294
        %v1311 = vadd.f32 %v1279, %v1295
        %v1312 = vadd.f32 %v1280, %v1296
        %v1313 = vadd.f32 %v1281, %v1297
        %v1314 = vadd.f32 %v1282, %v1298
        %v1315 = vadd.f32 %v1283, %v1299
        %v1316 = vadd.f32 %v1284, %v1300
        %v1317 = vadd.f32 %v1285, %v1301
        %v1318 = vadd.f32 %v1286, %v1302
        %v1319 = vsel %vm711, 1.5014094, 2.8329768
        %v1320 = vsel %vm712, 1.5014094, 2.8329768
        %v1321 = vsel %vm713, 1.5014094, 2.8329768
        %v1322 = vsel %vm714, 1.5014094, 2.8329768
        %v1323 = vsel %vm715, 1.5014094, 2.8329768
        %v1324 = vsel %vm716, 1.5014094, 2.8329768
        %v1325 = vsel %vm717, 1.5014094, 2.8329768
        %v1326 = vsel %vm718, 1.5014094, 2.8329768
        %v1327 = vsel %vm719, 1.5014094, 2.8329768
        %v1328 = vsel %vm720, 1.5014094, 2.8329768
        %v1329 = vsel %vm721, 1.5014094, 2.8329768
        %v1330 = vsel %vm722, 1.5014094, 2.8329768
        %v1331 = vsel %vm723, 1.5014094, 2.8329768
        %v1332 = vsel %vm724, 1.5014094, 2.8329768
        %v1333 = vsel %vm725, 1.5014094, 2.8329768
        %v1334 = vsel %vm726, 1.5014094, 2.8329768
        %v1335 = vmul.f32 %v1303, %v951
        %v1336 = vmul.f32 %v1304, %v952
        %v1337 = vmul.f32 %v1305, %v953
        %v1338 = vmul.f32 %v1306, %v954
        %v1339 = vmul.f32 %v1307, %v955
        %v1340 = vmul.f32 %v1308, %v956
        %v1341 = vmul.f32 %v1309, %v957
        %v1342 = vmul.f32 %v1310, %v958
        %v1343 = vmul.f32 %v1311, %v959
        %v1344 = vmul.f32 %v1312, %v960
        %v1345 = vmul.f32 %v1313, %v961
        %v1346 = vmul.f32 %v1314, %v962
        %v1347 = vmul.f32 %v1315, %v963
        %v1348 = vmul.f32 %v1316, %v964
        %v1349 = vmul.f32 %v1317, %v965
        %v1350 = vmul.f32 %v1318, %v966
        %v1351 = vadd.f32 %v1319, %v1335
        %v1352 = vadd.f32 %v1320, %v1336
        %v1353 = vadd.f32 %v1321, %v1337
        %v1354 = vadd.f32 %v1322, %v1338
        %v1355 = vadd.f32 %v1323, %v1339
        %v1356 = vadd.f32 %v1324, %v1340
        %v1357 = vadd.f32 %v1325, %v1341
        %v1358 = vadd.f32 %v1326, %v1342
        %v1359 = vadd.f32 %v1327, %v1343
        %v1360 = vadd.f32 %v1328, %v1344
        %v1361 = vadd.f32 %v1329, %v1345
        %v1362 = vadd.f32 %v1330, %v1346
        %v1363 = vadd.f32 %v1331, %v1347
        %v1364 = vadd.f32 %v1332, %v1348
        %v1365 = vadd.f32 %v1333, %v1349
        %v1366 = vadd.f32 %v1334, %v1350
        %v1367 = vand.u32 2147483647, %v503
        %v1368 = vand.u32 2147483647, %v504
        %v1369 = vand.u32 2147483647, %v505
        %v1370 = vand.u32 2147483647, %v506
        %v1371 = vand.u32 2147483647, %v507
        %v1372 = vand.u32 2147483647, %v508
        %v1373 = vand.u32 2147483647, %v509
        %v1374 = vand.u32 2147483647, %v510
        %v1375 = vand.u32 2147483647, %v511
        %v1376 = vand.u32 2147483647, %v512
        %v1377 = vand.u32 2147483647, %v513
        %v1378 = vand.u32 2147483647, %v514
        %v1379 = vand.u32 2147483647, %v515
        %v1380 = vand.u32 2147483647, %v516
        %v1381 = vand.u32 2147483647, %v517
        %v1382 = vand.u32 2147483647, %v518
        %vm1383 = vcmp.eq.f32.partialorder %v1367, 1.0
        %vm1384 = vcmp.eq.f32.partialorder %v1368, 1.0
        %vm1385 = vcmp.eq.f32.partialorder %v1369, 1.0
        %vm1386 = vcmp.eq.f32.partialorder %v1370, 1.0
        %vm1387 = vcmp.eq.f32.partialorder %v1371, 1.0
        %vm1388 = vcmp.eq.f32.partialorder %v1372, 1.0
        %vm1389 = vcmp.eq.f32.partialorder %v1373, 1.0
        %vm1390 = vcmp.eq.f32.partialorder %v1374, 1.0
        %vm1391 = vcmp.eq.f32.partialorder %v1375, 1.0
        %vm1392 = vcmp.eq.f32.partialorder %v1376, 1.0
        %vm1393 = vcmp.eq.f32.partialorder %v1377, 1.0
        %vm1394 = vcmp.eq.f32.partialorder %v1378, 1.0
        %vm1395 = vcmp.eq.f32.partialorder %v1379, 1.0
        %vm1396 = vcmp.eq.f32.partialorder %v1380, 1.0
        %vm1397 = vcmp.eq.f32.partialorder %v1381, 1.0
        %vm1398 = vcmp.eq.f32.partialorder %v1382, 1.0
        %v1399 = vmul.f32 %v503, inf
        %v1400 = vmul.f32 %v504, inf
        %v1401 = vmul.f32 %v505, inf
        %v1402 = vmul.f32 %v506, inf
        %v1403 = vmul.f32 %v507, inf
        %v1404 = vmul.f32 %v508, inf
        %v1405 = vmul.f32 %v509, inf
        %v1406 = vmul.f32 %v510, inf
        %v1407 = vmul.f32 %v511, inf
        %v1408 = vmul.f32 %v512, inf
        %v1409 = vmul.f32 %v513, inf
        %v1410 = vmul.f32 %v514, inf
        %v1411 = vmul.f32 %v515, inf
        %v1412 = vmul.f32 %v516, inf
        %v1413 = vmul.f32 %v517, inf
        %v1414 = vmul.f32 %v518, inf
        %v1415 = vmul.f32 %v1351, %v503
        %v1416 = vmul.f32 %v1352, %v504
        %v1417 = vmul.f32 %v1353, %v505
        %v1418 = vmul.f32 %v1354, %v506
        %v1419 = vmul.f32 %v1355, %v507
        %v1420 = vmul.f32 %v1356, %v508
        %v1421 = vmul.f32 %v1357, %v509
        %v1422 = vmul.f32 %v1358, %v510
        %v1423 = vmul.f32 %v1359, %v511
        %v1424 = vmul.f32 %v1360, %v512
        %v1425 = vmul.f32 %v1361, %v513
        %v1426 = vmul.f32 %v1362, %v514
        %v1427 = vmul.f32 %v1363, %v515
        %v1428 = vmul.f32 %v1364, %v516
        %v1429 = vmul.f32 %v1365, %v517
        %v1430 = vmul.f32 %v1366, %v518
        %v1431 = vsel %vm1383, %v1399, %v1415
        %v1432 = vsel %vm1384, %v1400, %v1416
        %v1433 = vsel %vm1385, %v1401, %v1417
        %v1434 = vsel %vm1386, %v1402, %v1418
        %v1435 = vsel %vm1387, %v1403, %v1419
        %v1436 = vsel %vm1388, %v1404, %v1420
        %v1437 = vsel %vm1389, %v1405, %v1421
        %v1438 = vsel %vm1390, %v1406, %v1422
        %v1439 = vsel %vm1391, %v1407, %v1423
        %v1440 = vsel %vm1392, %v1408, %v1424
        %v1441 = vsel %vm1393, %v1409, %v1425
        %v1442 = vsel %vm1394, %v1410, %v1426
        %v1443 = vsel %vm1395, %v1411, %v1427
        %v1444 = vsel %vm1396, %v1412, %v1428
        %v1445 = vsel %vm1397, %v1413, %v1429
        %v1446 = vsel %vm1398, %v1414, %v1430
        %v1447 = vmul.f32 %v1431, 1.4142135
        %v1448 = vmul.f32 %v1432, 1.4142135
        %v1449 = vmul.f32 %v1433, 1.4142135
        %v1450 = vmul.f32 %v1434, 1.4142135
        %v1451 = vmul.f32 %v1435, 1.4142135
        %v1452 = vmul.f32 %v1436, 1.4142135
        %v1453 = vmul.f32 %v1437, 1.4142135
        %v1454 = vmul.f32 %v1438, 1.4142135
        %v1455 = vmul.f32 %v1439, 1.4142135
        %v1456 = vmul.f32 %v1440, 1.4142135
        %v1457 = vmul.f32 %v1441, 1.4142135
        %v1458 = vmul.f32 %v1442, 1.4142135
        %v1459 = vmul.f32 %v1443, 1.4142135
        %v1460 = vmul.f32 %v1444, 1.4142135
        %v1461 = vmul.f32 %v1445, 1.4142135
        %v1462 = vmul.f32 %v1446, 1.4142135
        %v1463 = vmul.f32 %v375, %v1447
        %v1464 = vmul.f32 %v376, %v1448
        %v1465 = vmul.f32 %v377, %v1449
        %v1466 = vmul.f32 %v378, %v1450
        %v1467 = vmul.f32 %v379, %v1451
        %v1468 = vmul.f32 %v380, %v1452
        %v1469 = vmul.f32 %v381, %v1453
        %v1470 = vmul.f32 %v382, %v1454
        %v1471 = vmul.f32 %v383, %v1455
        %v1472 = vmul.f32 %v384, %v1456
        %v1473 = vmul.f32 %v385, %v1457
        %v1474 = vmul.f32 %v386, %v1458
        %v1475 = vmul.f32 %v387, %v1459
        %v1476 = vmul.f32 %v388, %v1460
        %v1477 = vmul.f32 %v389, %v1461
        %v1478 = vmul.f32 %v390, %v1462
        %1479 = vmatpush.msra.mxu0 %v1478
        %1480 = vmatpush.msra.mxu0 %v1477
        %1481 = vmatpush.msra.mxu0 %v1476
        %1482 = vmatpush.msra.mxu0 %v1475
        %1483 = vmatpush.msra.mxu0 %v1474
        %1484 = vmatpush.msra.mxu0 %v1473
        %1485 = vmatpush.msra.mxu0 %v1472
        %1486 = vmatpush.msra.mxu0 %v1471
        %1487 = vmatpush.msra.mxu0 %v1470
        %1488 = vmatpush.msra.mxu0 %v1469
        %1489 = vmatpush.msra.mxu0 %v1468
        %1490 = vmatpush.msra.mxu0 %v1467
        %1491 = vmatpush.msra.mxu0 %v1466
        %1492 = vmatpush.msra.mxu0 %v1465
        %1493 = vmatpush.msra.mxu0 %v1464
        %1494 = vmatpush.msra.mxu0 %v1463
        %1495 = vmatmul.f32.gmra.mxu0 %v374
        %v1496 = vpop.f32.mrf.mxu0
        %v1497 = vadd.f32 0.0, %v1496
        %1498 = vdwg.mxu0
        %v1499 = vld [vmem:[#allocation2] sm:$0xff]
        %v1500 = vmul.f32 %v1497, %v1499
        %1501 = vst [vmem:[%s176] sm:$0xff] %v1500
        %s1502 = sand.u32 %s89, 1
        %s1503 = scalar_lea.sflag [#allocation7], %s1502
        %s1504 = sand.u32 %s89, 1
        %s1505 = smul.addr %s1504, 8
        %s1506 = scalar_lea.vmem [#allocation10], %s1505
        // Predicated region
        $region41: #{tpu_custom_call.1} parent=27 // pred_check
          %p1507 = pneg %p99
        $region42: #{tpu_custom_call.1} parent=27 // pred_check_branch
          %1509 = sbr.rel (%p1507) target = $region44
        $region43: #{tpu_custom_call.1} parent=27 // pred_region
          %1511 = vsyncadd %s1503, 0
          %s1512 = sadd.s32 %s24, %s25
          %s1513 = smul.addr %s1512, 8
          %s1514 = scalar_lea.hbm %s3, %s1513
          %s1516 = sshll.u32 %s1506, 4
          %s1517 = int_to_ptr.vmem [resolvable:$true] %s1516
          %s1518 = sshll.u32 %s1514, 4
          %s1519 = int_to_ptr.hbm [resolvable:$true] %s1518
          %1521 = dma.vmem_to_hbm [thread:$0]  %s1517, 128, %s1519, %s1503
        $region44: #{tpu_custom_call.1} parent=27 // pred_fallthru
          _
      $region28: #{tpu_custom_call.1} parent=5 // pred_fallthru
        _
      %p1522 = scmp.le.s32.totalorder 2, %s15
      // Predicated region
      $region45: #{tpu_custom_call.1} parent=5 // pred_check
        %p1523 = pneg %p1522
      $region46: #{tpu_custom_call.1} parent=5 // pred_check_branch
        %1525 = sbr.rel (%p1523) target = $region48
      $region47: #{tpu_custom_call.1} parent=5 // pred_region
        %s1526 = ssub.s32 %s15, 2
        // Predicated region
        $region49: #{tpu_custom_call.1} parent=47 // pred_check
          %p1527 = pneg %p105
        $region50: #{tpu_custom_call.1} parent=47 // pred_check_branch
          %1529 = sbr.rel (%p1527) target = $region52
        $region51: #{tpu_custom_call.1} parent=47 // pred_region
          %s1530 = sand.u32 %s90, 1
          %s1531 = scalar_lea.sflag [#allocation7], %s1530
          %s1532 = sand.u32 %s90, 1
          %s1533 = smul.addr %s1532, 8
          %s1534 = scalar_lea.vmem [#allocation10], %s1533
          %1536 = dma.done %s1531, 128
        $region52: #{tpu_custom_call.1} parent=47 // pred_fallthru
          _
      $region48: #{tpu_custom_call.1} parent=5 // pred_fallthru
        _
    $region6: #{tpu_custom_call.1} parent=1 // loop_footer
      %s19 = sadd.s32 1, %s15
    $region7: #{tpu_custom_call.1} parent=1 // loop_footer_branch
      %14 = sbr.rel target = $region3
    $region8: #{tpu_custom_call.1} parent=1 // loop_exit
      _
    %1537 = vsyncpa [#allocation6], 1
    %s1538 = scalar_lea.sflag [#allocation6], 1
    %1539 = vsyncpa %s1538, 1
    %1540 = vsyncpa [#allocation9], 1
    %1541 = vsyncpa [#allocation7], 1
    %s1542 = scalar_lea.sflag [#allocation7], 1
    %1543 = vsyncpa %s1542, 1

// kernel: tpu_custom_call.1
$region0: #{tpu_custom_call.1}
  #allocation0 [shape = 'u32[]', space=smem, size = 0x4, offset = 0x4, fixed_abs, tag = 'smem constant byte address 0x4 - core index']
  #allocation1 [shape = 'u32[72,128]{1,0:T(1,128)}', space=vmem, size = 0x9000, scoped, tag = 'internal scratch']
  #allocation2 [shape = 'f32[8,256]{1,0:T(8,128)}', space=vmem, size = 0x2000, scoped, tag = 'scratch operand']
  %s0 = inlined_call_operand.hbm [shape: f32[8,784], index: 0, kind: input, shape index: {}]
  %s1 = inlined_call_operand.hbm [shape: f32[784,256], index: 1, kind: input, shape index: {}]
  %s2 = inlined_call_operand.hbm [shape: f32[1,784,256], index: 2, kind: input, shape index: {}]
  %s3 = inlined_call_operand.hbm [shape: f32[1,8,256], index: 3, kind: output, shape index: {}]
  %s4 = sld [smem:[#allocation0]]
  $region38: #{tpu_custom_call.1} parent=0
    _
  %s6 = ssub.s32 1, %s4
  %s7 = scalar_select 0, %s6, %s4
  $region1: #{tpu_custom_call.1} parent=0
    #allocation3 [shape = 'u8[28672]{0}', space=vmem, size = 0x7000, scoped, tag = 'input window, operand 0, single buffered']
    #allocation4 [shape = 's32[1]{0}', space=sflag, size = 0x4, scoped, tag = 'scoped memory for tpu_custom_call.1']
    #allocation5 [shape = 's32[1]{0}', space=sflag, size = 0x4, scoped, tag = 'scoped memory for tpu_custom_call.1']
    #allocation6 [shape = 'u8[802816]{0}', space=vmem, size = 0xc4000, scoped, tag = 'input window, operand 1, single buffered']
    #allocation7 [shape = 's32[1]{0}', space=sflag, size = 0x4, scoped, tag = 'scoped memory for tpu_custom_call.1']
    #allocation8 [shape = 'u8[802816]{0}', space=vmem, size = 0xc4000, scoped, tag = 'input window, operand 2, single buffered']
    #allocation9 [shape = 'u8[8192]{0}', space=vmem, size = 0x2000, scoped, tag = 'output window, operand 0, single buffered']
    %8 = vsyncpa [#allocation4], 0
    %9 = vsyncpa [#allocation7], 0
    %10 = vsyncpa [#allocation5], 0
    // Predicated region
    $region2: #{tpu_custom_call.1} parent=1 // pred_check
      _
    $region3: #{tpu_custom_call.1} parent=1 // pred_check_branch
      %12 = sbr.rel (0) target = $region5
    $region4: #{tpu_custom_call.1} parent=1 // pred_region
      %14 = vsyncadd [#allocation4], 0
      %s16 = sshll.u32 %s0, 4
      %s17 = int_to_ptr.hbm [resolvable:$true] %s16
      %s18 = sshll.u32 [#allocation3], 4
      %s19 = int_to_ptr.vmem [resolvable:$true] %s18
      %21 = dma.hbm_to_vmem [thread:$0]  %s17, 896, %s19, [#allocation4]
    $region5: #{tpu_custom_call.1} parent=1 // pred_fallthru
      _
    // Predicated region
    $region6: #{tpu_custom_call.1} parent=1 // pred_check
      _
    $region7: #{tpu_custom_call.1} parent=1 // pred_check_branch
      %23 = sbr.rel (0) target = $region9
    $region8: #{tpu_custom_call.1} parent=1 // pred_region
      %25 = vsyncadd [#allocation7], 0
      %s26 = sshll.u32 %s1, 4
      %s27 = int_to_ptr.hbm [resolvable:$true] %s26
      %s28 = sshll.u32 [#allocation6], 4
      %s29 = int_to_ptr.vmem [resolvable:$true] %s28
      %34 = dma.hbm_to_vmem [thread:$0]  %s27, 25088, %s29, [#allocation7], 256, 256, 16
    $region9: #{tpu_custom_call.1} parent=1 // pred_fallthru
      _
    // Predicated region
    $region10: #{tpu_custom_call.1} parent=1 // pred_check
      _
    $region11: #{tpu_custom_call.1} parent=1 // pred_check_branch
      %36 = sbr.rel (0) target = $region13
    $region12: #{tpu_custom_call.1} parent=1 // pred_region
      %38 = vsyncadd [#allocation7], 0
      %s39 = sshll.u32 %s2, 4
      %s40 = int_to_ptr.hbm [resolvable:$true] %s39
      %s41 = sshll.u32 [#allocation8], 4
      %s42 = int_to_ptr.vmem [resolvable:$true] %s41
      %47 = dma.hbm_to_vmem [thread:$0]  %s40, 25088, %s42, [#allocation7], 256, 256, 16
    $region13: #{tpu_custom_call.1} parent=1 // pred_fallthru
      _
    // Predicated region
    $region14: #{tpu_custom_call.1} parent=1 // pred_check
      _
    $region15: #{tpu_custom_call.1} parent=1 // pred_check_branch
      %49 = sbr.rel (0) target = $region17
    $region16: #{tpu_custom_call.1} parent=1 // pred_region
      %51 = dma.done [#allocation4], 896
    $region17: #{tpu_custom_call.1} parent=1 // pred_fallthru
      _
    // Predicated region
    $region18: #{tpu_custom_call.1} parent=1 // pred_check
      _
    $region19: #{tpu_custom_call.1} parent=1 // pred_check_branch
      %53 = sbr.rel (0) target = $region21
    $region20: #{tpu_custom_call.1} parent=1 // pred_region
      %55 = dma.done [#allocation7], 25088
    $region21: #{tpu_custom_call.1} parent=1 // pred_fallthru
      _
    // Predicated region
    $region22: #{tpu_custom_call.1} parent=1 // pred_check
      _
    $region23: #{tpu_custom_call.1} parent=1 // pred_check_branch
      %57 = sbr.rel (0) target = $region25
    $region24: #{tpu_custom_call.1} parent=1 // pred_region
      %59 = dma.done [#allocation7], 25088
    $region25: #{tpu_custom_call.1} parent=1 // pred_fallthru
      _
    %p60 = scmp.eq.s32.totalorder 0, 0
    // Predicated region
    $region26: #{tpu_custom_call.1} parent=1 // pred_check
      %p61 = pneg %p60
    $region27: #{tpu_custom_call.1} parent=1 // pred_check_branch
      %63 = sbr.rel (%p61) target = $region29
    $region28: #{tpu_custom_call.1} parent=1 // pred_region
      %v64 = vld [vmem:[#allocation3] sm:$0xff]
      %v65 = vld [vmem:[#allocation3 + $0x8] sm:$0xff]
      %v66 = vld [vmem:[#allocation3 + $0x10] sm:$0xff]
      %v67 = vld [vmem:[#allocation3 + $0x18] sm:$0xff]
      %v68 = vld [vmem:[#allocation3 + $0x20] sm:$0xff]
      %v69 = vld [vmem:[#allocation3 + $0x28] sm:$0xff]
      %v70 = vld [vmem:[#allocation3 + $0x30] sm:$0xff]
      %v71 = vld [vmem:[#allocation6] sm:$0xff]
      %v72 = vld [vmem:[#allocation6 + $0x8] sm:$0xff]
      %v73 = vld [vmem:[#allocation6 + $0x10] sm:$0xff]
      %v74 = vld [vmem:[#allocation6 + $0x18] sm:$0xff]
      %v75 = vld [vmem:[#allocation6 + $0x20] sm:$0xff]
      %v76 = vld [vmem:[#allocation6 + $0x28] sm:$0xff]
      %v77 = vld [vmem:[#allocation6 + $0x30] sm:$0xff]
      %v78 = vld [vmem:[#allocation6 + $0x38] sm:$0xff]
      %v79 = vld [vmem:[#allocation6 + $0x40] sm:$0xff]
      %v80 = vld [vmem:[#allocation6 + $0x48] sm:$0xff]
      %v81 = vld [vmem:[#allocation6 + $0x50] sm:$0xff]
      %v82 = vld [vmem:[#allocation6 + $0x58] sm:$0xff]
      %v83 = vld [vmem:[#allocation6 + $0x60] sm:$0xff]
      %v84 = vld [vmem:[#allocation6 + $0x68] sm:$0xff]
      %v85 = vld [vmem:[#allocation6 + $0x70] sm:$0xff]
      %v86 = vld [vmem:[#allocation6 + $0x78] sm:$0xff]
      %v87 = vld [vmem:[#allocation6 + $0x80] sm:$0xff]
      %v88 = vld [vmem:[#allocation6 + $0x88] sm:$0xff]
      %v89 = vld [vmem:[#allocation6 + $0x90] sm:$0xff]
      %v90 = vld [vmem:[#allocation6 + $0x98] sm:$0xff]
      %v91 = vld [vmem:[#allocation6 + $0xa0] sm:$0xff]
      %v92 = vld [vmem:[#allocation6 + $0xa8] sm:$0xff]
      %v93 = vld [vmem:[#allocation6 + $0xb0] sm:$0xff]
      %v94 = vld [vmem:[#allocation6 + $0xb8] sm:$0xff]
      %v95 = vld [vmem:[#allocation6 + $0xc0] sm:$0xff]
      %v96 = vld [vmem:[#allocation6 + $0xc8] sm:$0xff]
      %v97 = vld [vmem:[#allocation6 + $0xd0] sm:$0xff]
      %v98 = vld [vmem:[#allocation6 + $0xd8] sm:$0xff]
      %v99 = vld [vmem:[#allocation6 + $0xe0] sm:$0xff]
      %v100 = vld [vmem:[#allocation6 + $0xe8] sm:$0xff]
      %v101 = vld [vmem:[#allocation6 + $0xf0] sm:$0xff]
      %v102 = vld [vmem:[#allocation6 + $0xf8] sm:$0xff]
      %v103 = vld [vmem:[#allocation6 + $0x100] sm:$0xff]
      %v104 = vld [vmem:[#allocation6 + $0x108] sm:$0xff]
      %v105 = vld [vmem:[#allocation6 + $0x110] sm:$0xff]
      %v106 = vld [vmem:[#allocation6 + $0x118] sm:$0xff]
      %v107 = vld [vmem:[#allocation6 + $0x120] sm:$0xff]
      %v108 = vld [vmem:[#allocation6 + $0x128] sm:$0xff]
      %v109 = vld [vmem:[#allocation6 + $0x130] sm:$0xff]
      %v110 = vld [vmem:[#allocation6 + $0x138] sm:$0xff]
      %v111 = vld [vmem:[#allocation6 + $0x140] sm:$0xff]
      %v112 = vld [vmem:[#allocation6 + $0x148] sm:$0xff]
      %v113 = vld [vmem:[#allocation6 + $0x150] sm:$0xff]
      %v114 = vld [vmem:[#allocation6 + $0x158] sm:$0xff]
      %v115 = vld [vmem:[#allocation6 + $0x160] sm:$0xff]
      %v116 = vld [vmem:[#allocation6 + $0x168] sm:$0xff]
      %v117 = vld [vmem:[#allocation6 + $0x170] sm:$0xff]
      %v118 = vld [vmem:[#allocation6 + $0x178] sm:$0xff]
      %v119 = vld [vmem:[#allocation6 + $0x180] sm:$0xff]
      %v120 = vld [vmem:[#allocation6 + $0x188] sm:$0xff]
      %v121 = vld [vmem:[#allocation6 + $0x190] sm:$0xff]
      %v122 = vld [vmem:[#allocation6 + $0x198] sm:$0xff]
      %v123 = vld [vmem:[#allocation6 + $0x1a0] sm:$0xff]
      %v124 = vld [vmem:[#allocation6 + $0x1a8] sm:$0xff]
      %v125 = vld [vmem:[#allocation6 + $0x1b0] sm:$0xff]
      %v126 = vld [vmem:[#allocation6 + $0x1b8] sm:$0xff]
      %v127 = vld [vmem:[#allocation6 + $0x1c0] sm:$0xff]
      %v128 = vld [vmem:[#allocation6 + $0x1c8] sm:$0xff]
      %v129 = vld [vmem:[#allocation6 + $0x1d0] sm:$0xff]
      %v130 = vld [vmem:[#allocation6 + $0x1d8] sm:$0xff]
      %v131 = vld [vmem:[#allocation6 + $0x1e0] sm:$0xff]
      %v132 = vld [vmem:[#allocation6 + $0x1e8] sm:$0xff]
      %v133 = vld [vmem:[#allocation6 + $0x1f0] sm:$0xff]
      %v134 = vld [vmem:[#allocation6 + $0x1f8] sm:$0xff]
      %v135 = vld [vmem:[#allocation6 + $0x200] sm:$0xff]
      %v136 = vld [vmem:[#allocation6 + $0x208] sm:$0xff]
      %v137 = vld [vmem:[#allocation6 + $0x210] sm:$0xff]
      %v138 = vld [vmem:[#allocation6 + $0x218] sm:$0xff]
      %v139 = vld [vmem:[#allocation6 + $0x220] sm:$0xff]
      %v140 = vld [vmem:[#allocation6 + $0x228] sm:$0xff]
      %v141 = vld [vmem:[#allocation6 + $0x230] sm:$0xff]
      %v142 = vld [vmem:[#allocation6 + $0x238] sm:$0xff]
      %v143 = vld [vmem:[#allocation6 + $0x240] sm:$0xff]
      %v144 = vld [vmem:[#allocation6 + $0x248] sm:$0xff]
      %v145 = vld [vmem:[#allocation6 + $0x250] sm:$0xff]
      %v146 = vld [vmem:[#allocation6 + $0x258] sm:$0xff]
      %v147 = vld [vmem:[#allocation6 + $0x260] sm:$0xff]
      %v148 = vld [vmem:[#allocation6 + $0x268] sm:$0xff]
      %v149 = vld [vmem:[#allocation6 + $0x270] sm:$0xff]
      %v150 = vld [vmem:[#allocation6 + $0x278] sm:$0xff]
      %v151 = vld [vmem:[#allocation6 + $0x280] sm:$0xff]
      %v152 = vld [vmem:[#allocation6 + $0x288] sm:$0xff]
      %v153 = vld [vmem:[#allocation6 + $0x290] sm:$0xff]
      %v154 = vld [vmem:[#allocation6 + $0x298] sm:$0xff]
      %v155 = vld [vmem:[#allocation6 + $0x2a0] sm:$0xff]
      %v156 = vld [vmem:[#allocation6 + $0x2a8] sm:$0xff]
      %v157 = vld [vmem:[#allocation6 + $0x2b0] sm:$0xff]
      %v158 = vld [vmem:[#allocation6 + $0x2b8] sm:$0xff]
      %v159 = vld [vmem:[#allocation6 + $0x2c0] sm:$0xff]
      %v160 = vld [vmem:[#allocation6 + $0x2c8] sm:$0xff]
      %v161 = vld [vmem:[#allocation6 + $0x2d0] sm:$0xff]
      %v162 = vld [vmem:[#allocation6 + $0x2d8] sm:$0xff]
      %v163 = vld [vmem:[#allocation6 + $0x2e0] sm:$0xff]
      %v164 = vld [vmem:[#allocation6 + $0x2e8] sm:$0xff]
      %v165 = vld [vmem:[#allocation6 + $0x2f0] sm:$0xff]
      %v166 = vld [vmem:[#allocation6 + $0x2f8] sm:$0xff]
      %v167 = vld [vmem:[#allocation6 + $0x300] sm:$0xff]
      %v168 = vld [vmem:[#allocation6 + $0x308] sm:$0xff]
      %v169 = vld [vmem:[#allocation6 + $0x310] sm:$0xff]
      %v170 = vld [vmem:[#allocation6 + $0x318] sm:$0xff]
      %v171 = vld [vmem:[#allocation6 + $0x320] sm:$0xff]
      %v172 = vld [vmem:[#allocation6 + $0x328] sm:$0xff]
      %v173 = vld [vmem:[#allocation6 + $0x330] sm:$0xff]
      %v174 = vld [vmem:[#allocation6 + $0x338] sm:$0xff]
      %v175 = vld [vmem:[#allocation6 + $0x340] sm:$0xff]
      %v176 = vld [vmem:[#allocation6 + $0x348] sm:$0xff]
      %v177 = vld [vmem:[#allocation6 + $0x350] sm:$0xff]
      %v178 = vld [vmem:[#allocation6 + $0x358] sm:$0xff]
      %v179 = vld [vmem:[#allocation6 + $0x360] sm:$0xff]
      %v180 = vld [vmem:[#allocation6 + $0x368] sm:$0xff]
      %v181 = vld [vmem:[#allocation6 + $0x370] sm:$0xff]
      %v182 = vld [vmem:[#allocation6 + $0x378] sm:$0xff]
      %v183 = vld [vmem:[#allocation6 + $0x380] sm:$0xff]
      %v184 = vld [vmem:[#allocation6 + $0x388] sm:$0xff]
      %v185 = vld [vmem:[#allocation6 + $0x390] sm:$0xff]
      %v186 = vld [vmem:[#allocation6 + $0x398] sm:$0xff]
      %v187 = vld [vmem:[#allocation6 + $0x3a0] sm:$0xff]
      %v188 = vld [vmem:[#allocation6 + $0x3a8] sm:$0xff]
      %v189 = vld [vmem:[#allocation6 + $0x3b0] sm:$0xff]
      %v190 = vld [vmem:[#allocation6 + $0x3b8] sm:$0xff]
      %v191 = vld [vmem:[#allocation6 + $0x3c0] sm:$0xff]
      %v192 = vld [vmem:[#allocation6 + $0x3c8] sm:$0xff]
      %v193 = vld [vmem:[#allocation6 + $0x3d0] sm:$0xff]
      %v194 = vld [vmem:[#allocation6 + $0x3d8] sm:$0xff]
      %v195 = vld [vmem:[#allocation6 + $0x3e0] sm:$0xff]
      %v196 = vld [vmem:[#allocation6 + $0x3e8] sm:$0xff]
      %v197 = vld [vmem:[#allocation6 + $0x3f0] sm:$0xff]
      %v198 = vld [vmem:[#allocation6 + $0x3f8] sm:$0xff]
      %v199 = vld [vmem:[#allocation6 + $0x400] sm:$0xff]
      %v200 = vld [vmem:[#allocation6 + $0x408] sm:$0xff]
      %v201 = vld [vmem:[#allocation6 + $0x410] sm:$0xff]
      %v202 = vld [vmem:[#allocation6 + $0x418] sm:$0xff]
      %v203 = vld [vmem:[#allocation6 + $0x420] sm:$0xff]
      %v204 = vld [vmem:[#allocation6 + $0x428] sm:$0xff]
      %v205 = vld [vmem:[#allocation6 + $0x430] sm:$0xff]
      %v206 = vld [vmem:[#allocation6 + $0x438] sm:$0xff]
      %v207 = vld [vmem:[#allocation6 + $0x440] sm:$0xff]
      %v208 = vld [vmem:[#allocation6 + $0x448] sm:$0xff]
      %v209 = vld [vmem:[#allocation6 + $0x450] sm:$0xff]
      %v210 = vld [vmem:[#allocation6 + $0x458] sm:$0xff]
      %v211 = vld [vmem:[#allocation6 + $0x460] sm:$0xff]
      %v212 = vld [vmem:[#allocation6 + $0x468] sm:$0xff]
      %v213 = vld [vmem:[#allocation6 + $0x470] sm:$0xff]
      %v214 = vld [vmem:[#allocation6 + $0x478] sm:$0xff]
      %v215 = vld [vmem:[#allocation6 + $0x480] sm:$0xff]
      %v216 = vld [vmem:[#allocation6 + $0x488] sm:$0xff]
      %v217 = vld [vmem:[#allocation6 + $0x490] sm:$0xff]
      %v218 = vld [vmem:[#allocation6 + $0x498] sm:$0xff]
      %v219 = vld [vmem:[#allocation6 + $0x4a0] sm:$0xff]
      %v220 = vld [vmem:[#allocation6 + $0x4a8] sm:$0xff]
      %v221 = vld [vmem:[#allocation6 + $0x4b0] sm:$0xff]
      %v222 = vld [vmem:[#allocation6 + $0x4b8] sm:$0xff]
      %v223 = vld [vmem:[#allocation6 + $0x4c0] sm:$0xff]
      %v224 = vld [vmem:[#allocation6 + $0x4c8] sm:$0xff]
      %v225 = vld [vmem:[#allocation6 + $0x4d0] sm:$0xff]
      %v226 = vld [vmem:[#allocation6 + $0x4d8] sm:$0xff]
      %v227 = vld [vmem:[#allocation6 + $0x4e0] sm:$0xff]
      %v228 = vld [vmem:[#allocation6 + $0x4e8] sm:$0xff]
      %v229 = vld [vmem:[#allocation6 + $0x4f0] sm:$0xff]
      %v230 = vld [vmem:[#allocation6 + $0x4f8] sm:$0xff]
      %v231 = vld [vmem:[#allocation6 + $0x500] sm:$0xff]
      %v232 = vld [vmem:[#allocation6 + $0x508] sm:$0xff]
      %v233 = vld [vmem:[#allocation6 + $0x510] sm:$0xff]
      %v234 = vld [vmem:[#allocation6 + $0x518] sm:$0xff]
      %v235 = vld [vmem:[#allocation6 + $0x520] sm:$0xff]
      %v236 = vld [vmem:[#allocation6 + $0x528] sm:$0xff]
      %v237 = vld [vmem:[#allocation6 + $0x530] sm:$0xff]
      %v238 = vld [vmem:[#allocation6 + $0x538] sm:$0xff]
      %v239 = vld [vmem:[#allocation6 + $0x540] sm:$0xff]
      %v240 = vld [vmem:[#allocation6 + $0x548] sm:$0xff]
      %v241 = vld [vmem:[#allocation6 + $0x550] sm:$0xff]
      %v242 = vld [vmem:[#allocation6 + $0x558] sm:$0xff]
      %v243 = vld [vmem:[#allocation6 + $0x560] sm:$0xff]
      %v244 = vld [vmem:[#allocation6 + $0x568] sm:$0xff]
      %v245 = vld [vmem:[#allocation6 + $0x570] sm:$0xff]
      %v246 = vld [vmem:[#allocation6 + $0x578] sm:$0xff]
      %v247 = vld [vmem:[#allocation6 + $0x580] sm:$0xff]
      %v248 = vld [vmem:[#allocation6 + $0x588] sm:$0xff]
      %v249 = vld [vmem:[#allocation6 + $0x590] sm:$0xff]
      %v250 = vld [vmem:[#allocation6 + $0x598] sm:$0xff]
      %v251 = vld [vmem:[#allocation6 + $0x5a0] sm:$0xff]
      %v252 = vld [vmem:[#allocation6 + $0x5a8] sm:$0xff]
      %v253 = vld [vmem:[#allocation6 + $0x5b0] sm:$0xff]
      %v254 = vld [vmem:[#allocation6 + $0x5b8] sm:$0xff]
      %v255 = vld [vmem:[#allocation6 + $0x5c0] sm:$0xff]
      %v256 = vld [vmem:[#allocation6 + $0x5c8] sm:$0xff]
      %v257 = vld [vmem:[#allocation6 + $0x5d0] sm:$0xff]
      %v258 = vld [vmem:[#allocation6 + $0x5d8] sm:$0xff]
      %v259 = vld [vmem:[#allocation6 + $0x5e0] sm:$0xff]
      %v260 = vld [vmem:[#allocation6 + $0x5e8] sm:$0xff]
      %v261 = vld [vmem:[#allocation6 + $0x5f0] sm:$0xff]
      %v262 = vld [vmem:[#allocation6 + $0x5f8] sm:$0xff]
      %v263 = vld [vmem:[#allocation6 + $0x600] sm:$0xff]
      %v264 = vld [vmem:[#allocation6 + $0x608] sm:$0xff]
      %v265 = vld [vmem:[#allocation6 + $0x610] sm:$0xff]
      %v266 = vld [vmem:[#allocation6 + $0x618] sm:$0xff]
      %v267 = vmul.f32 %v64, %v64
      %v268 = vmul.f32 %v65, %v65
      %v269 = vmul.f32 %v66, %v66
      %v270 = vmul.f32 %v67, %v67
      %v271 = vmul.f32 %v68, %v68
      %v272 = vmul.f32 %v69, %v69
      %v273 = vmul.f32 %v70, %v70
      %v274 = vmul.f32 %v71, %v71
      %v275 = vmul.f32 %v72, %v72
      %v276 = vmul.f32 %v73, %v73
      %v277 = vmul.f32 %v74, %v74
      %v278 = vmul.f32 %v75, %v75
      %v279 = vmul.f32 %v76, %v76
      %v280 = vmul.f32 %v77, %v77
      %v281 = vmul.f32 %v78, %v78
      %v282 = vmul.f32 %v79, %v79
      %v283 = vmul.f32 %v80, %v80
      %v284 = vmul.f32 %v81, %v81
      %v285 = vmul.f32 %v82, %v82
      %v286 = vmul.f32 %v83, %v83
      %v287 = vmul.f32 %v84, %v84
      %v288 = vmul.f32 %v85, %v85
      %v289 = vmul.f32 %v86, %v86
      %v290 = vmul.f32 %v87, %v87
      %v291 = vmul.f32 %v88, %v88
      %v292 = vmul.f32 %v89, %v89
      %v293 = vmul.f32 %v90, %v90
      %v294 = vmul.f32 %v91, %v91
      %v295 = vmul.f32 %v92, %v92
      %v296 = vmul.f32 %v93, %v93
      %v297 = vmul.f32 %v94, %v94
      %v298 = vmul.f32 %v95, %v95
      %v299 = vmul.f32 %v96, %v96
      %v300 = vmul.f32 %v97, %v97
      %v301 = vmul.f32 %v98, %v98
      %v302 = vmul.f32 %v99, %v99
      %v303 = vmul.f32 %v100, %v100
      %v304 = vmul.f32 %v101, %v101
      %v305 = vmul.f32 %v102, %v102
      %v306 = vmul.f32 %v103, %v103
      %v307 = vmul.f32 %v104, %v104
      %v308 = vmul.f32 %v105, %v105
      %v309 = vmul.f32 %v106, %v106
      %v310 = vmul.f32 %v107, %v107
      %v311 = vmul.f32 %v108, %v108
      %v312 = vmul.f32 %v109, %v109
      %v313 = vmul.f32 %v110, %v110
      %v314 = vmul.f32 %v111, %v111
      %v315 = vmul.f32 %v112, %v112
      %v316 = vmul.f32 %v113, %v113
      %v317 = vmul.f32 %v114, %v114
      %v318 = vmul.f32 %v115, %v115
      %v319 = vmul.f32 %v116, %v116
      %v320 = vmul.f32 %v117, %v117
      %v321 = vmul.f32 %v118, %v118
      %v322 = vmul.f32 %v119, %v119
      %v323 = vmul.f32 %v120, %v120
      %v324 = vmul.f32 %v121, %v121
      %v325 = vmul.f32 %v122, %v122
      %v326 = vmul.f32 %v123, %v123
      %v327 = vmul.f32 %v124, %v124
      %v328 = vmul.f32 %v125, %v125
      %v329 = vmul.f32 %v126, %v126
      %v330 = vmul.f32 %v127, %v127
      %v331 = vmul.f32 %v128, %v128
      %v332 = vmul.f32 %v129, %v129
      %v333 = vmul.f32 %v130, %v130
      %v334 = vmul.f32 %v131, %v131
      %v335 = vmul.f32 %v132, %v132
      %v336 = vmul.f32 %v133, %v133
      %v337 = vmul.f32 %v134, %v134
      %v338 = vmul.f32 %v135, %v135
      %v339 = vmul.f32 %v136, %v136
      %v340 = vmul.f32 %v137, %v137
      %v341 = vmul.f32 %v138, %v138
      %v342 = vmul.f32 %v139, %v139
      %v343 = vmul.f32 %v140, %v140
      %v344 = vmul.f32 %v141, %v141
      %v345 = vmul.f32 %v142, %v142
      %v346 = vmul.f32 %v143, %v143
      %v347 = vmul.f32 %v144, %v144
      %v348 = vmul.f32 %v145, %v145
      %v349 = vmul.f32 %v146, %v146
      %v350 = vmul.f32 %v147, %v147
      %v351 = vmul.f32 %v148, %v148
      %v352 = vmul.f32 %v149, %v149
      %v353 = vmul.f32 %v150, %v150
      %v354 = vmul.f32 %v151, %v151
      %v355 = vmul.f32 %v152, %v152
      %v356 = vmul.f32 %v153, %v153
      %v357 = vmul.f32 %v154, %v154
      %v358 = vmul.f32 %v155, %v155
      %v359 = vmul.f32 %v156, %v156
      %v360 = vmul.f32 %v157, %v157
      %v361 = vmul.f32 %v158, %v158
      %v362 = vmul.f32 %v159, %v159
      %v363 = vmul.f32 %v160, %v160
      %v364 = vmul.f32 %v161, %v161
      %v365 = vmul.f32 %v162, %v162
      %v366 = vmul.f32 %v163, %v163
      %v367 = vmul.f32 %v164, %v164
      %v368 = vmul.f32 %v165, %v165
      %v369 = vmul.f32 %v166, %v166
      %v370 = vmul.f32 %v167, %v167
      %v371 = vmul.f32 %v168, %v168
      %v372 = vmul.f32 %v169, %v169
      %v373 = vmul.f32 %v170, %v170
      %v374 = vmul.f32 %v171, %v171
      %v375 = vmul.f32 %v172, %v172
      %v376 = vmul.f32 %v173, %v173
      %v377 = vmul.f32 %v174, %v174
      %v378 = vmul.f32 %v175, %v175
      %v379 = vmul.f32 %v176, %v176
      %v380 = vmul.f32 %v177, %v177
      %v381 = vmul.f32 %v178, %v178
      %v382 = vmul.f32 %v179, %v179
      %v383 = vmul.f32 %v180, %v180
      %v384 = vmul.f32 %v181, %v181
      %v385 = vmul.f32 %v182, %v182
      %v386 = vmul.f32 %v183, %v183
      %v387 = vmul.f32 %v184, %v184
      %v388 = vmul.f32 %v185, %v185
      %v389 = vmul.f32 %v186, %v186
      %v390 = vmul.f32 %v187, %v187
      %v391 = vmul.f32 %v188, %v188
      %v392 = vmul.f32 %v189, %v189
      %v393 = vmul.f32 %v190, %v190
      %v394 = vmul.f32 %v191, %v191
      %v395 = vmul.f32 %v192, %v192
      %v396 = vmul.f32 %v193, %v193
      %v397 = vmul.f32 %v194, %v194
      %v398 = vmul.f32 %v195, %v195
      %v399 = vmul.f32 %v196, %v196
      %v400 = vmul.f32 %v197, %v197
      %v401 = vmul.f32 %v198, %v198
      %v402 = vmul.f32 %v199, %v199
      %v403 = vmul.f32 %v200, %v200
      %v404 = vmul.f32 %v201, %v201
      %v405 = vmul.f32 %v202, %v202
      %v406 = vmul.f32 %v203, %v203
      %v407 = vmul.f32 %v204, %v204
      %v408 = vmul.f32 %v205, %v205
      %v409 = vmul.f32 %v206, %v206
      %v410 = vmul.f32 %v207, %v207
      %v411 = vmul.f32 %v208, %v208
      %v412 = vmul.f32 %v209, %v209
      %v413 = vmul.f32 %v210, %v210
      %v414 = vmul.f32 %v211, %v211
      %v415 = vmul.f32 %v212, %v212
      %v416 = vmul.f32 %v213, %v213
      %v417 = vmul.f32 %v214, %v214
      %v418 = vmul.f32 %v215, %v215
      %v419 = vmul.f32 %v216, %v216
      %v420 = vmul.f32 %v217, %v217
      %v421 = vmul.f32 %v218, %v218
      %v422 = vmul.f32 %v219, %v219
      %v423 = vmul.f32 %v220, %v220
      %v424 = vmul.f32 %v221, %v221
      %v425 = vmul.f32 %v222, %v222
      %v426 = vmul.f32 %v223, %v223
      %v427 = vmul.f32 %v224, %v224
      %v428 = vmul.f32 %v225, %v225
      %v429 = vmul.f32 %v226, %v226
      %v430 = vmul.f32 %v227, %v227
      %v431 = vmul.f32 %v228, %v228
      %v432 = vmul.f32 %v229, %v229
      %v433 = vmul.f32 %v230, %v230
      %v434 = vmul.f32 %v231, %v231
      %v435 = vmul.f32 %v232, %v232
      %v436 = vmul.f32 %v233, %v233
      %v437 = vmul.f32 %v234, %v234
      %v438 = vmul.f32 %v235, %v235
      %v439 = vmul.f32 %v236, %v236
      %v440 = vmul.f32 %v237, %v237
      %v441 = vmul.f32 %v238, %v238
      %v442 = vmul.f32 %v239, %v239
      %v443 = vmul.f32 %v240, %v240
      %v444 = vmul.f32 %v241, %v241
      %v445 = vmul.f32 %v242, %v242
      %v446 = vmul.f32 %v243, %v243
      %v447 = vmul.f32 %v244, %v244
      %v448 = vmul.f32 %v245, %v245
      %v449 = vmul.f32 %v246, %v246
      %v450 = vmul.f32 %v247, %v247
      %v451 = vmul.f32 %v248, %v248
      %v452 = vmul.f32 %v249, %v249
      %v453 = vmul.f32 %v250, %v250
      %v454 = vmul.f32 %v251, %v251
      %v455 = vmul.f32 %v252, %v252
      %v456 = vmul.f32 %v253, %v253
      %v457 = vmul.f32 %v254, %v254
      %v458 = vmul.f32 %v255, %v255
      %v459 = vmul.f32 %v256, %v256
      %v460 = vmul.f32 %v257, %v257
      %v461 = vmul.f32 %v258, %v258
      %v462 = vmul.f32 %v259, %v259
      %v463 = vmul.f32 %v260, %v260
      %v464 = vmul.f32 %v261, %v261
      %v465 = vmul.f32 %v262, %v262
      %v466 = vmul.f32 %v263, %v263
      %v467 = vmul.f32 %v264, %v264
      %v468 = vmul.f32 %v265, %v265
      %v469 = vmul.f32 %v266, %v266
      %vm470 = vcmask 130048
      %v472 = vsel %vm470, %v273, 0
      %474 = vmatpush.msra.mxu0 %v304
      %475 = vmatpush.msra.mxu0 %v302
      %476 = vmatpush.msra.mxu0 %v300
      %477 = vmatpush.msra.mxu0 %v298
      %478 = vmatpush.msra.mxu0 %v296
      %479 = vmatpush.msra.mxu0 %v294
      %480 = vmatpush.msra.mxu0 %v292
      %481 = vmatpush.msra.mxu0 %v290
      %482 = vmatpush.msra.mxu0 %v288
      %483 = vmatpush.msra.mxu0 %v286
      %484 = vmatpush.msra.mxu0 %v284
      %485 = vmatpush.msra.mxu0 %v282
      %486 = vmatpush.msra.mxu0 %v280
      %487 = vmatpush.msra.mxu0 %v278
      %488 = vmatpush.msra.mxu0 %v276
      %489 = vmatpush.msra.mxu0 %v274
      %490 = vmatmul.f32.gmra.mxu0 %v267
      %v491 = vpop.f32.mrf.mxu0
      %v492 = vadd.f32 0.0, %v491
      %493 = vdwg.mxu0
      %494 = vmatpush.msra.mxu0 %v336
      %495 = vmatpush.msra.mxu0 %v334
      %496 = vmatpush.msra.mxu0 %v332
      %497 = vmatpush.msra.mxu0 %v330
      %498 = vmatpush.msra.mxu0 %v328
      %499 = vmatpush.msra.mxu0 %v326
      %500 = vmatpush.msra.mxu0 %v324
      %501 = vmatpush.msra.mxu0 %v322
      %502 = vmatpush.msra.mxu0 %v320
      %503 = vmatpush.msra.mxu0 %v318
      %504 = vmatpush.msra.mxu0 %v316
      %505 = vmatpush.msra.mxu0 %v314
      %506 = vmatpush.msra.mxu0 %v312
      %507 = vmatpush.msra.mxu0 %v310
      %508 = vmatpush.msra.mxu0 %v308
      %509 = vmatpush.msra.mxu0 %v306
      %510 = vmatmul.f32.gmra.mxu0 %v268
      %v511 = vpop.f32.mrf.mxu0
      %v512 = vadd.f32 %v492, %v511
      %513 = vdwg.mxu0
      %514 = vmatpush.msra.mxu0 %v368
      %515 = vmatpush.msra.mxu0 %v366
      %516 = vmatpush.msra.mxu0 %v364
      %517 = vmatpush.msra.mxu0 %v362
      %518 = vmatpush.msra.mxu0 %v360
      %519 = vmatpush.msra.mxu0 %v358
      %520 = vmatpush.msra.mxu0 %v356
      %521 = vmatpush.msra.mxu0 %v354
      %522 = vmatpush.msra.mxu0 %v352
      %523 = vmatpush.msra.mxu0 %v350
      %524 = vmatpush.msra.mxu0 %v348
      %525 = vmatpush.msra.mxu0 %v346
      %526 = vmatpush.msra.mxu0 %v344
      %527 = vmatpush.msra.mxu0 %v342
      %528 = vmatpush.msra.mxu0 %v340
      %529 = vmatpush.msra.mxu0 %v338
      %530 = vmatmul.f32.gmra.mxu0 %v269
      %v531 = vpop.f32.mrf.mxu0
      %v532 = vadd.f32 %v512, %v531
      %533 = vdwg.mxu0
      %534 = vmatpush.msra.mxu0 %v400
      %535 = vmatpush.msra.mxu0 %v398
      %536 = vmatpush.msra.mxu0 %v396
      %537 = vmatpush.msra.mxu0 %v394
      %538 = vmatpush.msra.mxu0 %v392
      %539 = vmatpush.msra.mxu0 %v390
      %540 = vmatpush.msra.mxu0 %v388
      %541 = vmatpush.msra.mxu0 %v386
      %542 = vmatpush.msra.mxu0 %v384
      %543 = vmatpush.msra.mxu0 %v382
      %544 = vmatpush.msra.mxu0 %v380
      %545 = vmatpush.msra.mxu0 %v378
      %546 = vmatpush.msra.mxu0 %v376
      %547 = vmatpush.msra.mxu0 %v374
      %548 = vmatpush.msra.mxu0 %v372
      %549 = vmatpush.msra.mxu0 %v370
      %550 = vmatmul.f32.gmra.mxu0 %v270
      %v551 = vpop.f32.mrf.mxu0
      %v552 = vadd.f32 %v532, %v551
      %553 = vdwg.mxu0
      %554 = vmatpush.msra.mxu0 %v432
      %555 = vmatpush.msra.mxu0 %v430
      %556 = vmatpush.msra.mxu0 %v428
      %557 = vmatpush.msra.mxu0 %v426
      %558 = vmatpush.msra.mxu0 %v424
      %559 = vmatpush.msra.mxu0 %v422
      %560 = vmatpush.msra.mxu0 %v420
      %561 = vmatpush.msra.mxu0 %v418
      %562 = vmatpush.msra.mxu0 %v416
      %563 = vmatpush.msra.mxu0 %v414
      %564 = vmatpush.msra.mxu0 %v412
      %565 = vmatpush.msra.mxu0 %v410
      %566 = vmatpush.msra.mxu0 %v408
      %567 = vmatpush.msra.mxu0 %v406
      %568 = vmatpush.msra.mxu0 %v404
      %569 = vmatpush.msra.mxu0 %v402
      %570 = vmatmul.f32.gmra.mxu0 %v271
      %v571 = vpop.f32.mrf.mxu0
      %v572 = vadd.f32 %v552, %v571
      %573 = vdwg.mxu0
      %574 = vmatpush.msra.mxu0 %v464
      %575 = vmatpush.msra.mxu0 %v462
      %576 = vmatpush.msra.mxu0 %v460
      %577 = vmatpush.msra.mxu0 %v458
      %578 = vmatpush.msra.mxu0 %v456
      %579 = vmatpush.msra.mxu0 %v454
      %580 = vmatpush.msra.mxu0 %v452
      %581 = vmatpush.msra.mxu0 %v450
      %582 = vmatpush.msra.mxu0 %v448
      %583 = vmatpush.msra.mxu0 %v446
      %584 = vmatpush.msra.mxu0 %v444
      %585 = vmatpush.msra.mxu0 %v442
      %586 = vmatpush.msra.mxu0 %v440
      %587 = vmatpush.msra.mxu0 %v438
      %588 = vmatpush.msra.mxu0 %v436
      %589 = vmatpush.msra.mxu0 %v434
      %590 = vmatmul.f32.gmra.mxu0 %v272
      %v591 = vpop.f32.mrf.mxu0
      %v592 = vadd.f32 %v572, %v591
      %593 = vdwg.mxu0
      %594 = vmatpush.msra.mxu0 0.0
      %595 = vmatpush.msra.mxu0 0.0
      %596 = vmatpush.msra.mxu0 0.0
      %597 = vmatpush.msra.mxu0 0.0
      %598 = vmatpush.msra.mxu0 0.0
      %599 = vmatpush.msra.mxu0 0.0
      %600 = vmatpush.msra.mxu0 0.0
      %601 = vmatpush.msra.mxu0 0.0
      %602 = vmatpush.msra.mxu0 0.0
      %603 = vmatpush.msra.mxu0 0.0
      %604 = vmatpush.msra.mxu0 0.0
      %605 = vmatpush.msra.mxu0 0.0
      %606 = vmatpush.msra.mxu0 0.0
      %607 = vmatpush.msra.mxu0 0.0
      %608 = vmatpush.msra.mxu0 %v468
      %609 = vmatpush.msra.mxu0 %v466
      %610 = vmatmul.f32.gmra.mxu0 %v472
      %v611 = vpop.f32.mrf.mxu0
      %v612 = vadd.f32 %v592, %v611
      %613 = vdwg.mxu0
      %614 = vmatpush.msra.mxu0 %v305
      %615 = vmatpush.msra.mxu0 %v303
      %616 = vmatpush.msra.mxu0 %v301
      %617 = vmatpush.msra.mxu0 %v299
      %618 = vmatpush.msra.mxu0 %v297
      %619 = vmatpush.msra.mxu0 %v295
      %620 = vmatpush.msra.mxu0 %v293
      %621 = vmatpush.msra.mxu0 %v291
      %622 = vmatpush.msra.mxu0 %v289
      %623 = vmatpush.msra.mxu0 %v287
      %624 = vmatpush.msra.mxu0 %v285
      %625 = vmatpush.msra.mxu0 %v283
      %626 = vmatpush.msra.mxu0 %v281
      %627 = vmatpush.msra.mxu0 %v279
      %628 = vmatpush.msra.mxu0 %v277
      %629 = vmatpush.msra.mxu0 %v275
      %630 = vmatmul.f32.gmra.mxu0 %v267
      %v631 = vpop.f32.mrf.mxu0
      %v632 = vadd.f32 0.0, %v631
      %633 = vdwg.mxu0
      %634 = vmatpush.msra.mxu0 %v337
      %635 = vmatpush.msra.mxu0 %v335
      %636 = vmatpush.msra.mxu0 %v333
      %637 = vmatpush.msra.mxu0 %v331
      %638 = vmatpush.msra.mxu0 %v329
      %639 = vmatpush.msra.mxu0 %v327
      %640 = vmatpush.msra.mxu0 %v325
      %641 = vmatpush.msra.mxu0 %v323
      %642 = vmatpush.msra.mxu0 %v321
      %643 = vmatpush.msra.mxu0 %v319
      %644 = vmatpush.msra.mxu0 %v317
      %645 = vmatpush.msra.mxu0 %v315
      %646 = vmatpush.msra.mxu0 %v313
      %647 = vmatpush.msra.mxu0 %v311
      %648 = vmatpush.msra.mxu0 %v309
      %649 = vmatpush.msra.mxu0 %v307
      %650 = vmatmul.f32.gmra.mxu0 %v268
      %v651 = vpop.f32.mrf.mxu0
      %v652 = vadd.f32 %v632, %v651
      %653 = vdwg.mxu0
      %654 = vmatpush.msra.mxu0 %v369
      %655 = vmatpush.msra.mxu0 %v367
      %656 = vmatpush.msra.mxu0 %v365
      %657 = vmatpush.msra.mxu0 %v363
      %658 = vmatpush.msra.mxu0 %v361
      %659 = vmatpush.msra.mxu0 %v359
      %660 = vmatpush.msra.mxu0 %v357
      %661 = vmatpush.msra.mxu0 %v355
      %662 = vmatpush.msra.mxu0 %v353
      %663 = vmatpush.msra.mxu0 %v351
      %664 = vmatpush.msra.mxu0 %v349
      %665 = vmatpush.msra.mxu0 %v347
      %666 = vmatpush.msra.mxu0 %v345
      %667 = vmatpush.msra.mxu0 %v343
      %668 = vmatpush.msra.mxu0 %v341
      %669 = vmatpush.msra.mxu0 %v339
      %670 = vmatmul.f32.gmra.mxu0 %v269
      %v671 = vpop.f32.mrf.mxu0
      %v672 = vadd.f32 %v652, %v671
      %673 = vdwg.mxu0
      %674 = vmatpush.msra.mxu0 %v401
      %675 = vmatpush.msra.mxu0 %v399
      %676 = vmatpush.msra.mxu0 %v397
      %677 = vmatpush.msra.mxu0 %v395
      %678 = vmatpush.msra.mxu0 %v393
      %679 = vmatpush.msra.mxu0 %v391
      %680 = vmatpush.msra.mxu0 %v389
      %681 = vmatpush.msra.mxu0 %v387
      %682 = vmatpush.msra.mxu0 %v385
      %683 = vmatpush.msra.mxu0 %v383
      %684 = vmatpush.msra.mxu0 %v381
      %685 = vmatpush.msra.mxu0 %v379
      %686 = vmatpush.msra.mxu0 %v377
      %687 = vmatpush.msra.mxu0 %v375
      %688 = vmatpush.msra.mxu0 %v373
      %689 = vmatpush.msra.mxu0 %v371
      %690 = vmatmul.f32.gmra.mxu0 %v270
      %v691 = vpop.f32.mrf.mxu0
      %v692 = vadd.f32 %v672, %v691
      %693 = vdwg.mxu0
      %694 = vmatpush.msra.mxu0 %v433
      %695 = vmatpush.msra.mxu0 %v431
      %696 = vmatpush.msra.mxu0 %v429
      %697 = vmatpush.msra.mxu0 %v427
      %698 = vmatpush.msra.mxu0 %v425
      %699 = vmatpush.msra.mxu0 %v423
      %700 = vmatpush.msra.mxu0 %v421
      %701 = vmatpush.msra.mxu0 %v419
      %702 = vmatpush.msra.mxu0 %v417
      %703 = vmatpush.msra.mxu0 %v415
      %704 = vmatpush.msra.mxu0 %v413
      %705 = vmatpush.msra.mxu0 %v411
      %706 = vmatpush.msra.mxu0 %v409
      %707 = vmatpush.msra.mxu0 %v407
      %708 = vmatpush.msra.mxu0 %v405
      %709 = vmatpush.msra.mxu0 %v403
      %710 = vmatmul.f32.gmra.mxu0 %v271
      %v711 = vpop.f32.mrf.mxu0
      %v712 = vadd.f32 %v692, %v711
      %713 = vdwg.mxu0
      %714 = vmatpush.msra.mxu0 %v465
      %715 = vmatpush.msra.mxu0 %v463
      %716 = vmatpush.msra.mxu0 %v461
      %717 = vmatpush.msra.mxu0 %v459
      %718 = vmatpush.msra.mxu0 %v457
      %719 = vmatpush.msra.mxu0 %v455
      %720 = vmatpush.msra.mxu0 %v453
      %721 = vmatpush.msra.mxu0 %v451
      %722 = vmatpush.msra.mxu0 %v449
      %723 = vmatpush.msra.mxu0 %v447
      %724 = vmatpush.msra.mxu0 %v445
      %725 = vmatpush.msra.mxu0 %v443
      %726 = vmatpush.msra.mxu0 %v441
      %727 = vmatpush.msra.mxu0 %v439
      %728 = vmatpush.msra.mxu0 %v437
      %729 = vmatpush.msra.mxu0 %v435
      %730 = vmatmul.f32.gmra.mxu0 %v272
      %v731 = vpop.f32.mrf.mxu0
      %v732 = vadd.f32 %v712, %v731
      %733 = vdwg.mxu0
      %734 = vmatpush.msra.mxu0 0.0
      %735 = vmatpush.msra.mxu0 0.0
      %736 = vmatpush.msra.mxu0 0.0
      %737 = vmatpush.msra.mxu0 0.0
      %738 = vmatpush.msra.mxu0 0.0
      %739 = vmatpush.msra.mxu0 0.0
      %740 = vmatpush.msra.mxu0 0.0
      %741 = vmatpush.msra.mxu0 0.0
      %742 = vmatpush.msra.mxu0 0.0
      %743 = vmatpush.msra.mxu0 0.0
      %744 = vmatpush.msra.mxu0 0.0
      %745 = vmatpush.msra.mxu0 0.0
      %746 = vmatpush.msra.mxu0 0.0
      %747 = vmatpush.msra.mxu0 0.0
      %748 = vmatpush.msra.mxu0 %v469
      %749 = vmatpush.msra.mxu0 %v467
      %750 = vmatmul.f32.gmra.mxu0 %v472
      %v751 = vpop.f32.mrf.mxu0
      %v752 = vadd.f32 %v732, %v751
      %753 = vdwg.mxu0
      %v754 = vrsqrt.pop %v612
      %v755 = vmul.f32 %v754, %v612
      %v756 = vmul.f32 %v755, %v754
      %v757 = vmul.f32 0.5, %v756
      %v758 = vsub.f32 1.5, %v757
      %v759 = vmul.f32 %v754, %v758
      %vm760 = vweird.f32 %v612
      %vm761 = vweird.f32 %v754
      %vm762 = vmor %vm760, %vm761
      %v763 = vsel %vm762, %v754, %v759
      %v764 = vrsqrt.pop %v752
      %v765 = vmul.f32 %v764, %v752
      %v766 = vmul.f32 %v765, %v764
      %v767 = vmul.f32 0.5, %v766
      %v768 = vsub.f32 1.5, %v767
      %v769 = vmul.f32 %v764, %v768
      %vm770 = vweird.f32 %v752
      %vm771 = vweird.f32 %v764
      %vm772 = vmor %vm770, %vm771
      %v773 = vsel %vm772, %v764, %v769
      %774 = vst [vmem:[#allocation2] sm:$0xff] %v763
      %775 = vst [vmem:[#allocation2 + $0x8] sm:$0xff] %v773
    $region29: #{tpu_custom_call.1} parent=1 // pred_fallthru
      _
    %v776 = vld [vmem:[#allocation3] sm:$0xff]
    %v777 = vld [vmem:[#allocation3 + $0x8] sm:$0xff]
    %v778 = vld [vmem:[#allocation3 + $0x10] sm:$0xff]
    %v779 = vld [vmem:[#allocation3 + $0x18] sm:$0xff]
    %v780 = vld [vmem:[#allocation3 + $0x20] sm:$0xff]
    %v781 = vld [vmem:[#allocation3 + $0x28] sm:$0xff]
    %v782 = vld [vmem:[#allocation3 + $0x30] sm:$0xff]
    %v783 = vld [vmem:[#allocation6] sm:$0xff]
    %v784 = vld [vmem:[#allocation6 + $0x8] sm:$0xff]
    %v785 = vld [vmem:[#allocation6 + $0x10] sm:$0xff]
    %v786 = vld [vmem:[#allocation6 + $0x18] sm:$0xff]
    %v787 = vld [vmem:[#allocation6 + $0x20] sm:$0xff]
    %v788 = vld [vmem:[#allocation6 + $0x28] sm:$0xff]
    %v789 = vld [vmem:[#allocation6 + $0x30] sm:$0xff]
    %v790 = vld [vmem:[#allocation6 + $0x38] sm:$0xff]
    %v791 = vld [vmem:[#allocation6 + $0x40] sm:$0xff]
    %v792 = vld [vmem:[#allocation6 + $0x48] sm:$0xff]
    %v793 = vld [vmem:[#allocation6 + $0x50] sm:$0xff]
    %v794 = vld [vmem:[#allocation6 + $0x58] sm:$0xff]
    %v795 = vld [vmem:[#allocation6 + $0x60] sm:$0xff]
    %v796 = vld [vmem:[#allocation6 + $0x68] sm:$0xff]
    %v797 = vld [vmem:[#allocation6 + $0x70] sm:$0xff]
    %v798 = vld [vmem:[#allocation6 + $0x78] sm:$0xff]
    %v799 = vld [vmem:[#allocation6 + $0x80] sm:$0xff]
    %v800 = vld [vmem:[#allocation6 + $0x88] sm:$0xff]
    %v801 = vld [vmem:[#allocation6 + $0x90] sm:$0xff]
    %v802 = vld [vmem:[#allocation6 + $0x98] sm:$0xff]
    %v803 = vld [vmem:[#allocation6 + $0xa0] sm:$0xff]
    %v804 = vld [vmem:[#allocation6 + $0xa8] sm:$0xff]
    %v805 = vld [vmem:[#allocation6 + $0xb0] sm:$0xff]
    %v806 = vld [vmem:[#allocation6 + $0xb8] sm:$0xff]
    %v807 = vld [vmem:[#allocation6 + $0xc0] sm:$0xff]
    %v808 = vld [vmem:[#allocation6 + $0xc8] sm:$0xff]
    %v809 = vld [vmem:[#allocation6 + $0xd0] sm:$0xff]
    %v810 = vld [vmem:[#allocation6 + $0xd8] sm:$0xff]
    %v811 = vld [vmem:[#allocation6 + $0xe0] sm:$0xff]
    %v812 = vld [vmem:[#allocation6 + $0xe8] sm:$0xff]
    %v813 = vld [vmem:[#allocation6 + $0xf0] sm:$0xff]
    %v814 = vld [vmem:[#allocation6 + $0xf8] sm:$0xff]
    %v815 = vld [vmem:[#allocation6 + $0x100] sm:$0xff]
    %v816 = vld [vmem:[#allocation6 + $0x108] sm:$0xff]
    %v817 = vld [vmem:[#allocation6 + $0x110] sm:$0xff]
    %v818 = vld [vmem:[#allocation6 + $0x118] sm:$0xff]
    %v819 = vld [vmem:[#allocation6 + $0x120] sm:$0xff]
    %v820 = vld [vmem:[#allocation6 + $0x128] sm:$0xff]
    %v821 = vld [vmem:[#allocation6 + $0x130] sm:$0xff]
    %v822 = vld [vmem:[#allocation6 + $0x138] sm:$0xff]
    %v823 = vld [vmem:[#allocation6 + $0x140] sm:$0xff]
    %v824 = vld [vmem:[#allocation6 + $0x148] sm:$0xff]
    %v825 = vld [vmem:[#allocation6 + $0x150] sm:$0xff]
    %v826 = vld [vmem:[#allocation6 + $0x158] sm:$0xff]
    %v827 = vld [vmem:[#allocation6 + $0x160] sm:$0xff]
    %v828 = vld [vmem:[#allocation6 + $0x168] sm:$0xff]
    %v829 = vld [vmem:[#allocation6 + $0x170] sm:$0xff]
    %v830 = vld [vmem:[#allocation6 + $0x178] sm:$0xff]
    %v831 = vld [vmem:[#allocation6 + $0x180] sm:$0xff]
    %v832 = vld [vmem:[#allocation6 + $0x188] sm:$0xff]
    %v833 = vld [vmem:[#allocation6 + $0x190] sm:$0xff]
    %v834 = vld [vmem:[#allocation6 + $0x198] sm:$0xff]
    %v835 = vld [vmem:[#allocation6 + $0x1a0] sm:$0xff]
    %v836 = vld [vmem:[#allocation6 + $0x1a8] sm:$0xff]
    %v837 = vld [vmem:[#allocation6 + $0x1b0] sm:$0xff]
    %v838 = vld [vmem:[#allocation6 + $0x1b8] sm:$0xff]
    %v839 = vld [vmem:[#allocation6 + $0x1c0] sm:$0xff]
    %v840 = vld [vmem:[#allocation6 + $0x1c8] sm:$0xff]
    %v841 = vld [vmem:[#allocation6 + $0x1d0] sm:$0xff]
    %v842 = vld [vmem:[#allocation6 + $0x1d8] sm:$0xff]
    %v843 = vld [vmem:[#allocation6 + $0x1e0] sm:$0xff]
    %v844 = vld [vmem:[#allocation6 + $0x1e8] sm:$0xff]
    %v845 = vld [vmem:[#allocation6 + $0x1f0] sm:$0xff]
    %v846 = vld [vmem:[#allocation6 + $0x1f8] sm:$0xff]
    %v847 = vld [vmem:[#allocation6 + $0x200] sm:$0xff]
    %v848 = vld [vmem:[#allocation6 + $0x208] sm:$0xff]
    %v849 = vld [vmem:[#allocation6 + $0x210] sm:$0xff]
    %v850 = vld [vmem:[#allocation6 + $0x218] sm:$0xff]
    %v851 = vld [vmem:[#allocation6 + $0x220] sm:$0xff]
    %v852 = vld [vmem:[#allocation6 + $0x228] sm:$0xff]
    %v853 = vld [vmem:[#allocation6 + $0x230] sm:$0xff]
    %v854 = vld [vmem:[#allocation6 + $0x238] sm:$0xff]
    %v855 = vld [vmem:[#allocation6 + $0x240] sm:$0xff]
    %v856 = vld [vmem:[#allocation6 + $0x248] sm:$0xff]
    %v857 = vld [vmem:[#allocation6 + $0x250] sm:$0xff]
    %v858 = vld [vmem:[#allocation6 + $0x258] sm:$0xff]
    %v859 = vld [vmem:[#allocation6 + $0x260] sm:$0xff]
    %v860 = vld [vmem:[#allocation6 + $0x268] sm:$0xff]
    %v861 = vld [vmem:[#allocation6 + $0x270] sm:$0xff]
    %v862 = vld [vmem:[#allocation6 + $0x278] sm:$0xff]
    %v863 = vld [vmem:[#allocation6 + $0x280] sm:$0xff]
    %v864 = vld [vmem:[#allocation6 + $0x288] sm:$0xff]
    %v865 = vld [vmem:[#allocation6 + $0x290] sm:$0xff]
    %v866 = vld [vmem:[#allocation6 + $0x298] sm:$0xff]
    %v867 = vld [vmem:[#allocation6 + $0x2a0] sm:$0xff]
    %v868 = vld [vmem:[#allocation6 + $0x2a8] sm:$0xff]
    %v869 = vld [vmem:[#allocation6 + $0x2b0] sm:$0xff]
    %v870 = vld [vmem:[#allocation6 + $0x2b8] sm:$0xff]
    %v871 = vld [vmem:[#allocation6 + $0x2c0] sm:$0xff]
    %v872 = vld [vmem:[#allocation6 + $0x2c8] sm:$0xff]
    %v873 = vld [vmem:[#allocation6 + $0x2d0] sm:$0xff]
    %v874 = vld [vmem:[#allocation6 + $0x2d8] sm:$0xff]
    %v875 = vld [vmem:[#allocation6 + $0x2e0] sm:$0xff]
    %v876 = vld [vmem:[#allocation6 + $0x2e8] sm:$0xff]
    %v877 = vld [vmem:[#allocation6 + $0x2f0] sm:$0xff]
    %v878 = vld [vmem:[#allocation6 + $0x2f8] sm:$0xff]
    %v879 = vld [vmem:[#allocation6 + $0x300] sm:$0xff]
    %v880 = vld [vmem:[#allocation6 + $0x308] sm:$0xff]
    %v881 = vld [vmem:[#allocation6 + $0x310] sm:$0xff]
    %v882 = vld [vmem:[#allocation6 + $0x318] sm:$0xff]
    %v883 = vld [vmem:[#allocation6 + $0x320] sm:$0xff]
    %v884 = vld [vmem:[#allocation6 + $0x328] sm:$0xff]
    %v885 = vld [vmem:[#allocation6 + $0x330] sm:$0xff]
    %v886 = vld [vmem:[#allocation6 + $0x338] sm:$0xff]
    %v887 = vld [vmem:[#allocation6 + $0x340] sm:$0xff]
    %v888 = vld [vmem:[#allocation6 + $0x348] sm:$0xff]
    %v889 = vld [vmem:[#allocation6 + $0x350] sm:$0xff]
    %v890 = vld [vmem:[#allocation6 + $0x358] sm:$0xff]
    %v891 = vld [vmem:[#allocation6 + $0x360] sm:$0xff]
    %v892 = vld [vmem:[#allocation6 + $0x368] sm:$0xff]
    %v893 = vld [vmem:[#allocation6 + $0x370] sm:$0xff]
    %v894 = vld [vmem:[#allocation6 + $0x378] sm:$0xff]
    %v895 = vld [vmem:[#allocation6 + $0x380] sm:$0xff]
    %v896 = vld [vmem:[#allocation6 + $0x388] sm:$0xff]
    %v897 = vld [vmem:[#allocation6 + $0x390] sm:$0xff]
    %v898 = vld [vmem:[#allocation6 + $0x398] sm:$0xff]
    %v899 = vld [vmem:[#allocation6 + $0x3a0] sm:$0xff]
    %v900 = vld [vmem:[#allocation6 + $0x3a8] sm:$0xff]
    %v901 = vld [vmem:[#allocation6 + $0x3b0] sm:$0xff]
    %v902 = vld [vmem:[#allocation6 + $0x3b8] sm:$0xff]
    %v903 = vld [vmem:[#allocation6 + $0x3c0] sm:$0xff]
    %v904 = vld [vmem:[#allocation6 + $0x3c8] sm:$0xff]
    %v905 = vld [vmem:[#allocation6 + $0x3d0] sm:$0xff]
    %v906 = vld [vmem:[#allocation6 + $0x3d8] sm:$0xff]
    %v907 = vld [vmem:[#allocation6 + $0x3e0] sm:$0xff]
    %v908 = vld [vmem:[#allocation6 + $0x3e8] sm:$0xff]
    %v909 = vld [vmem:[#allocation6 + $0x3f0] sm:$0xff]
    %v910 = vld [vmem:[#allocation6 + $0x3f8] sm:$0xff]
    %v911 = vld [vmem:[#allocation6 + $0x400] sm:$0xff]
    %v912 = vld [vmem:[#allocation6 + $0x408] sm:$0xff]
    %v913 = vld [vmem:[#allocation6 + $0x410] sm:$0xff]
    %v914 = vld [vmem:[#allocation6 + $0x418] sm:$0xff]
    %v915 = vld [vmem:[#allocation6 + $0x420] sm:$0xff]
    %v916 = vld [vmem:[#allocation6 + $0x428] sm:$0xff]
    %v917 = vld [vmem:[#allocation6 + $0x430] sm:$0xff]
    %v918 = vld [vmem:[#allocation6 + $0x438] sm:$0xff]
    %v919 = vld [vmem:[#allocation6 + $0x440] sm:$0xff]
    %v920 = vld [vmem:[#allocation6 + $0x448] sm:$0xff]
    %v921 = vld [vmem:[#allocation6 + $0x450] sm:$0xff]
    %v922 = vld [vmem:[#allocation6 + $0x458] sm:$0xff]
    %v923 = vld [vmem:[#allocation6 + $0x460] sm:$0xff]
    %v924 = vld [vmem:[#allocation6 + $0x468] sm:$0xff]
    %v925 = vld [vmem:[#allocation6 + $0x470] sm:$0xff]
    %v926 = vld [vmem:[#allocation6 + $0x478] sm:$0xff]
    %v927 = vld [vmem:[#allocation6 + $0x480] sm:$0xff]
    %v928 = vld [vmem:[#allocation6 + $0x488] sm:$0xff]
    %v929 = vld [vmem:[#allocation6 + $0x490] sm:$0xff]
    %v930 = vld [vmem:[#allocation6 + $0x498] sm:$0xff]
    %v931 = vld [vmem:[#allocation6 + $0x4a0] sm:$0xff]
    %v932 = vld [vmem:[#allocation6 + $0x4a8] sm:$0xff]
    %v933 = vld [vmem:[#allocation6 + $0x4b0] sm:$0xff]
    %v934 = vld [vmem:[#allocation6 + $0x4b8] sm:$0xff]
    %v935 = vld [vmem:[#allocation6 + $0x4c0] sm:$0xff]
    %v936 = vld [vmem:[#allocation6 + $0x4c8] sm:$0xff]
    %v937 = vld [vmem:[#allocation6 + $0x4d0] sm:$0xff]
    %v938 = vld [vmem:[#allocation6 + $0x4d8] sm:$0xff]
    %v939 = vld [vmem:[#allocation6 + $0x4e0] sm:$0xff]
    %v940 = vld [vmem:[#allocation6 + $0x4e8] sm:$0xff]
    %v941 = vld [vmem:[#allocation6 + $0x4f0] sm:$0xff]
    %v942 = vld [vmem:[#allocation6 + $0x4f8] sm:$0xff]
    %v943 = vld [vmem:[#allocation6 + $0x500] sm:$0xff]
    %v944 = vld [vmem:[#allocation6 + $0x508] sm:$0xff]
    %v945 = vld [vmem:[#allocation6 + $0x510] sm:$0xff]
    %v946 = vld [vmem:[#allocation6 + $0x518] sm:$0xff]
    %v947 = vld [vmem:[#allocation6 + $0x520] sm:$0xff]
    %v948 = vld [vmem:[#allocation6 + $0x528] sm:$0xff]
    %v949 = vld [vmem:[#allocation6 + $0x530] sm:$0xff]
    %v950 = vld [vmem:[#allocation6 + $0x538] sm:$0xff]
    %v951 = vld [vmem:[#allocation6 + $0x540] sm:$0xff]
    %v952 = vld [vmem:[#allocation6 + $0x548] sm:$0xff]
    %v953 = vld [vmem:[#allocation6 + $0x550] sm:$0xff]
    %v954 = vld [vmem:[#allocation6 + $0x558] sm:$0xff]
    %v955 = vld [vmem:[#allocation6 + $0x560] sm:$0xff]
    %v956 = vld [vmem:[#allocation6 + $0x568] sm:$0xff]
    %v957 = vld [vmem:[#allocation6 + $0x570] sm:$0xff]
    %v958 = vld [vmem:[#allocation6 + $0x578] sm:$0xff]
    %v959 = vld [vmem:[#allocation6 + $0x580] sm:$0xff]
    %v960 = vld [vmem:[#allocation6 + $0x588] sm:$0xff]
    %v961 = vld [vmem:[#allocation6 + $0x590] sm:$0xff]
    %v962 = vld [vmem:[#allocation6 + $0x598] sm:$0xff]
    %v963 = vld [vmem:[#allocation6 + $0x5a0] sm:$0xff]
    %v964 = vld [vmem:[#allocation6 + $0x5a8] sm:$0xff]
    %v965 = vld [vmem:[#allocation6 + $0x5b0] sm:$0xff]
    %v966 = vld [vmem:[#allocation6 + $0x5b8] sm:$0xff]
    %v967 = vld [vmem:[#allocation6 + $0x5c0] sm:$0xff]
    %v968 = vld [vmem:[#allocation6 + $0x5c8] sm:$0xff]
    %v969 = vld [vmem:[#allocation6 + $0x5d0] sm:$0xff]
    %v970 = vld [vmem:[#allocation6 + $0x5d8] sm:$0xff]
    %v971 = vld [vmem:[#allocation6 + $0x5e0] sm:$0xff]
    %v972 = vld [vmem:[#allocation6 + $0x5e8] sm:$0xff]
    %v973 = vld [vmem:[#allocation6 + $0x5f0] sm:$0xff]
    %v974 = vld [vmem:[#allocation6 + $0x5f8] sm:$0xff]
    %v975 = vld [vmem:[#allocation6 + $0x600] sm:$0xff]
    %v976 = vld [vmem:[#allocation6 + $0x608] sm:$0xff]
    %v977 = vld [vmem:[#allocation6 + $0x610] sm:$0xff]
    %v978 = vld [vmem:[#allocation6 + $0x618] sm:$0xff]
    %v979 = vld [vmem:[#allocation8] sm:$0xff]
    %v980 = vld [vmem:[#allocation8 + $0x8] sm:$0xff]
    %v981 = vld [vmem:[#allocation8 + $0x10] sm:$0xff]
    %v982 = vld [vmem:[#allocation8 + $0x18] sm:$0xff]
    %v983 = vld [vmem:[#allocation8 + $0x20] sm:$0xff]
    %v984 = vld [vmem:[#allocation8 + $0x28] sm:$0xff]
    %v985 = vld [vmem:[#allocation8 + $0x30] sm:$0xff]
    %v986 = vld [vmem:[#allocation8 + $0x38] sm:$0xff]
    %v987 = vld [vmem:[#allocation8 + $0x40] sm:$0xff]
    %v988 = vld [vmem:[#allocation8 + $0x48] sm:$0xff]
    %v989 = vld [vmem:[#allocation8 + $0x50] sm:$0xff]
    %v990 = vld [vmem:[#allocation8 + $0x58] sm:$0xff]
    %v991 = vld [vmem:[#allocation8 + $0x60] sm:$0xff]
    %v992 = vld [vmem:[#allocation8 + $0x68] sm:$0xff]
    %v993 = vld [vmem:[#allocation8 + $0x70] sm:$0xff]
    %v994 = vld [vmem:[#allocation8 + $0x78] sm:$0xff]
    %v995 = vld [vmem:[#allocation8 + $0x80] sm:$0xff]
    %v996 = vld [vmem:[#allocation8 + $0x88] sm:$0xff]
    %v997 = vld [vmem:[#allocation8 + $0x90] sm:$0xff]
    %v998 = vld [vmem:[#allocation8 + $0x98] sm:$0xff]
    %v999 = vld [vmem:[#allocation8 + $0xa0] sm:$0xff]
    %v1000 = vld [vmem:[#allocation8 + $0xa8] sm:$0xff]
    %v1001 = vld [vmem:[#allocation8 + $0xb0] sm:$0xff]
    %v1002 = vld [vmem:[#allocation8 + $0xb8] sm:$0xff]
    %v1003 = vld [vmem:[#allocation8 + $0xc0] sm:$0xff]
    %v1004 = vld [vmem:[#allocation8 + $0xc8] sm:$0xff]
    %v1005 = vld [vmem:[#allocation8 + $0xd0] sm:$0xff]
    %v1006 = vld [vmem:[#allocation8 + $0xd8] sm:$0xff]
    %v1007 = vld [vmem:[#allocation8 + $0xe0] sm:$0xff]
    %v1008 = vld [vmem:[#allocation8 + $0xe8] sm:$0xff]
    %v1009 = vld [vmem:[#allocation8 + $0xf0] sm:$0xff]
    %v1010 = vld [vmem:[#allocation8 + $0xf8] sm:$0xff]
    %v1011 = vld [vmem:[#allocation8 + $0x100] sm:$0xff]
    %v1012 = vld [vmem:[#allocation8 + $0x108] sm:$0xff]
    %v1013 = vld [vmem:[#allocation8 + $0x110] sm:$0xff]
    %v1014 = vld [vmem:[#allocation8 + $0x118] sm:$0xff]
    %v1015 = vld [vmem:[#allocation8 + $0x120] sm:$0xff]
    %v1016 = vld [vmem:[#allocation8 + $0x128] sm:$0xff]
    %v1017 = vld [vmem:[#allocation8 + $0x130] sm:$0xff]
    %v1018 = vld [vmem:[#allocation8 + $0x138] sm:$0xff]
    %v1019 = vld [vmem:[#allocation8 + $0x140] sm:$0xff]
    %v1020 = vld [vmem:[#allocation8 + $0x148] sm:$0xff]
    %v1021 = vld [vmem:[#allocation8 + $0x150] sm:$0xff]
    %v1022 = vld [vmem:[#allocation8 + $0x158] sm:$0xff]
    %v1023 = vld [vmem:[#allocation8 + $0x160] sm:$0xff]
    %v1024 = vld [vmem:[#allocation8 + $0x168] sm:$0xff]
    %v1025 = vld [vmem:[#allocation8 + $0x170] sm:$0xff]
    %v1026 = vld [vmem:[#allocation8 + $0x178] sm:$0xff]
    %v1027 = vld [vmem:[#allocation8 + $0x180] sm:$0xff]
    %v1028 = vld [vmem:[#allocation8 + $0x188] sm:$0xff]
    %v1029 = vld [vmem:[#allocation8 + $0x190] sm:$0xff]
    %v1030 = vld [vmem:[#allocation8 + $0x198] sm:$0xff]
    %v1031 = vld [vmem:[#allocation8 + $0x1a0] sm:$0xff]
    %v1032 = vld [vmem:[#allocation8 + $0x1a8] sm:$0xff]
    %v1033 = vld [vmem:[#allocation8 + $0x1b0] sm:$0xff]
    %v1034 = vld [vmem:[#allocation8 + $0x1b8] sm:$0xff]
    %v1035 = vld [vmem:[#allocation8 + $0x1c0] sm:$0xff]
    %v1036 = vld [vmem:[#allocation8 + $0x1c8] sm:$0xff]
    %v1037 = vld [vmem:[#allocation8 + $0x1d0] sm:$0xff]
    %v1038 = vld [vmem:[#allocation8 + $0x1d8] sm:$0xff]
    %v1039 = vld [vmem:[#allocation8 + $0x1e0] sm:$0xff]
    %v1040 = vld [vmem:[#allocation8 + $0x1e8] sm:$0xff]
    %v1041 = vld [vmem:[#allocation8 + $0x1f0] sm:$0xff]
    %v1042 = vld [vmem:[#allocation8 + $0x1f8] sm:$0xff]
    %v1043 = vld [vmem:[#allocation8 + $0x200] sm:$0xff]
    %v1044 = vld [vmem:[#allocation8 + $0x208] sm:$0xff]
    %v1045 = vld [vmem:[#allocation8 + $0x210] sm:$0xff]
    %v1046 = vld [vmem:[#allocation8 + $0x218] sm:$0xff]
    %v1047 = vld [vmem:[#allocation8 + $0x220] sm:$0xff]
    %v1048 = vld [vmem:[#allocation8 + $0x228] sm:$0xff]
    %v1049 = vld [vmem:[#allocation8 + $0x230] sm:$0xff]
    %v1050 = vld [vmem:[#allocation8 + $0x238] sm:$0xff]
    %v1051 = vld [vmem:[#allocation8 + $0x240] sm:$0xff]
    %v1052 = vld [vmem:[#allocation8 + $0x248] sm:$0xff]
    %v1053 = vld [vmem:[#allocation8 + $0x250] sm:$0xff]
    %v1054 = vld [vmem:[#allocation8 + $0x258] sm:$0xff]
    %v1055 = vld [vmem:[#allocation8 + $0x260] sm:$0xff]
    %v1056 = vld [vmem:[#allocation8 + $0x268] sm:$0xff]
    %v1057 = vld [vmem:[#allocation8 + $0x270] sm:$0xff]
    %v1058 = vld [vmem:[#allocation8 + $0x278] sm:$0xff]
    %v1059 = vld [vmem:[#allocation8 + $0x280] sm:$0xff]
    %v1060 = vld [vmem:[#allocation8 + $0x288] sm:$0xff]
    %v1061 = vld [vmem:[#allocation8 + $0x290] sm:$0xff]
    %v1062 = vld [vmem:[#allocation8 + $0x298] sm:$0xff]
    %v1063 = vld [vmem:[#allocation8 + $0x2a0] sm:$0xff]
    %v1064 = vld [vmem:[#allocation8 + $0x2a8] sm:$0xff]
    %v1065 = vld [vmem:[#allocation8 + $0x2b0] sm:$0xff]
    %v1066 = vld [vmem:[#allocation8 + $0x2b8] sm:$0xff]
    %v1067 = vld [vmem:[#allocation8 + $0x2c0] sm:$0xff]
    %v1068 = vld [vmem:[#allocation8 + $0x2c8] sm:$0xff]
    %v1069 = vld [vmem:[#allocation8 + $0x2d0] sm:$0xff]
    %v1070 = vld [vmem:[#allocation8 + $0x2d8] sm:$0xff]
    %v1071 = vld [vmem:[#allocation8 + $0x2e0] sm:$0xff]
    %v1072 = vld [vmem:[#allocation8 + $0x2e8] sm:$0xff]
    %v1073 = vld [vmem:[#allocation8 + $0x2f0] sm:$0xff]
    %v1074 = vld [vmem:[#allocation8 + $0x2f8] sm:$0xff]
    %v1075 = vld [vmem:[#allocation8 + $0x300] sm:$0xff]
    %v1076 = vld [vmem:[#allocation8 + $0x308] sm:$0xff]
    %v1077 = vld [vmem:[#allocation8 + $0x310] sm:$0xff]
    %v1078 = vld [vmem:[#allocation8 + $0x318] sm:$0xff]
    %v1079 = vld [vmem:[#allocation8 + $0x320] sm:$0xff]
    %v1080 = vld [vmem:[#allocation8 + $0x328] sm:$0xff]
    %v1081 = vld [vmem:[#allocation8 + $0x330] sm:$0xff]
    %v1082 = vld [vmem:[#allocation8 + $0x338] sm:$0xff]
    %v1083 = vld [vmem:[#allocation8 + $0x340] sm:$0xff]
    %v1084 = vld [vmem:[#allocation8 + $0x348] sm:$0xff]
    %v1085 = vld [vmem:[#allocation8 + $0x350] sm:$0xff]
    %v1086 = vld [vmem:[#allocation8 + $0x358] sm:$0xff]
    %v1087 = vld [vmem:[#allocation8 + $0x360] sm:$0xff]
    %v1088 = vld [vmem:[#allocation8 + $0x368] sm:$0xff]
    %v1089 = vld [vmem:[#allocation8 + $0x370] sm:$0xff]
    %v1090 = vld [vmem:[#allocation8 + $0x378] sm:$0xff]
    %v1091 = vld [vmem:[#allocation8 + $0x380] sm:$0xff]
    %v1092 = vld [vmem:[#allocation8 + $0x388] sm:$0xff]
    %v1093 = vld [vmem:[#allocation8 + $0x390] sm:$0xff]
    %v1094 = vld [vmem:[#allocation8 + $0x398] sm:$0xff]
    %v1095 = vld [vmem:[#allocation8 + $0x3a0] sm:$0xff]
    %v1096 = vld [vmem:[#allocation8 + $0x3a8] sm:$0xff]
    %v1097 = vld [vmem:[#allocation8 + $0x3b0] sm:$0xff]
    %v1098 = vld [vmem:[#allocation8 + $0x3b8] sm:$0xff]
    %v1099 = vld [vmem:[#allocation8 + $0x3c0] sm:$0xff]
    %v1100 = vld [vmem:[#allocation8 + $0x3c8] sm:$0xff]
    %v1101 = vld [vmem:[#allocation8 + $0x3d0] sm:$0xff]
    %v1102 = vld [vmem:[#allocation8 + $0x3d8] sm:$0xff]
    %v1103 = vld [vmem:[#allocation8 + $0x3e0] sm:$0xff]
    %v1104 = vld [vmem:[#allocation8 + $0x3e8] sm:$0xff]
    %v1105 = vld [vmem:[#allocation8 + $0x3f0] sm:$0xff]
    %v1106 = vld [vmem:[#allocation8 + $0x3f8] sm:$0xff]
    %v1107 = vld [vmem:[#allocation8 + $0x400] sm:$0xff]
    %v1108 = vld [vmem:[#allocation8 + $0x408] sm:$0xff]
    %v1109 = vld [vmem:[#allocation8 + $0x410] sm:$0xff]
    %v1110 = vld [vmem:[#allocation8 + $0x418] sm:$0xff]
    %v1111 = vld [vmem:[#allocation8 + $0x420] sm:$0xff]
    %v1112 = vld [vmem:[#allocation8 + $0x428] sm:$0xff]
    %v1113 = vld [vmem:[#allocation8 + $0x430] sm:$0xff]
    %v1114 = vld [vmem:[#allocation8 + $0x438] sm:$0xff]
    %v1115 = vld [vmem:[#allocation8 + $0x440] sm:$0xff]
    %v1116 = vld [vmem:[#allocation8 + $0x448] sm:$0xff]
    %v1117 = vld [vmem:[#allocation8 + $0x450] sm:$0xff]
    %v1118 = vld [vmem:[#allocation8 + $0x458] sm:$0xff]
    %v1119 = vld [vmem:[#allocation8 + $0x460] sm:$0xff]
    %v1120 = vld [vmem:[#allocation8 + $0x468] sm:$0xff]
    %v1121 = vld [vmem:[#allocation8 + $0x470] sm:$0xff]
    %v1122 = vld [vmem:[#allocation8 + $0x478] sm:$0xff]
    %v1123 = vld [vmem:[#allocation8 + $0x480] sm:$0xff]
    %v1124 = vld [vmem:[#allocation8 + $0x488] sm:$0xff]
    %v1125 = vld [vmem:[#allocation8 + $0x490] sm:$0xff]
    %v1126 = vld [vmem:[#allocation8 + $0x498] sm:$0xff]
    %v1127 = vld [vmem:[#allocation8 + $0x4a0] sm:$0xff]
    %v1128 = vld [vmem:[#allocation8 + $0x4a8] sm:$0xff]
    %v1129 = vld [vmem:[#allocation8 + $0x4b0] sm:$0xff]
    %v1130 = vld [vmem:[#allocation8 + $0x4b8] sm:$0xff]
    %v1131 = vld [vmem:[#allocation8 + $0x4c0] sm:$0xff]
    %v1132 = vld [vmem:[#allocation8 + $0x4c8] sm:$0xff]
    %v1133 = vld [vmem:[#allocation8 + $0x4d0] sm:$0xff]
    %v1134 = vld [vmem:[#allocation8 + $0x4d8] sm:$0xff]
    %v1135 = vld [vmem:[#allocation8 + $0x4e0] sm:$0xff]
    %v1136 = vld [vmem:[#allocation8 + $0x4e8] sm:$0xff]
    %v1137 = vld [vmem:[#allocation8 + $0x4f0] sm:$0xff]
    %v1138 = vld [vmem:[#allocation8 + $0x4f8] sm:$0xff]
    %v1139 = vld [vmem:[#allocation8 + $0x500] sm:$0xff]
    %v1140 = vld [vmem:[#allocation8 + $0x508] sm:$0xff]
    %v1141 = vld [vmem:[#allocation8 + $0x510] sm:$0xff]
    %v1142 = vld [vmem:[#allocation8 + $0x518] sm:$0xff]
    %v1143 = vld [vmem:[#allocation8 + $0x520] sm:$0xff]
    %v1144 = vld [vmem:[#allocation8 + $0x528] sm:$0xff]
    %v1145 = vld [vmem:[#allocation8 + $0x530] sm:$0xff]
    %v1146 = vld [vmem:[#allocation8 + $0x538] sm:$0xff]
    %v1147 = vld [vmem:[#allocation8 + $0x540] sm:$0xff]
    %v1148 = vld [vmem:[#allocation8 + $0x548] sm:$0xff]
    %v1149 = vld [vmem:[#allocation8 + $0x550] sm:$0xff]
    %v1150 = vld [vmem:[#allocation8 + $0x558] sm:$0xff]
    %v1151 = vld [vmem:[#allocation8 + $0x560] sm:$0xff]
    %v1152 = vld [vmem:[#allocation8 + $0x568] sm:$0xff]
    %v1153 = vld [vmem:[#allocation8 + $0x570] sm:$0xff]
    %v1154 = vld [vmem:[#allocation8 + $0x578] sm:$0xff]
    %v1155 = vld [vmem:[#allocation8 + $0x580] sm:$0xff]
    %v1156 = vld [vmem:[#allocation8 + $0x588] sm:$0xff]
    %v1157 = vld [vmem:[#allocation8 + $0x590] sm:$0xff]
    %v1158 = vld [vmem:[#allocation8 + $0x598] sm:$0xff]
    %v1159 = vld [vmem:[#allocation8 + $0x5a0] sm:$0xff]
    %v1160 = vld [vmem:[#allocation8 + $0x5a8] sm:$0xff]
    %v1161 = vld [vmem:[#allocation8 + $0x5b0] sm:$0xff]
    %v1162 = vld [vmem:[#allocation8 + $0x5b8] sm:$0xff]
    %v1163 = vld [vmem:[#allocation8 + $0x5c0] sm:$0xff]
    %v1164 = vld [vmem:[#allocation8 + $0x5c8] sm:$0xff]
    %v1165 = vld [vmem:[#allocation8 + $0x5d0] sm:$0xff]
    %v1166 = vld [vmem:[#allocation8 + $0x5d8] sm:$0xff]
    %v1167 = vld [vmem:[#allocation8 + $0x5e0] sm:$0xff]
    %v1168 = vld [vmem:[#allocation8 + $0x5e8] sm:$0xff]
    %v1169 = vld [vmem:[#allocation8 + $0x5f0] sm:$0xff]
    %v1170 = vld [vmem:[#allocation8 + $0x5f8] sm:$0xff]
    %v1171 = vld [vmem:[#allocation8 + $0x600] sm:$0xff]
    %v1172 = vld [vmem:[#allocation8 + $0x608] sm:$0xff]
    %v1173 = vld [vmem:[#allocation8 + $0x610] sm:$0xff]
    %v1174 = vld [vmem:[#allocation8 + $0x618] sm:$0xff]
    %v1175 = vmul.f32 %v783, %v979
    %v1176 = vmul.f32 %v784, %v980
    %v1177 = vmul.f32 %v785, %v981
    %v1178 = vmul.f32 %v786, %v982
    %v1179 = vmul.f32 %v787, %v983
    %v1180 = vmul.f32 %v788, %v984
    %v1181 = vmul.f32 %v789, %v985
    %v1182 = vmul.f32 %v790, %v986
    %v1183 = vmul.f32 %v791, %v987
    %v1184 = vmul.f32 %v792, %v988
    %v1185 = vmul.f32 %v793, %v989
    %v1186 = vmul.f32 %v794, %v990
    %v1187 = vmul.f32 %v795, %v991
    %v1188 = vmul.f32 %v796, %v992
    %v1189 = vmul.f32 %v797, %v993
    %v1190 = vmul.f32 %v798, %v994
    %v1191 = vmul.f32 %v799, %v995
    %v1192 = vmul.f32 %v800, %v996
    %v1193 = vmul.f32 %v801, %v997
    %v1194 = vmul.f32 %v802, %v998
    %v1195 = vmul.f32 %v803, %v999
    %v1196 = vmul.f32 %v804, %v1000
    %v1197 = vmul.f32 %v805, %v1001
    %v1198 = vmul.f32 %v806, %v1002
    %v1199 = vmul.f32 %v807, %v1003
    %v1200 = vmul.f32 %v808, %v1004
    %v1201 = vmul.f32 %v809, %v1005
    %v1202 = vmul.f32 %v810, %v1006
    %v1203 = vmul.f32 %v811, %v1007
    %v1204 = vmul.f32 %v812, %v1008
    %v1205 = vmul.f32 %v813, %v1009
    %v1206 = vmul.f32 %v814, %v1010
    %v1207 = vmul.f32 %v815, %v1011
    %v1208 = vmul.f32 %v816, %v1012
    %v1209 = vmul.f32 %v817, %v1013
    %v1210 = vmul.f32 %v818, %v1014
    %v1211 = vmul.f32 %v819, %v1015
    %v1212 = vmul.f32 %v820, %v1016
    %v1213 = vmul.f32 %v821, %v1017
    %v1214 = vmul.f32 %v822, %v1018
    %v1215 = vmul.f32 %v823, %v1019
    %v1216 = vmul.f32 %v824, %v1020
    %v1217 = vmul.f32 %v825, %v1021
    %v1218 = vmul.f32 %v826, %v1022
    %v1219 = vmul.f32 %v827, %v1023
    %v1220 = vmul.f32 %v828, %v1024
    %v1221 = vmul.f32 %v829, %v1025
    %v1222 = vmul.f32 %v830, %v1026
    %v1223 = vmul.f32 %v831, %v1027
    %v1224 = vmul.f32 %v832, %v1028
    %v1225 = vmul.f32 %v833, %v1029
    %v1226 = vmul.f32 %v834, %v1030
    %v1227 = vmul.f32 %v835, %v1031
    %v1228 = vmul.f32 %v836, %v1032
    %v1229 = vmul.f32 %v837, %v1033
    %v1230 = vmul.f32 %v838, %v1034
    %v1231 = vmul.f32 %v839, %v1035
    %v1232 = vmul.f32 %v840, %v1036
    %v1233 = vmul.f32 %v841, %v1037
    %v1234 = vmul.f32 %v842, %v1038
    %v1235 = vmul.f32 %v843, %v1039
    %v1236 = vmul.f32 %v844, %v1040
    %v1237 = vmul.f32 %v845, %v1041
    %v1238 = vmul.f32 %v846, %v1042
    %v1239 = vmul.f32 %v847, %v1043
    %v1240 = vmul.f32 %v848, %v1044
    %v1241 = vmul.f32 %v849, %v1045
    %v1242 = vmul.f32 %v850, %v1046
    %v1243 = vmul.f32 %v851, %v1047
    %v1244 = vmul.f32 %v852, %v1048
    %v1245 = vmul.f32 %v853, %v1049
    %v1246 = vmul.f32 %v854, %v1050
    %v1247 = vmul.f32 %v855, %v1051
    %v1248 = vmul.f32 %v856, %v1052
    %v1249 = vmul.f32 %v857, %v1053
    %v1250 = vmul.f32 %v858, %v1054
    %v1251 = vmul.f32 %v859, %v1055
    %v1252 = vmul.f32 %v860, %v1056
    %v1253 = vmul.f32 %v861, %v1057
    %v1254 = vmul.f32 %v862, %v1058
    %v1255 = vmul.f32 %v863, %v1059
    %v1256 = vmul.f32 %v864, %v1060
    %v1257 = vmul.f32 %v865, %v1061
    %v1258 = vmul.f32 %v866, %v1062
    %v1259 = vmul.f32 %v867, %v1063
    %v1260 = vmul.f32 %v868, %v1064
    %v1261 = vmul.f32 %v869, %v1065
    %v1262 = vmul.f32 %v870, %v1066
    %v1263 = vmul.f32 %v871, %v1067
    %v1264 = vmul.f32 %v872, %v1068
    %v1265 = vmul.f32 %v873, %v1069
    %v1266 = vmul.f32 %v874, %v1070
    %v1267 = vmul.f32 %v875, %v1071
    %v1268 = vmul.f32 %v876, %v1072
    %v1269 = vmul.f32 %v877, %v1073
    %v1270 = vmul.f32 %v878, %v1074
    %v1271 = vmul.f32 %v879, %v1075
    %v1272 = vmul.f32 %v880, %v1076
    %v1273 = vmul.f32 %v881, %v1077
    %v1274 = vmul.f32 %v882, %v1078
    %v1275 = vmul.f32 %v883, %v1079
    %v1276 = vmul.f32 %v884, %v1080
    %v1277 = vmul.f32 %v885, %v1081
    %v1278 = vmul.f32 %v886, %v1082
    %v1279 = vmul.f32 %v887, %v1083
    %v1280 = vmul.f32 %v888, %v1084
    %v1281 = vmul.f32 %v889, %v1085
    %v1282 = vmul.f32 %v890, %v1086
    %v1283 = vmul.f32 %v891, %v1087
    %v1284 = vmul.f32 %v892, %v1088
    %v1285 = vmul.f32 %v893, %v1089
    %v1286 = vmul.f32 %v894, %v1090
    %v1287 = vmul.f32 %v895, %v1091
    %v1288 = vmul.f32 %v896, %v1092
    %v1289 = vmul.f32 %v897, %v1093
    %v1290 = vmul.f32 %v898, %v1094
    %v1291 = vmul.f32 %v899, %v1095
    %v1292 = vmul.f32 %v900, %v1096
    %v1293 = vmul.f32 %v901, %v1097
    %v1294 = vmul.f32 %v902, %v1098
    %v1295 = vmul.f32 %v903, %v1099
    %v1296 = vmul.f32 %v904, %v1100
    %v1297 = vmul.f32 %v905, %v1101
    %v1298 = vmul.f32 %v906, %v1102
    %v1299 = vmul.f32 %v907, %v1103
    %v1300 = vmul.f32 %v908, %v1104
    %v1301 = vmul.f32 %v909, %v1105
    %v1302 = vmul.f32 %v910, %v1106
    %v1303 = vmul.f32 %v911, %v1107
    %v1304 = vmul.f32 %v912, %v1108
    %v1305 = vmul.f32 %v913, %v1109
    %v1306 = vmul.f32 %v914, %v1110
    %v1307 = vmul.f32 %v915, %v1111
    %v1308 = vmul.f32 %v916, %v1112
    %v1309 = vmul.f32 %v917, %v1113
    %v1310 = vmul.f32 %v918, %v1114
    %v1311 = vmul.f32 %v919, %v1115
    %v1312 = vmul.f32 %v920, %v1116
    %v1313 = vmul.f32 %v921, %v1117
    %v1314 = vmul.f32 %v922, %v1118
    %v1315 = vmul.f32 %v923, %v1119
    %v1316 = vmul.f32 %v924, %v1120
    %v1317 = vmul.f32 %v925, %v1121
    %v1318 = vmul.f32 %v926, %v1122
    %v1319 = vmul.f32 %v927, %v1123
    %v1320 = vmul.f32 %v928, %v1124
    %v1321 = vmul.f32 %v929, %v1125
    %v1322 = vmul.f32 %v930, %v1126
    %v1323 = vmul.f32 %v931, %v1127
    %v1324 = vmul.f32 %v932, %v1128
    %v1325 = vmul.f32 %v933, %v1129
    %v1326 = vmul.f32 %v934, %v1130
    %v1327 = vmul.f32 %v935, %v1131
    %v1328 = vmul.f32 %v936, %v1132
    %v1329 = vmul.f32 %v937, %v1133
    %v1330 = vmul.f32 %v938, %v1134
    %v1331 = vmul.f32 %v939, %v1135
    %v1332 = vmul.f32 %v940, %v1136
    %v1333 = vmul.f32 %v941, %v1137
    %v1334 = vmul.f32 %v942, %v1138
    %v1335 = vmul.f32 %v943, %v1139
    %v1336 = vmul.f32 %v944, %v1140
    %v1337 = vmul.f32 %v945, %v1141
    %v1338 = vmul.f32 %v946, %v1142
    %v1339 = vmul.f32 %v947, %v1143
    %v1340 = vmul.f32 %v948, %v1144
    %v1341 = vmul.f32 %v949, %v1145
    %v1342 = vmul.f32 %v950, %v1146
    %v1343 = vmul.f32 %v951, %v1147
    %v1344 = vmul.f32 %v952, %v1148
    %v1345 = vmul.f32 %v953, %v1149
    %v1346 = vmul.f32 %v954, %v1150
    %v1347 = vmul.f32 %v955, %v1151
    %v1348 = vmul.f32 %v956, %v1152
    %v1349 = vmul.f32 %v957, %v1153
    %v1350 = vmul.f32 %v958, %v1154
    %v1351 = vmul.f32 %v959, %v1155
    %v1352 = vmul.f32 %v960, %v1156
    %v1353 = vmul.f32 %v961, %v1157
    %v1354 = vmul.f32 %v962, %v1158
    %v1355 = vmul.f32 %v963, %v1159
    %v1356 = vmul.f32 %v964, %v1160
    %v1357 = vmul.f32 %v965, %v1161
    %v1358 = vmul.f32 %v966, %v1162
    %v1359 = vmul.f32 %v967, %v1163
    %v1360 = vmul.f32 %v968, %v1164
    %v1361 = vmul.f32 %v969, %v1165
    %v1362 = vmul.f32 %v970, %v1166
    %v1363 = vmul.f32 %v971, %v1167
    %v1364 = vmul.f32 %v972, %v1168
    %v1365 = vmul.f32 %v973, %v1169
    %v1366 = vmul.f32 %v974, %v1170
    %v1367 = vmul.f32 %v975, %v1171
    %v1368 = vmul.f32 %v976, %v1172
    %v1369 = vmul.f32 %v977, %v1173
    %v1370 = vmul.f32 %v978, %v1174
    %vm1371 = vcmask 130048
    %v1373 = vsel %vm1371, %v782, 0
    %1375 = vmatpush.msra.mxu0 %v1205
    %1376 = vmatpush.msra.mxu0 %v1203
    %1377 = vmatpush.msra.mxu0 %v1201
    %1378 = vmatpush.msra.mxu0 %v1199
    %1379 = vmatpush.msra.mxu0 %v1197
    %1380 = vmatpush.msra.mxu0 %v1195
    %1381 = vmatpush.msra.mxu0 %v1193
    %1382 = vmatpush.msra.mxu0 %v1191
    %1383 = vmatpush.msra.mxu0 %v1189
    %1384 = vmatpush.msra.mxu0 %v1187
    %1385 = vmatpush.msra.mxu0 %v1185
    %1386 = vmatpush.msra.mxu0 %v1183
    %1387 = vmatpush.msra.mxu0 %v1181
    %1388 = vmatpush.msra.mxu0 %v1179
    %1389 = vmatpush.msra.mxu0 %v1177
    %1390 = vmatpush.msra.mxu0 %v1175
    %1391 = vmatmul.f32.gmra.mxu0 %v776
    %v1392 = vpop.f32.mrf.mxu0
    %v1393 = vadd.f32 0.0, %v1392
    %1394 = vdwg.mxu0
    %1395 = vmatpush.msra.mxu0 %v1237
    %1396 = vmatpush.msra.mxu0 %v1235
    %1397 = vmatpush.msra.mxu0 %v1233
    %1398 = vmatpush.msra.mxu0 %v1231
    %1399 = vmatpush.msra.mxu0 %v1229
    %1400 = vmatpush.msra.mxu0 %v1227
    %1401 = vmatpush.msra.mxu0 %v1225
    %1402 = vmatpush.msra.mxu0 %v1223
    %1403 = vmatpush.msra.mxu0 %v1221
    %1404 = vmatpush.msra.mxu0 %v1219
    %1405 = vmatpush.msra.mxu0 %v1217
    %1406 = vmatpush.msra.mxu0 %v1215
    %1407 = vmatpush.msra.mxu0 %v1213
    %1408 = vmatpush.msra.mxu0 %v1211
    %1409 = vmatpush.msra.mxu0 %v1209
    %1410 = vmatpush.msra.mxu0 %v1207
    %1411 = vmatmul.f32.gmra.mxu0 %v777
    %v1412 = vpop.f32.mrf.mxu0
    %v1413 = vadd.f32 %v1393, %v1412
    %1414 = vdwg.mxu0
    %1415 = vmatpush.msra.mxu0 %v1269
    %1416 = vmatpush.msra.mxu0 %v1267
    %1417 = vmatpush.msra.mxu0 %v1265
    %1418 = vmatpush.msra.mxu0 %v1263
    %1419 = vmatpush.msra.mxu0 %v1261
    %1420 = vmatpush.msra.mxu0 %v1259
    %1421 = vmatpush.msra.mxu0 %v1257
    %1422 = vmatpush.msra.mxu0 %v1255
    %1423 = vmatpush.msra.mxu0 %v1253
    %1424 = vmatpush.msra.mxu0 %v1251
    %1425 = vmatpush.msra.mxu0 %v1249
    %1426 = vmatpush.msra.mxu0 %v1247
    %1427 = vmatpush.msra.mxu0 %v1245
    %1428 = vmatpush.msra.mxu0 %v1243
    %1429 = vmatpush.msra.mxu0 %v1241
    %1430 = vmatpush.msra.mxu0 %v1239
    %1431 = vmatmul.f32.gmra.mxu0 %v778
    %v1432 = vpop.f32.mrf.mxu0
    %v1433 = vadd.f32 %v1413, %v1432
    %1434 = vdwg.mxu0
    %1435 = vmatpush.msra.mxu0 %v1301
    %1436 = vmatpush.msra.mxu0 %v1299
    %1437 = vmatpush.msra.mxu0 %v1297
    %1438 = vmatpush.msra.mxu0 %v1295
    %1439 = vmatpush.msra.mxu0 %v1293
    %1440 = vmatpush.msra.mxu0 %v1291
    %1441 = vmatpush.msra.mxu0 %v1289
    %1442 = vmatpush.msra.mxu0 %v1287
    %1443 = vmatpush.msra.mxu0 %v1285
    %1444 = vmatpush.msra.mxu0 %v1283
    %1445 = vmatpush.msra.mxu0 %v1281
    %1446 = vmatpush.msra.mxu0 %v1279
    %1447 = vmatpush.msra.mxu0 %v1277
    %1448 = vmatpush.msra.mxu0 %v1275
    %1449 = vmatpush.msra.mxu0 %v1273
    %1450 = vmatpush.msra.mxu0 %v1271
    %1451 = vmatmul.f32.gmra.mxu0 %v779
    %v1452 = vpop.f32.mrf.mxu0
    %v1453 = vadd.f32 %v1433, %v1452
    %1454 = vdwg.mxu0
    %1455 = vmatpush.msra.mxu0 %v1333
    %1456 = vmatpush.msra.mxu0 %v1331
    %1457 = vmatpush.msra.mxu0 %v1329
    %1458 = vmatpush.msra.mxu0 %v1327
    %1459 = vmatpush.msra.mxu0 %v1325
    %1460 = vmatpush.msra.mxu0 %v1323
    %1461 = vmatpush.msra.mxu0 %v1321
    %1462 = vmatpush.msra.mxu0 %v1319
    %1463 = vmatpush.msra.mxu0 %v1317
    %1464 = vmatpush.msra.mxu0 %v1315
    %1465 = vmatpush.msra.mxu0 %v1313
    %1466 = vmatpush.msra.mxu0 %v1311
    %1467 = vmatpush.msra.mxu0 %v1309
    %1468 = vmatpush.msra.mxu0 %v1307
    %1469 = vmatpush.msra.mxu0 %v1305
    %1470 = vmatpush.msra.mxu0 %v1303
    %1471 = vmatmul.f32.gmra.mxu0 %v780
    %v1472 = vpop.f32.mrf.mxu0
    %v1473 = vadd.f32 %v1453, %v1472
    %1474 = vdwg.mxu0
    %1475 = vmatpush.msra.mxu0 %v1365
    %1476 = vmatpush.msra.mxu0 %v1363
    %1477 = vmatpush.msra.mxu0 %v1361
    %1478 = vmatpush.msra.mxu0 %v1359
    %1479 = vmatpush.msra.mxu0 %v1357
    %1480 = vmatpush.msra.mxu0 %v1355
    %1481 = vmatpush.msra.mxu0 %v1353
    %1482 = vmatpush.msra.mxu0 %v1351
    %1483 = vmatpush.msra.mxu0 %v1349
    %1484 = vmatpush.msra.mxu0 %v1347
    %1485 = vmatpush.msra.mxu0 %v1345
    %1486 = vmatpush.msra.mxu0 %v1343
    %1487 = vmatpush.msra.mxu0 %v1341
    %1488 = vmatpush.msra.mxu0 %v1339
    %1489 = vmatpush.msra.mxu0 %v1337
    %1490 = vmatpush.msra.mxu0 %v1335
    %1491 = vmatmul.f32.gmra.mxu0 %v781
    %v1492 = vpop.f32.mrf.mxu0
    %v1493 = vadd.f32 %v1473, %v1492
    %1494 = vdwg.mxu0
    %1495 = vmatpush.msra.mxu0 0.0
    %1496 = vmatpush.msra.mxu0 0.0
    %1497 = vmatpush.msra.mxu0 0.0
    %1498 = vmatpush.msra.mxu0 0.0
    %1499 = vmatpush.msra.mxu0 0.0
    %1500 = vmatpush.msra.mxu0 0.0
    %1501 = vmatpush.msra.mxu0 0.0
    %1502 = vmatpush.msra.mxu0 0.0
    %1503 = vmatpush.msra.mxu0 0.0
    %1504 = vmatpush.msra.mxu0 0.0
    %1505 = vmatpush.msra.mxu0 0.0
    %1506 = vmatpush.msra.mxu0 0.0
    %1507 = vmatpush.msra.mxu0 0.0
    %1508 = vmatpush.msra.mxu0 0.0
    %1509 = vmatpush.msra.mxu0 %v1369
    %1510 = vmatpush.msra.mxu0 %v1367
    %1511 = vmatmul.f32.gmra.mxu0 %v1373
    %v1512 = vpop.f32.mrf.mxu0
    %v1513 = vadd.f32 %v1493, %v1512
    %1514 = vdwg.mxu0
    %1515 = vmatpush.msra.mxu0 %v1206
    %1516 = vmatpush.msra.mxu0 %v1204
    %1517 = vmatpush.msra.mxu0 %v1202
    %1518 = vmatpush.msra.mxu0 %v1200
    %1519 = vmatpush.msra.mxu0 %v1198
    %1520 = vmatpush.msra.mxu0 %v1196
    %1521 = vmatpush.msra.mxu0 %v1194
    %1522 = vmatpush.msra.mxu0 %v1192
    %1523 = vmatpush.msra.mxu0 %v1190
    %1524 = vmatpush.msra.mxu0 %v1188
    %1525 = vmatpush.msra.mxu0 %v1186
    %1526 = vmatpush.msra.mxu0 %v1184
    %1527 = vmatpush.msra.mxu0 %v1182
    %1528 = vmatpush.msra.mxu0 %v1180
    %1529 = vmatpush.msra.mxu0 %v1178
    %1530 = vmatpush.msra.mxu0 %v1176
    %1531 = vmatmul.f32.gmra.mxu0 %v776
    %v1532 = vpop.f32.mrf.mxu0
    %v1533 = vadd.f32 0.0, %v1532
    %1534 = vdwg.mxu0
    %1535 = vmatpush.msra.mxu0 %v1238
    %1536 = vmatpush.msra.mxu0 %v1236
    %1537 = vmatpush.msra.mxu0 %v1234
    %1538 = vmatpush.msra.mxu0 %v1232
    %1539 = vmatpush.msra.mxu0 %v1230
    %1540 = vmatpush.msra.mxu0 %v1228
    %1541 = vmatpush.msra.mxu0 %v1226
    %1542 = vmatpush.msra.mxu0 %v1224
    %1543 = vmatpush.msra.mxu0 %v1222
    %1544 = vmatpush.msra.mxu0 %v1220
    %1545 = vmatpush.msra.mxu0 %v1218
    %1546 = vmatpush.msra.mxu0 %v1216
    %1547 = vmatpush.msra.mxu0 %v1214
    %1548 = vmatpush.msra.mxu0 %v1212
    %1549 = vmatpush.msra.mxu0 %v1210
    %1550 = vmatpush.msra.mxu0 %v1208
    %1551 = vmatmul.f32.gmra.mxu0 %v777
    %v1552 = vpop.f32.mrf.mxu0
    %v1553 = vadd.f32 %v1533, %v1552
    %1554 = vdwg.mxu0
    %1555 = vmatpush.msra.mxu0 %v1270
    %1556 = vmatpush.msra.mxu0 %v1268
    %1557 = vmatpush.msra.mxu0 %v1266
    %1558 = vmatpush.msra.mxu0 %v1264
    %1559 = vmatpush.msra.mxu0 %v1262
    %1560 = vmatpush.msra.mxu0 %v1260
    %1561 = vmatpush.msra.mxu0 %v1258
    %1562 = vmatpush.msra.mxu0 %v1256
    %1563 = vmatpush.msra.mxu0 %v1254
    %1564 = vmatpush.msra.mxu0 %v1252
    %1565 = vmatpush.msra.mxu0 %v1250
    %1566 = vmatpush.msra.mxu0 %v1248
    %1567 = vmatpush.msra.mxu0 %v1246
    %1568 = vmatpush.msra.mxu0 %v1244
    %1569 = vmatpush.msra.mxu0 %v1242
    %1570 = vmatpush.msra.mxu0 %v1240
    %1571 = vmatmul.f32.gmra.mxu0 %v778
    %v1572 = vpop.f32.mrf.mxu0
    %v1573 = vadd.f32 %v1553, %v1572
    %1574 = vdwg.mxu0
    %1575 = vmatpush.msra.mxu0 %v1302
    %1576 = vmatpush.msra.mxu0 %v1300
    %1577 = vmatpush.msra.mxu0 %v1298
    %1578 = vmatpush.msra.mxu0 %v1296
    %1579 = vmatpush.msra.mxu0 %v1294
    %1580 = vmatpush.msra.mxu0 %v1292
    %1581 = vmatpush.msra.mxu0 %v1290
    %1582 = vmatpush.msra.mxu0 %v1288
    %1583 = vmatpush.msra.mxu0 %v1286
    %1584 = vmatpush.msra.mxu0 %v1284
    %1585 = vmatpush.msra.mxu0 %v1282
    %1586 = vmatpush.msra.mxu0 %v1280
    %1587 = vmatpush.msra.mxu0 %v1278
    %1588 = vmatpush.msra.mxu0 %v1276
    %1589 = vmatpush.msra.mxu0 %v1274
    %1590 = vmatpush.msra.mxu0 %v1272
    %1591 = vmatmul.f32.gmra.mxu0 %v779
    %v1592 = vpop.f32.mrf.mxu0
    %v1593 = vadd.f32 %v1573, %v1592
    %1594 = vdwg.mxu0
    %1595 = vmatpush.msra.mxu0 %v1334
    %1596 = vmatpush.msra.mxu0 %v1332
    %1597 = vmatpush.msra.mxu0 %v1330
    %1598 = vmatpush.msra.mxu0 %v1328
    %1599 = vmatpush.msra.mxu0 %v1326
    %1600 = vmatpush.msra.mxu0 %v1324
    %1601 = vmatpush.msra.mxu0 %v1322
    %1602 = vmatpush.msra.mxu0 %v1320
    %1603 = vmatpush.msra.mxu0 %v1318
    %1604 = vmatpush.msra.mxu0 %v1316
    %1605 = vmatpush.msra.mxu0 %v1314
    %1606 = vmatpush.msra.mxu0 %v1312
    %1607 = vmatpush.msra.mxu0 %v1310
    %1608 = vmatpush.msra.mxu0 %v1308
    %1609 = vmatpush.msra.mxu0 %v1306
    %1610 = vmatpush.msra.mxu0 %v1304
    %1611 = vmatmul.f32.gmra.mxu0 %v780
    %v1612 = vpop.f32.mrf.mxu0
    %v1613 = vadd.f32 %v1593, %v1612
    %1614 = vdwg.mxu0
    %1615 = vmatpush.msra.mxu0 %v1366
    %1616 = vmatpush.msra.mxu0 %v1364
    %1617 = vmatpush.msra.mxu0 %v1362
    %1618 = vmatpush.msra.mxu0 %v1360
    %1619 = vmatpush.msra.mxu0 %v1358
    %1620 = vmatpush.msra.mxu0 %v1356
    %1621 = vmatpush.msra.mxu0 %v1354
    %1622 = vmatpush.msra.mxu0 %v1352
    %1623 = vmatpush.msra.mxu0 %v1350
    %1624 = vmatpush.msra.mxu0 %v1348
    %1625 = vmatpush.msra.mxu0 %v1346
    %1626 = vmatpush.msra.mxu0 %v1344
    %1627 = vmatpush.msra.mxu0 %v1342
    %1628 = vmatpush.msra.mxu0 %v1340
    %1629 = vmatpush.msra.mxu0 %v1338
    %1630 = vmatpush.msra.mxu0 %v1336
    %1631 = vmatmul.f32.gmra.mxu0 %v781
    %v1632 = vpop.f32.mrf.mxu0
    %v1633 = vadd.f32 %v1613, %v1632
    %1634 = vdwg.mxu0
    %1635 = vmatpush.msra.mxu0 0.0
    %1636 = vmatpush.msra.mxu0 0.0
    %1637 = vmatpush.msra.mxu0 0.0
    %1638 = vmatpush.msra.mxu0 0.0
    %1639 = vmatpush.msra.mxu0 0.0
    %1640 = vmatpush.msra.mxu0 0.0
    %1641 = vmatpush.msra.mxu0 0.0
    %1642 = vmatpush.msra.mxu0 0.0
    %1643 = vmatpush.msra.mxu0 0.0
    %1644 = vmatpush.msra.mxu0 0.0
    %1645 = vmatpush.msra.mxu0 0.0
    %1646 = vmatpush.msra.mxu0 0.0
    %1647 = vmatpush.msra.mxu0 0.0
    %1648 = vmatpush.msra.mxu0 0.0
    %1649 = vmatpush.msra.mxu0 %v1370
    %1650 = vmatpush.msra.mxu0 %v1368
    %1651 = vmatmul.f32.gmra.mxu0 %v1373
    %v1652 = vpop.f32.mrf.mxu0
    %v1653 = vadd.f32 %v1633, %v1652
    %1654 = vdwg.mxu0
    %v1655 = vld [vmem:[#allocation2] sm:$0xff]
    %v1656 = vld [vmem:[#allocation2 + $0x8] sm:$0xff]
    %v1657 = vmul.f32 %v1513, %v1655
    %v1658 = vmul.f32 %v1653, %v1656
    %v1659 = vmax.f32 %v1657, 0.0
    %v1660 = vmax.f32 %v1658, 0.0
    %1661 = vst [vmem:[#allocation9] sm:$0xff] %v1659
    %1662 = vst [vmem:[#allocation9 + $0x8] sm:$0xff] %v1660
    // Predicated region
    $region30: #{tpu_custom_call.1} parent=1 // pred_check
      _
    $region31: #{tpu_custom_call.1} parent=1 // pred_check_branch
      %1664 = sbr.rel (0) target = $region33
    $region32: #{tpu_custom_call.1} parent=1 // pred_region
      %1666 = vsyncadd [#allocation5], 0
      %s1668 = sshll.u32 [#allocation9], 4
      %s1669 = int_to_ptr.vmem [resolvable:$true] %s1668
      %s1670 = sshll.u32 %s3, 4
      %s1671 = int_to_ptr.hbm [resolvable:$true] %s1670
      %1673 = dma.vmem_to_hbm [thread:$0]  %s1669, 256, %s1671, [#allocation5]
    $region33: #{tpu_custom_call.1} parent=1 // pred_fallthru
      _
    // Predicated region
    $region34: #{tpu_custom_call.1} parent=1 // pred_check
      _
    $region35: #{tpu_custom_call.1} parent=1 // pred_check_branch
      %1675 = sbr.rel (0) target = $region37
    $region36: #{tpu_custom_call.1} parent=1 // pred_region
      %1677 = dma.done [#allocation5], 256
    $region37: #{tpu_custom_call.1} parent=1 // pred_fallthru
      _
    %1678 = vsyncpa [#allocation4], 1
    %1679 = vsyncpa [#allocation7], 1
    %1680 = vsyncpa [#allocation5], 1

</llo_original>
